<compile_context>
chip_gen: v5e
topology: v5e:2x2
jax: 0.10.0
libtpu: 0.0.40
codegen_flags: <defaults>
</compile_context>

<pallas_src>
import functools
import math

import jax
import jax.numpy as jnp
from jax import lax
from jax.experimental import pallas as pl
from jax.experimental.pallas import tpu as pltpu

_INV_SQRT2 = 0.7071067811865476


# ----------------------------------------------------------------------------
# Fused DecoderLayer kernel (one grid step == one batch element)
# ----------------------------------------------------------------------------
def _decoder_layer_kernel(
    dec_ref, enc_ref, lat_ref,
    sa_qkv_w, sa_qkv_b, sa_fc_w, sa_fc_b,
    ca_q_w, ca_q_b, ca_kv_w, ca_kv_b, ca_fc_w, ca_fc_b,
    ffn_w1, ffn_b1, ffn_w2, ffn_b2,
    st_lat_w, st_lat_b, st_ng, st_nb, st_ow, st_ob,
    ln_g, ln_b,
    out_ref, slf_ref, crs_ref,
    head_scratch,
    *, n_head, d_k, d_v):
  f32, bf16 = jnp.float32, jnp.bfloat16
  D = out_ref.shape[-1]
  hk = n_head * d_k
  sm_scale = 1.0 / math.sqrt(d_k)

  def mm(a, w, b):
    # bf16 operands, f32 accumulation on the MXU (review: drop Precision.HIGHEST).
    return jnp.dot(a.astype(bf16), w.astype(bf16),
                   preferred_element_type=f32) + b

  def layer_norm(x, g, b, eps):
    mu = jnp.mean(x, axis=-1, keepdims=True)
    var = jnp.mean(jnp.square(x - mu), axis=-1, keepdims=True)
    return (x - mu) * lax.rsqrt(var + eps) * g + b

  def silu(x):  # x * sigmoid(x)
    return x / (1.0 + jnp.exp(-x))

  lat_act = silu(lat_ref[0].astype(f32))          # [1, d_latent]

  def stylize(emb, idx):
    # ScaledStylizationBlock: Linear(SiLU(latent)) -> (scale, shift);
    # LN(emb)*(1+scale)+shift -> Linear(SiLU(.)).  emb_norm eps = 1e-5 (torch default).
    lat_out = mm(lat_act, st_lat_w[idx], st_lat_b[idx])        # [1, 2D]
    scale, shift = lat_out[:, :D], lat_out[:, D:]
    hmid = layer_norm(emb, st_ng[idx], st_nb[idx], 1e-5) * (1.0 + scale) + shift
    return mm(silu(hmid), st_ow[idx], st_ob[idx])

  def attend(q, k, v, attn_ref):
    # q [Lq, H*dk], k [Lk, H*dk], v [Lk, H*dv] -> packed heads [Lq, H*dv]
    for hd in range(n_head):
      qh = q[:, hd * d_k:(hd + 1) * d_k].astype(bf16)
      kh = k[:, hd * d_k:(hd + 1) * d_k].astype(bf16)
      vh = v[:, hd * d_v:(hd + 1) * d_v].astype(bf16)
      s = lax.dot_general(qh, kh, (((1,), (1,)), ((), ())),
                          preferred_element_type=f32) * sm_scale
      s = s - jnp.max(s, axis=-1, keepdims=True)
      p = jnp.exp(s)
      # NOTE: exact divide (not pl.reciprocal(approx=True)) to keep a tight match with
      # the f32 reference at these tiny sizes; the softmax is not a bottleneck here.
      p = p / jnp.sum(p, axis=-1, keepdims=True)
      attn_ref[0, hd] = p.astype(attn_ref.dtype)
      head_scratch[:, hd * d_v:(hd + 1) * d_v] = jnp.dot(
          p.astype(bf16), vh, preferred_element_type=f32)
    return head_scratch[...]

  x = dec_ref[0].astype(f32)                      # [Lq, D]
  mem = enc_ref[0].astype(f32)                    # [Lk, D]

  # ---- self-attention + stylization + LayerNorm(1e-6) ----
  residual = x
  qkv = mm(x, sa_qkv_w[...], sa_qkv_b[...])       # fused QKV projection
  o = attend(qkv[:, :hk], qkv[:, hk:2 * hk], qkv[:, 2 * hk:], slf_ref)
  o = mm(o, sa_fc_w[...], sa_fc_b[...])
  o = stylize(o, 0)
  x = layer_norm(o + residual, ln_g[0], ln_b[0], 1e-6)

  # ---- cross-attention + stylization + LayerNorm(1e-6) ----
  residual = x
  q = mm(x, ca_q_w[...], ca_q_b[...])
  kv = mm(mem, ca_kv_w[...], ca_kv_b[...])        # fused KV projection
  o = attend(q, kv[:, :hk], kv[:, hk:], crs_ref)
  o = mm(o, ca_fc_w[...], ca_fc_b[...])
  o = stylize(o, 1)
  x = layer_norm(o + residual, ln_g[1], ln_b[1], 1e-6)

  # ---- FFN (exact GELU) + stylization + LayerNorm(1e-6) ----
  residual = x
  hmid = mm(x, ffn_w1[...], ffn_b1[...])
  hmid = 0.5 * hmid * (1.0 + lax.erf(hmid * _INV_SQRT2))
  hmid = mm(hmid, ffn_w2[...], ffn_b2[...])
  hmid = stylize(hmid, 2)
  x = layer_norm(hmid + residual, ln_g[2], ln_b[2], 1e-6)

  out_ref[0] = x.astype(out_ref.dtype)


_WEIGHT_ORDER = (
    "sa_qkv_w", "sa_qkv_b", "sa_fc_w", "sa_fc_b",
    "ca_q_w", "ca_q_b", "ca_kv_w", "ca_kv_b", "ca_fc_w", "ca_fc_b",
    "ffn_w1", "ffn_b1", "ffn_w2", "ffn_b2",
    "st_lat_w", "st_lat_b", "st_ng", "st_nb", "st_ow", "st_ob",
    "ln_g", "ln_b",
)


def decoder_layer_pallas(params, dec_input, enc_output, latent, *, n_head, d_k, d_v):
  B, Lq, D = dec_input.shape
  Lk = enc_output.shape[1]
  d_latent = latent.shape[-1]
  hv = n_head * d_v

  weights = [params[k] for k in _WEIGHT_ORDER]

  def whole(a):  # weight arrays: one full-array block, resident across grid steps
    nd = a.ndim
    return pl.BlockSpec(a.shape, lambda b, _nd=nd: (0,) * _nd)

  in_specs = ([pl.BlockSpec((1, Lq, D), lambda b: (b, 0, 0)),
               pl.BlockSpec((1, Lk, D), lambda b: (b, 0, 0)),
               pl.BlockSpec((1, 1, d_latent), lambda b: (b, 0, 0))]
              + [whole(a) for a in weights])

  out_shape = (jax.ShapeDtypeStruct((B, Lq, D), jnp.float32),
               jax.ShapeDtypeStruct((B, n_head, Lq, Lq), jnp.float32),
               jax.ShapeDtypeStruct((B, n_head, Lq, Lk), jnp.float32))
  out_specs = (pl.BlockSpec((1, Lq, D), lambda b: (b, 0, 0)),
               pl.BlockSpec((1, n_head, Lq, Lq), lambda b: (b, 0, 0, 0)),
               pl.BlockSpec((1, n_head, Lq, Lk), lambda b: (b, 0, 0, 0)))

  kernel = functools.partial(_decoder_layer_kernel, n_head=n_head, d_k=d_k, d_v=d_v)
  return pl.pallas_call(
      kernel,
      out_shape=out_shape,
      grid=(B,),
      in_specs=in_specs,
      out_specs=out_specs,
      scratch_shapes=[pltpu.VMEM((Lq, hv), jnp.float32)],
      compiler_params=pltpu.CompilerParams(dimension_semantics=("parallel",)),
  )(dec_input, enc_output, latent, *weights)


# ----------------------------------------------------------------------------
# Pure-JAX reference (same math, same bf16-operand / f32-accumulate matmuls)
# ----------------------------------------------------------------------------
def decoder_layer_ref(params, dec_input, enc_output, latent, *, n_head, d_k, d_v):
  f32, bf16 = jnp.float32, jnp.bfloat16
  B, Lq, D = dec_input.shape
  Lk = enc_output.shape[1]
  hk, hv = n_head * d_k, n_head * d_v

  def mm(a, w, b):
    return jnp.einsum("...ik,kj->...ij", a.astype(bf16), w.astype(bf16),
                      preferred_element_type=f32) + b

  def ln(x, g, b, eps):
    mu = x.mean(-1, keepdims=True)
    var = ((x - mu) ** 2).mean(-1, keepdims=True)
    return (x - mu) * lax.rsqrt(var + eps) * g + b

  def silu(x):
    return x / (1.0 + jnp.exp(-x))

  lat_act = silu(latent)

  def stylize(emb, idx):
    lat_out = mm(lat_act, params["st_lat_w"][idx], params["st_lat_b"][idx])
    scale, shift = lat_out[..., :D], lat_out[..., D:]
    h = ln(emb, params["st_ng"][idx], params["st_nb"][idx], 1e-5) * (1.0 + scale) + shift
    return mm(silu(h), params["st_ow"][idx], params["st_ob"][idx])

  def attend(q, k, v, Lk_):
    qh = q.reshape(B, Lq, n_head, d_k).transpose(0, 2, 1, 3)
    kh = k.reshape(B, Lk_, n_head, d_k).transpose(0, 2, 1, 3)
    vh = v.reshape(B, Lk_, n_head, d_v).transpose(0, 2, 1, 3)
    s = jnp.einsum("bhqd,bhkd->bhqk", qh.astype(bf16), kh.astype(bf16),
                   preferred_element_type=f32) / math.sqrt(d_k)
    p = jax.nn.softmax(s, axis=-1)
    o = jnp.einsum("bhqk,bhkd->bhqd", p.astype(bf16), vh.astype(bf16),
                   preferred_element_type=f32)
    return o.transpose(0, 2, 1, 3).reshape(B, Lq, hv), p

  residual = dec_input
  qkv = mm(dec_input, params["sa_qkv_w"], params["sa_qkv_b"])
  o, slf_p = attend(qkv[..., :hk], qkv[..., hk:2 * hk], qkv[..., 2 * hk:], Lq)
  o = mm(o, params["sa_fc_w"], params["sa_fc_b"])
  o = stylize(o, 0)
  x = ln(o + residual, params["ln_g"][0], params["ln_b"][0], 1e-6)

  residual = x
  q = mm(x, params["ca_q_w"], params["ca_q_b"])
  kv = mm(enc_output, params["ca_kv_w"], params["ca_kv_b"])
  o, crs_p = attend(q, kv[..., :hk], kv[..., hk:], Lk)
  o = mm(o, params["ca_fc_w"], params["ca_fc_b"])
  o = stylize(o, 1)
  x = ln(o + residual, params["ln_g"][1], params["ln_b"][1], 1e-6)

  residual = x
  h = mm(x, params["ffn_w1"], params["ffn_b1"])
  h = 0.5 * h * (1.0 + lax.erf(h * _INV_SQRT2))
  h = mm(h, params["ffn_w2"], params["ffn_b2"])
  h = stylize(h, 2)
  x = ln(h + residual, params["ln_g"][2], params["ln_b"][2], 1e-6)
  return x, slf_p, crs_p


# ----------------------------------------------------------------------------
# Parameter construction (already in kernel layout: pre-transposed / fused / stacked)
# ----------------------------------------------------------------------------
def init_params(key, d_model, d_inner, d_latent, n_head, d_k, d_v):
  hk, hv = n_head * d_k, n_head * d_v
  D = d_model
  keys = iter(jax.random.split(key, 24))

  def w(shape, std=0.08):
    return (std * jax.random.normal(next(keys), shape)).astype(jnp.float32)

  return dict(
      # self-attn: [w_qs | w_ks | w_vs] fused, already transposed to [D, .]
      sa_qkv_w=w((D, 2 * hk + hv)), sa_qkv_b=w((1, 2 * hk + hv)),
      sa_fc_w=w((hv, D)), sa_fc_b=w((1, D)),
      # cross-attn: w_qs separate, [w_ks | w_vs] fused
      ca_q_w=w((D, hk)), ca_q_b=w((1, hk)),
      ca_kv_w=w((D, hk + hv)), ca_kv_b=w((1, hk + hv)),
      ca_fc_w=w((hv, D)), ca_fc_b=w((1, D)),
      # FFN
      ffn_w1=w((D, d_inner)), ffn_b1=w((1, d_inner)),
      ffn_w2=w((d_inner, D)), ffn_b2=w((1, D)),
      # ScaledStylizationBlock params stacked for [self-attn, cross-attn, ffn]
      st_lat_w=w((3, d_latent, 2 * D)), st_lat_b=w((3, 1, 2 * D)),
      st_ng=jnp.ones((3, 1, D), jnp.float32), st_nb=jnp.zeros((3, 1, D), jnp.float32),
      st_ow=w((3, D, D)), st_ob=w((3, 1, D)),
      # post-block LayerNorms (eps=1e-6) stacked for [self-attn, cross-attn, ffn]
      ln_g=jnp.ones((3, 1, D), jnp.float32), ln_b=jnp.zeros((3, 1, D), jnp.float32),
  )


if __name__ == "__main__":
  d_model, d_inner, d_latent = 32, 64, 32
  n_head, d_k, d_v = 4, 8, 8
  B, Lq, Lk = 2, 8, 16

  key = jax.random.PRNGKey(0)
  kp, kd, ke, kl = jax.random.split(key, 4)
  params = init_params(kp, d_model, d_inner, d_latent, n_head, d_k, d_v)
  dec_input = jax.random.normal(kd, (B, Lq, d_model), jnp.float32)
  enc_output = jax.random.normal(ke, (B, Lk, d_model), jnp.float32)
  latent = jax.random.normal(kl, (B, 1, d_latent), jnp.float32)

  fwd = jax.jit(functools.partial(decoder_layer_pallas, n_head=n_head, d_k=d_k, d_v=d_v))
  dec_out, slf_attn, crs_attn = fwd(params, dec_input, enc_output, latent)
  jax.block_until_ready((dec_out, slf_attn, crs_attn))

  ref_out, ref_slf, ref_crs = decoder_layer_ref(
      params, dec_input, enc_output, latent, n_head=n_head, d_k=d_k, d_v=d_v)

  assert dec_out.shape == (B, Lq, d_model), dec_out.shape
  assert slf_attn.shape == (B, n_head, Lq, Lq), slf_attn.shape
  assert crs_attn.shape == (B, n_head, Lq, Lk), crs_attn.shape
  # bf16-operand matmuls on both sides -> agreement is tight; 1e-2 absorbs rare
  # bf16 rounding-boundary flips between the Pallas and XLA evaluation orders.
  for got, want in ((dec_out, ref_out), (slf_attn, ref_slf), (crs_attn, ref_crs)):
    assert jnp.allclose(got, want, atol=1e-2, rtol=1e-2), float(jnp.max(jnp.abs(got - want)))
  print("KERNEL_OK")
</pallas_src>

<mosaic_0001>
module attributes {stable_mosaic.version = 11 : i64} {
  func.func @_decoder_layer_kernel(%arg0: i32, %arg1: memref<1x8x32xf32, #tpu.memory_space<vmem>>, %arg2: memref<1x16x32xf32, #tpu.memory_space<vmem>>, %arg3: memref<1x1x32xf32, #tpu.memory_space<vmem>>, %arg4: memref<32x96xf32, #tpu.memory_space<vmem>>, %arg5: memref<1x96xf32, #tpu.memory_space<vmem>>, %arg6: memref<32x32xf32, #tpu.memory_space<vmem>>, %arg7: memref<1x32xf32, #tpu.memory_space<vmem>>, %arg8: memref<32x32xf32, #tpu.memory_space<vmem>>, %arg9: memref<1x32xf32, #tpu.memory_space<vmem>>, %arg10: memref<32x64xf32, #tpu.memory_space<vmem>>, %arg11: memref<1x64xf32, #tpu.memory_space<vmem>>, %arg12: memref<32x32xf32, #tpu.memory_space<vmem>>, %arg13: memref<1x32xf32, #tpu.memory_space<vmem>>, %arg14: memref<32x64xf32, #tpu.memory_space<vmem>>, %arg15: memref<1x64xf32, #tpu.memory_space<vmem>>, %arg16: memref<64x32xf32, #tpu.memory_space<vmem>>, %arg17: memref<1x32xf32, #tpu.memory_space<vmem>>, %arg18: memref<3x32x64xf32, #tpu.memory_space<vmem>>, %arg19: memref<3x1x64xf32, #tpu.memory_space<vmem>>, %arg20: memref<3x1x32xf32, #tpu.memory_space<vmem>>, %arg21: memref<3x1x32xf32, #tpu.memory_space<vmem>>, %arg22: memref<3x32x32xf32, #tpu.memory_space<vmem>>, %arg23: memref<3x1x32xf32, #tpu.memory_space<vmem>>, %arg24: memref<3x1x32xf32, #tpu.memory_space<vmem>>, %arg25: memref<3x1x32xf32, #tpu.memory_space<vmem>>, %arg26: memref<1x8x32xf32, #tpu.memory_space<vmem>>, %arg27: memref<1x4x8x8xf32, #tpu.memory_space<vmem>>, %arg28: memref<1x4x8x16xf32, #tpu.memory_space<vmem>>, %arg29: memref<8x32xf32, #tpu.memory_space<vmem>>) attributes {dimension_semantics = [#tpu.dimension_semantics<parallel>], iteration_bounds = array<i64: 2>, scalar_prefetch = 0 : i64, scratch_operands = 1 : i64, tpu.core_type = #tpu.core_type<tc>, window_params = [{transform_indices = @transform_0, window_bounds = array<i64: 1, 8, 32>}, {transform_indices = @transform_1, window_bounds = array<i64: 1, 16, 32>}, {transform_indices = @transform_2, window_bounds = array<i64: 1, 1, 32>}, {pipeline_mode = #tpu.pipeline_mode<synchronous>, transform_indices = @transform_3, window_bounds = array<i64: 32, 96>}, {pipeline_mode = #tpu.pipeline_mode<synchronous>, transform_indices = @transform_4, window_bounds = array<i64: 1, 96>}, {pipeline_mode = #tpu.pipeline_mode<synchronous>, transform_indices = @transform_5, window_bounds = array<i64: 32, 32>}, {pipeline_mode = #tpu.pipeline_mode<synchronous>, transform_indices = @transform_6, window_bounds = array<i64: 1, 32>}, {pipeline_mode = #tpu.pipeline_mode<synchronous>, transform_indices = @transform_7, window_bounds = array<i64: 32, 32>}, {pipeline_mode = #tpu.pipeline_mode<synchronous>, transform_indices = @transform_8, window_bounds = array<i64: 1, 32>}, {pipeline_mode = #tpu.pipeline_mode<synchronous>, transform_indices = @transform_9, window_bounds = array<i64: 32, 64>}, {pipeline_mode = #tpu.pipeline_mode<synchronous>, transform_indices = @transform_10, window_bounds = array<i64: 1, 64>}, {pipeline_mode = #tpu.pipeline_mode<synchronous>, transform_indices = @transform_11, window_bounds = array<i64: 32, 32>}, {pipeline_mode = #tpu.pipeline_mode<synchronous>, transform_indices = @transform_12, window_bounds = array<i64: 1, 32>}, {pipeline_mode = #tpu.pipeline_mode<synchronous>, transform_indices = @transform_13, window_bounds = array<i64: 32, 64>}, {pipeline_mode = #tpu.pipeline_mode<synchronous>, transform_indices = @transform_14, window_bounds = array<i64: 1, 64>}, {pipeline_mode = #tpu.pipeline_mode<synchronous>, transform_indices = @transform_15, window_bounds = array<i64: 64, 32>}, {pipeline_mode = #tpu.pipeline_mode<synchronous>, transform_indices = @transform_16, window_bounds = array<i64: 1, 32>}, {pipeline_mode = #tpu.pipeline_mode<synchronous>, transform_indices = @transform_17, window_bounds = array<i64: 3, 32, 64>}, {pipeline_mode = #tpu.pipeline_mode<synchronous>, transform_indices = @transform_18, window_bounds = array<i64: 3, 1, 64>}, {pipeline_mode = #tpu.pipeline_mode<synchronous>, transform_indices = @transform_19, window_bounds = array<i64: 3, 1, 32>}, {pipeline_mode = #tpu.pipeline_mode<synchronous>, transform_indices = @transform_20, window_bounds = array<i64: 3, 1, 32>}, {pipeline_mode = #tpu.pipeline_mode<synchronous>, transform_indices = @transform_21, window_bounds = array<i64: 3, 32, 32>}, {pipeline_mode = #tpu.pipeline_mode<synchronous>, transform_indices = @transform_22, window_bounds = array<i64: 3, 1, 32>}, {pipeline_mode = #tpu.pipeline_mode<synchronous>, transform_indices = @transform_23, window_bounds = array<i64: 3, 1, 32>}, {pipeline_mode = #tpu.pipeline_mode<synchronous>, transform_indices = @transform_24, window_bounds = array<i64: 3, 1, 32>}, {transform_indices = @transform_25, window_bounds = array<i64: 1, 8, 32>}, {transform_indices = @transform_26, window_bounds = array<i64: 1, 4, 8, 8>}, {transform_indices = @transform_27, window_bounds = array<i64: 1, 4, 8, 16>}]} {
    %c0 = arith.constant 0 : index
    %c0_0 = arith.constant 0 : index
    %c0_1 = arith.constant 0 : index
    %0 = vector.load %arg3[%c0, %c0_0, %c0_1] : memref<1x1x32xf32, #tpu.memory_space<vmem>>, vector<1x1x32xf32>
    %1 = vector.shape_cast %0 : vector<1x1x32xf32> to vector<1x32xf32>
    %cst = arith.constant 0.000000e+00 : f32
    %2 = vector.broadcast %cst : f32 to vector<1x32xf32>
    %3 = arith.subf %2, %1 : vector<1x32xf32>
    %4 = math.exp %3 : vector<1x32xf32>
    %cst_2 = arith.constant 1.000000e+00 : f32
    %5 = vector.broadcast %cst_2 : f32 to vector<1x32xf32>
    %6 = arith.addf %5, %4 : vector<1x32xf32>
    %7 = arith.divf %1, %6 : vector<1x32xf32>
    %c0_3 = arith.constant 0 : index
    %c0_4 = arith.constant 0 : index
    %c0_5 = arith.constant 0 : index
    %8 = vector.load %arg1[%c0_3, %c0_4, %c0_5] : memref<1x8x32xf32, #tpu.memory_space<vmem>>, vector<1x8x32xf32>
    %9 = vector.shape_cast %8 : vector<1x8x32xf32> to vector<8x32xf32>
    %c0_6 = arith.constant 0 : index
    %c0_7 = arith.constant 0 : index
    %c0_8 = arith.constant 0 : index
    %10 = vector.load %arg2[%c0_6, %c0_7, %c0_8] : memref<1x16x32xf32, #tpu.memory_space<vmem>>, vector<1x16x32xf32>
    %11 = vector.shape_cast %10 : vector<1x16x32xf32> to vector<16x32xf32>
    %c0_9 = arith.constant 0 : index
    %c0_10 = arith.constant 0 : index
    %12 = vector.load %arg4[%c0_9, %c0_10] : memref<32x96xf32, #tpu.memory_space<vmem>>, vector<32x96xf32>
    %c0_11 = arith.constant 0 : index
    %c0_12 = arith.constant 0 : index
    %13 = vector.load %arg5[%c0_11, %c0_12] : memref<1x96xf32, #tpu.memory_space<vmem>>, vector<1x96xf32>
    %14 = arith.truncf %9 : vector<8x32xf32> to vector<8x32xbf16>
    %15 = arith.truncf %12 : vector<32x96xf32> to vector<32x96xbf16>
    %cst_13 = arith.constant dense<0.000000e+00> : vector<8x96xf32>
    %16 = tpu.matmul %14, %15, %cst_13 {dimension_numbers = #tpu.dot_dimension_numbers<[1], [0], [0], [1], [0, 0, 1, 1], [], []>} : vector<8x32xbf16>, vector<32x96xbf16>, vector<8x96xf32> -> vector<8x96xf32>
    %17 = vector.broadcast %13 : vector<1x96xf32> to vector<8x96xf32>
    %18 = arith.addf %16, %17 : vector<8x96xf32>
    %19 = vector.extract_strided_slice %18 {offsets = [0, 0], sizes = [8, 32], strides = [1, 1]} : vector<8x96xf32> to vector<8x32xf32>
    %20 = vector.extract_strided_slice %18 {offsets = [0, 32], sizes = [8, 32], strides = [1, 1]} : vector<8x96xf32> to vector<8x32xf32>
    %21 = vector.extract_strided_slice %18 {offsets = [0, 64], sizes = [8, 32], strides = [1, 1]} : vector<8x96xf32> to vector<8x32xf32>
    %22 = vector.extract_strided_slice %19 {offsets = [0, 0], sizes = [8, 8], strides = [1, 1]} : vector<8x32xf32> to vector<8x8xf32>
    %23 = arith.truncf %22 : vector<8x8xf32> to vector<8x8xbf16>
    %24 = vector.extract_strided_slice %20 {offsets = [0, 0], sizes = [8, 8], strides = [1, 1]} : vector<8x32xf32> to vector<8x8xf32>
    %25 = arith.truncf %24 : vector<8x8xf32> to vector<8x8xbf16>
    %26 = vector.extract_strided_slice %21 {offsets = [0, 0], sizes = [8, 8], strides = [1, 1]} : vector<8x32xf32> to vector<8x8xf32>
    %27 = arith.truncf %26 : vector<8x8xf32> to vector<8x8xbf16>
    %cst_14 = arith.constant dense<0.000000e+00> : vector<8x8xf32>
    %28 = tpu.matmul %23, %25, %cst_14 {dimension_numbers = #tpu.dot_dimension_numbers<[1], [1], [0], [0], [0, 0, 1, 0], [], []>} : vector<8x8xbf16>, vector<8x8xbf16>, vector<8x8xf32> -> vector<8x8xf32>
    %cst_15 = arith.constant 0.353553385 : f32
    %29 = vector.broadcast %cst_15 : f32 to vector<8x8xf32>
    %30 = arith.mulf %28, %29 : vector<8x8xf32>
    %cst_16 = arith.constant dense<0xFF800000> : vector<8xf32>
    %31 = vector.multi_reduction <maximumf>, %30, %cst_16 [1] : vector<8x8xf32> to vector<8xf32>
    %32 = vector.shape_cast %31 : vector<8xf32> to vector<8x1xf32>
    %33 = vector.broadcast %32 : vector<8x1xf32> to vector<8x8xf32>
    %34 = arith.subf %30, %33 : vector<8x8xf32>
    %35 = math.exp %34 : vector<8x8xf32>
    %cst_17 = arith.constant dense<0.000000e+00> : vector<8xf32>
    %36 = vector.multi_reduction <add>, %35, %cst_17 [1] : vector<8x8xf32> to vector<8xf32>
    %37 = vector.shape_cast %36 : vector<8xf32> to vector<8x1xf32>
    %38 = vector.broadcast %37 : vector<8x1xf32> to vector<8x8xf32>
    %39 = arith.divf %35, %38 : vector<8x8xf32>
    %c0_18 = arith.constant 0 : index
    %c0_19 = arith.constant 0 : index
    %c0_20 = arith.constant 0 : index
    %c0_21 = arith.constant 0 : index
    %40 = vector.load %arg27[%c0_18, %c0_19, %c0_20, %c0_21] : memref<1x4x8x8xf32, #tpu.memory_space<vmem>>, vector<1x1x8x8xf32>
    %41 = vector.shape_cast %40 : vector<1x1x8x8xf32> to vector<8x8xf32>
    %42 = vector.shape_cast %39 : vector<8x8xf32> to vector<1x1x8x8xf32>
    tpu.vector_store %arg27[%c0_18, %c0_19, %c0_20, %c0_21], %42 {strides = array<i32>} : memref<1x4x8x8xf32, #tpu.memory_space<vmem>>, vector<1x1x8x8xf32>,
    %43 = arith.truncf %39 : vector<8x8xf32> to vector<8x8xbf16>
    %cst_22 = arith.constant dense<0.000000e+00> : vector<8x8xf32>
    %44 = tpu.matmul %43, %27, %cst_22 {dimension_numbers = #tpu.dot_dimension_numbers<[1], [0], [0], [1], [0, 0, 1, 1], [], []>} : vector<8x8xbf16>, vector<8x8xbf16>, vector<8x8xf32> -> vector<8x8xf32>
    %c0_23 = arith.constant 0 : index
    %c0_24 = arith.constant 0 : index
    %45 = vector.load %arg29[%c0_23, %c0_24] : memref<8x32xf32, #tpu.memory_space<vmem>>, vector<8x8xf32>
    tpu.vector_store %arg29[%c0_23, %c0_24], %44 {strides = array<i32>} : memref<8x32xf32, #tpu.memory_space<vmem>>, vector<8x8xf32>,
    %46 = vector.extract_strided_slice %19 {offsets = [0, 8], sizes = [8, 8], strides = [1, 1]} : vector<8x32xf32> to vector<8x8xf32>
    %47 = arith.truncf %46 : vector<8x8xf32> to vector<8x8xbf16>
    %48 = vector.extract_strided_slice %20 {offsets = [0, 8], sizes = [8, 8], strides = [1, 1]} : vector<8x32xf32> to vector<8x8xf32>
    %49 = arith.truncf %48 : vector<8x8xf32> to vector<8x8xbf16>
    %50 = vector.extract_strided_slice %21 {offsets = [0, 8], sizes = [8, 8], strides = [1, 1]} : vector<8x32xf32> to vector<8x8xf32>
    %51 = arith.truncf %50 : vector<8x8xf32> to vector<8x8xbf16>
    %cst_25 = arith.constant dense<0.000000e+00> : vector<8x8xf32>
    %52 = tpu.matmul %47, %49, %cst_25 {dimension_numbers = #tpu.dot_dimension_numbers<[1], [1], [0], [0], [0, 0, 1, 0], [], []>} : vector<8x8xbf16>, vector<8x8xbf16>, vector<8x8xf32> -> vector<8x8xf32>
    %cst_26 = arith.constant 0.353553385 : f32
    %53 = vector.broadcast %cst_26 : f32 to vector<8x8xf32>
    %54 = arith.mulf %52, %53 : vector<8x8xf32>
    %cst_27 = arith.constant dense<0xFF800000> : vector<8xf32>
    %55 = vector.multi_reduction <maximumf>, %54, %cst_27 [1] : vector<8x8xf32> to vector<8xf32>
    %56 = vector.shape_cast %55 : vector<8xf32> to vector<8x1xf32>
    %57 = vector.broadcast %56 : vector<8x1xf32> to vector<8x8xf32>
    %58 = arith.subf %54, %57 : vector<8x8xf32>
    %59 = math.exp %58 : vector<8x8xf32>
    %cst_28 = arith.constant dense<0.000000e+00> : vector<8xf32>
    %60 = vector.multi_reduction <add>, %59, %cst_28 [1] : vector<8x8xf32> to vector<8xf32>
    %61 = vector.shape_cast %60 : vector<8xf32> to vector<8x1xf32>
    %62 = vector.broadcast %61 : vector<8x1xf32> to vector<8x8xf32>
    %63 = arith.divf %59, %62 : vector<8x8xf32>
    %c0_29 = arith.constant 0 : index
    %c1 = arith.constant 1 : index
    %c0_30 = arith.constant 0 : index
    %c0_31 = arith.constant 0 : index
    %64 = vector.load %arg27[%c0_29, %c1, %c0_30, %c0_31] : memref<1x4x8x8xf32, #tpu.memory_space<vmem>>, vector<1x1x8x8xf32>
    %65 = vector.shape_cast %64 : vector<1x1x8x8xf32> to vector<8x8xf32>
    %66 = vector.shape_cast %63 : vector<8x8xf32> to vector<1x1x8x8xf32>
    tpu.vector_store %arg27[%c0_29, %c1, %c0_30, %c0_31], %66 {strides = array<i32>} : memref<1x4x8x8xf32, #tpu.memory_space<vmem>>, vector<1x1x8x8xf32>,
    %67 = arith.truncf %63 : vector<8x8xf32> to vector<8x8xbf16>
    %cst_32 = arith.constant dense<0.000000e+00> : vector<8x8xf32>
    %68 = tpu.matmul %67, %51, %cst_32 {dimension_numbers = #tpu.dot_dimension_numbers<[1], [0], [0], [1], [0, 0, 1, 1], [], []>} : vector<8x8xbf16>, vector<8x8xbf16>, vector<8x8xf32> -> vector<8x8xf32>
    %c0_33 = arith.constant 0 : index
    %c8 = arith.constant 8 : index
    %69 = vector.load %arg29[%c0_33, %c8] : memref<8x32xf32, #tpu.memory_space<vmem>>, vector<8x8xf32>
    tpu.vector_store %arg29[%c0_33, %c8], %68 {strides = array<i32>} : memref<8x32xf32, #tpu.memory_space<vmem>>, vector<8x8xf32>,
    %70 = vector.extract_strided_slice %19 {offsets = [0, 16], sizes = [8, 8], strides = [1, 1]} : vector<8x32xf32> to vector<8x8xf32>
    %71 = arith.truncf %70 : vector<8x8xf32> to vector<8x8xbf16>
    %72 = vector.extract_strided_slice %20 {offsets = [0, 16], sizes = [8, 8], strides = [1, 1]} : vector<8x32xf32> to vector<8x8xf32>
    %73 = arith.truncf %72 : vector<8x8xf32> to vector<8x8xbf16>
    %74 = vector.extract_strided_slice %21 {offsets = [0, 16], sizes = [8, 8], strides = [1, 1]} : vector<8x32xf32> to vector<8x8xf32>
    %75 = arith.truncf %74 : vector<8x8xf32> to vector<8x8xbf16>
    %cst_34 = arith.constant dense<0.000000e+00> : vector<8x8xf32>
    %76 = tpu.matmul %71, %73, %cst_34 {dimension_numbers = #tpu.dot_dimension_numbers<[1], [1], [0], [0], [0, 0, 1, 0], [], []>} : vector<8x8xbf16>, vector<8x8xbf16>, vector<8x8xf32> -> vector<8x8xf32>
    %cst_35 = arith.constant 0.353553385 : f32
    %77 = vector.broadcast %cst_35 : f32 to vector<8x8xf32>
    %78 = arith.mulf %76, %77 : vector<8x8xf32>
    %cst_36 = arith.constant dense<0xFF800000> : vector<8xf32>
    %79 = vector.multi_reduction <maximumf>, %78, %cst_36 [1] : vector<8x8xf32> to vector<8xf32>
    %80 = vector.shape_cast %79 : vector<8xf32> to vector<8x1xf32>
    %81 = vector.broadcast %80 : vector<8x1xf32> to vector<8x8xf32>
    %82 = arith.subf %78, %81 : vector<8x8xf32>
    %83 = math.exp %82 : vector<8x8xf32>
    %cst_37 = arith.constant dense<0.000000e+00> : vector<8xf32>
    %84 = vector.multi_reduction <add>, %83, %cst_37 [1] : vector<8x8xf32> to vector<8xf32>
    %85 = vector.shape_cast %84 : vector<8xf32> to vector<8x1xf32>
    %86 = vector.broadcast %85 : vector<8x1xf32> to vector<8x8xf32>
    %87 = arith.divf %83, %86 : vector<8x8xf32>
    %c0_38 = arith.constant 0 : index
    %c2 = arith.constant 2 : index
    %c0_39 = arith.constant 0 : index
    %c0_40 = arith.constant 0 : index
    %88 = vector.load %arg27[%c0_38, %c2, %c0_39, %c0_40] : memref<1x4x8x8xf32, #tpu.memory_space<vmem>>, vector<1x1x8x8xf32>
    %89 = vector.shape_cast %88 : vector<1x1x8x8xf32> to vector<8x8xf32>
    %90 = vector.shape_cast %87 : vector<8x8xf32> to vector<1x1x8x8xf32>
    tpu.vector_store %arg27[%c0_38, %c2, %c0_39, %c0_40], %90 {strides = array<i32>} : memref<1x4x8x8xf32, #tpu.memory_space<vmem>>, vector<1x1x8x8xf32>,
    %91 = arith.truncf %87 : vector<8x8xf32> to vector<8x8xbf16>
    %cst_41 = arith.constant dense<0.000000e+00> : vector<8x8xf32>
    %92 = tpu.matmul %91, %75, %cst_41 {dimension_numbers = #tpu.dot_dimension_numbers<[1], [0], [0], [1], [0, 0, 1, 1], [], []>} : vector<8x8xbf16>, vector<8x8xbf16>, vector<8x8xf32> -> vector<8x8xf32>
    %c0_42 = arith.constant 0 : index
    %c16 = arith.constant 16 : index
    %93 = vector.load %arg29[%c0_42, %c16] : memref<8x32xf32, #tpu.memory_space<vmem>>, vector<8x8xf32>
    tpu.vector_store %arg29[%c0_42, %c16], %92 {strides = array<i32>} : memref<8x32xf32, #tpu.memory_space<vmem>>, vector<8x8xf32>,
    %94 = vector.extract_strided_slice %19 {offsets = [0, 24], sizes = [8, 8], strides = [1, 1]} : vector<8x32xf32> to vector<8x8xf32>
    %95 = arith.truncf %94 : vector<8x8xf32> to vector<8x8xbf16>
    %96 = vector.extract_strided_slice %20 {offsets = [0, 24], sizes = [8, 8], strides = [1, 1]} : vector<8x32xf32> to vector<8x8xf32>
    %97 = arith.truncf %96 : vector<8x8xf32> to vector<8x8xbf16>
    %98 = vector.extract_strided_slice %21 {offsets = [0, 24], sizes = [8, 8], strides = [1, 1]} : vector<8x32xf32> to vector<8x8xf32>
    %99 = arith.truncf %98 : vector<8x8xf32> to vector<8x8xbf16>
    %cst_43 = arith.constant dense<0.000000e+00> : vector<8x8xf32>
    %100 = tpu.matmul %95, %97, %cst_43 {dimension_numbers = #tpu.dot_dimension_numbers<[1], [1], [0], [0], [0, 0, 1, 0], [], []>} : vector<8x8xbf16>, vector<8x8xbf16>, vector<8x8xf32> -> vector<8x8xf32>
    %cst_44 = arith.constant 0.353553385 : f32
    %101 = vector.broadcast %cst_44 : f32 to vector<8x8xf32>
    %102 = arith.mulf %100, %101 : vector<8x8xf32>
    %cst_45 = arith.constant dense<0xFF800000> : vector<8xf32>
    %103 = vector.multi_reduction <maximumf>, %102, %cst_45 [1] : vector<8x8xf32> to vector<8xf32>
    %104 = vector.shape_cast %103 : vector<8xf32> to vector<8x1xf32>
    %105 = vector.broadcast %104 : vector<8x1xf32> to vector<8x8xf32>
    %106 = arith.subf %102, %105 : vector<8x8xf32>
    %107 = math.exp %106 : vector<8x8xf32>
    %cst_46 = arith.constant dense<0.000000e+00> : vector<8xf32>
    %108 = vector.multi_reduction <add>, %107, %cst_46 [1] : vector<8x8xf32> to vector<8xf32>
    %109 = vector.shape_cast %108 : vector<8xf32> to vector<8x1xf32>
    %110 = vector.broadcast %109 : vector<8x1xf32> to vector<8x8xf32>
    %111 = arith.divf %107, %110 : vector<8x8xf32>
    %c0_47 = arith.constant 0 : index
    %c3 = arith.constant 3 : index
    %c0_48 = arith.constant 0 : index
    %c0_49 = arith.constant 0 : index
    %112 = vector.load %arg27[%c0_47, %c3, %c0_48, %c0_49] : memref<1x4x8x8xf32, #tpu.memory_space<vmem>>, vector<1x1x8x8xf32>
    %113 = vector.shape_cast %112 : vector<1x1x8x8xf32> to vector<8x8xf32>
    %114 = vector.shape_cast %111 : vector<8x8xf32> to vector<1x1x8x8xf32>
    tpu.vector_store %arg27[%c0_47, %c3, %c0_48, %c0_49], %114 {strides = array<i32>} : memref<1x4x8x8xf32, #tpu.memory_space<vmem>>, vector<1x1x8x8xf32>,
    %115 = arith.truncf %111 : vector<8x8xf32> to vector<8x8xbf16>
    %cst_50 = arith.constant dense<0.000000e+00> : vector<8x8xf32>
    %116 = tpu.matmul %115, %99, %cst_50 {dimension_numbers = #tpu.dot_dimension_numbers<[1], [0], [0], [1], [0, 0, 1, 1], [], []>} : vector<8x8xbf16>, vector<8x8xbf16>, vector<8x8xf32> -> vector<8x8xf32>
    %c0_51 = arith.constant 0 : index
    %c24 = arith.constant 24 : index
    %117 = vector.load %arg29[%c0_51, %c24] : memref<8x32xf32, #tpu.memory_space<vmem>>, vector<8x8xf32>
    tpu.vector_store %arg29[%c0_51, %c24], %116 {strides = array<i32>} : memref<8x32xf32, #tpu.memory_space<vmem>>, vector<8x8xf32>,
    %c0_52 = arith.constant 0 : index
    %c0_53 = arith.constant 0 : index
    %118 = vector.load %arg29[%c0_52, %c0_53] : memref<8x32xf32, #tpu.memory_space<vmem>>, vector<8x32xf32>
    %c0_54 = arith.constant 0 : index
    %c0_55 = arith.constant 0 : index
    %119 = vector.load %arg6[%c0_54, %c0_55] : memref<32x32xf32, #tpu.memory_space<vmem>>, vector<32x32xf32>
    %c0_56 = arith.constant 0 : index
    %c0_57 = arith.constant 0 : index
    %120 = vector.load %arg7[%c0_56, %c0_57] : memref<1x32xf32, #tpu.memory_space<vmem>>, vector<1x32xf32>
    %121 = arith.truncf %118 : vector<8x32xf32> to vector<8x32xbf16>
    %122 = arith.truncf %119 : vector<32x32xf32> to vector<32x32xbf16>
    %cst_58 = arith.constant dense<0.000000e+00> : vector<8x32xf32>
    %123 = tpu.matmul %121, %122, %cst_58 {dimension_numbers = #tpu.dot_dimension_numbers<[1], [0], [0], [1], [0, 0, 1, 1], [], []>} : vector<8x32xbf16>, vector<32x32xbf16>, vector<8x32xf32> -> vector<8x32xf32>
    %124 = vector.broadcast %120 : vector<1x32xf32> to vector<8x32xf32>
    %125 = arith.addf %123, %124 : vector<8x32xf32>
    %c0_59 = arith.constant 0 : index
    %c0_60 = arith.constant 0 : index
    %c0_61 = arith.constant 0 : index
    %126 = vector.load %arg18[%c0_59, %c0_60, %c0_61] : memref<3x32x64xf32, #tpu.memory_space<vmem>>, vector<1x32x64xf32>
    %127 = vector.shape_cast %126 : vector<1x32x64xf32> to vector<32x64xf32>
    %c0_62 = arith.constant 0 : index
    %c0_63 = arith.constant 0 : index
    %c0_64 = arith.constant 0 : index
    %128 = vector.load %arg19[%c0_62, %c0_63, %c0_64] : memref<3x1x64xf32, #tpu.memory_space<vmem>>, vector<1x1x64xf32>
    %129 = vector.shape_cast %128 : vector<1x1x64xf32> to vector<1x64xf32>
    %130 = arith.truncf %7 : vector<1x32xf32> to vector<1x32xbf16>
    %131 = arith.truncf %127 : vector<32x64xf32> to vector<32x64xbf16>
    %cst_65 = arith.constant dense<0.000000e+00> : vector<1x64xf32>
    %132 = tpu.matmul %130, %131, %cst_65 {dimension_numbers = #tpu.dot_dimension_numbers<[1], [0], [0], [1], [0, 0, 1, 1], [], []>} : vector<1x32xbf16>, vector<32x64xbf16>, vector<1x64xf32> -> vector<1x64xf32>
    %133 = arith.addf %132, %129 : vector<1x64xf32>
    %134 = vector.extract_strided_slice %133 {offsets = [0, 0], sizes = [1, 32], strides = [1, 1]} : vector<1x64xf32> to vector<1x32xf32>
    %135 = vector.extract_strided_slice %133 {offsets = [0, 32], sizes = [1, 32], strides = [1, 1]} : vector<1x64xf32> to vector<1x32xf32>
    %c0_66 = arith.constant 0 : index
    %c0_67 = arith.constant 0 : index
    %c0_68 = arith.constant 0 : index
    %136 = vector.load %arg20[%c0_66, %c0_67, %c0_68] : memref<3x1x32xf32, #tpu.memory_space<vmem>>, vector<1x1x32xf32>
    %137 = vector.shape_cast %136 : vector<1x1x32xf32> to vector<1x32xf32>
    %c0_69 = arith.constant 0 : index
    %c0_70 = arith.constant 0 : index
    %c0_71 = arith.constant 0 : index
    %138 = vector.load %arg21[%c0_69, %c0_70, %c0_71] : memref<3x1x32xf32, #tpu.memory_space<vmem>>, vector<1x1x32xf32>
    %139 = vector.shape_cast %138 : vector<1x1x32xf32> to vector<1x32xf32>
    %cst_72 = arith.constant dense<0.000000e+00> : vector<8xf32>
    %140 = vector.multi_reduction <add>, %125, %cst_72 [1] : vector<8x32xf32> to vector<8xf32>
    %141 = vector.shape_cast %140 : vector<8xf32> to vector<8x1xf32>
    %cst_73 = arith.constant 3.200000e+01 : f32
    %142 = vector.broadcast %cst_73 : f32 to vector<8x1xf32>
    %143 = arith.divf %141, %142 : vector<8x1xf32>
    %144 = vector.broadcast %143 : vector<8x1xf32> to vector<8x32xf32>
    %145 = arith.subf %125, %144 : vector<8x32xf32>
    %146 = arith.mulf %145, %145 : vector<8x32xf32>
    %cst_74 = arith.constant dense<0.000000e+00> : vector<8xf32>
    %147 = vector.multi_reduction <add>, %146, %cst_74 [1] : vector<8x32xf32> to vector<8xf32>
    %148 = vector.shape_cast %147 : vector<8xf32> to vector<8x1xf32>
    %cst_75 = arith.constant 3.200000e+01 : f32
    %149 = vector.broadcast %cst_75 : f32 to vector<8x1xf32>
    %150 = arith.divf %148, %149 : vector<8x1xf32>
    %151 = vector.broadcast %143 : vector<8x1xf32> to vector<8x32xf32>
    %152 = arith.subf %125, %151 : vector<8x32xf32>
    %cst_76 = arith.constant 9.99999974E-6 : f32
    %153 = vector.broadcast %cst_76 : f32 to vector<8x1xf32>
    %154 = arith.addf %150, %153 : vector<8x1xf32>
    %155 = math.rsqrt %154 : vector<8x1xf32>
    %156 = vector.broadcast %155 : vector<8x1xf32> to vector<8x32xf32>
    %157 = arith.mulf %152, %156 : vector<8x32xf32>
    %158 = vector.broadcast %137 : vector<1x32xf32> to vector<8x32xf32>
    %159 = arith.mulf %157, %158 : vector<8x32xf32>
    %160 = vector.broadcast %139 : vector<1x32xf32> to vector<8x32xf32>
    %161 = arith.addf %159, %160 : vector<8x32xf32>
    %cst_77 = arith.constant 1.000000e+00 : f32
    %162 = vector.broadcast %cst_77 : f32 to vector<1x32xf32>
    %163 = arith.addf %162, %134 : vector<1x32xf32>
    %164 = vector.broadcast %163 : vector<1x32xf32> to vector<8x32xf32>
    %165 = arith.mulf %161, %164 : vector<8x32xf32>
    %166 = vector.broadcast %135 : vector<1x32xf32> to vector<8x32xf32>
    %167 = arith.addf %165, %166 : vector<8x32xf32>
    %cst_78 = arith.constant 0.000000e+00 : f32
    %168 = vector.broadcast %cst_78 : f32 to vector<8x32xf32>
    %169 = arith.subf %168, %167 : vector<8x32xf32>
    %170 = math.exp %169 : vector<8x32xf32>
    %cst_79 = arith.constant 1.000000e+00 : f32
    %171 = vector.broadcast %cst_79 : f32 to vector<8x32xf32>
    %172 = arith.addf %171, %170 : vector<8x32xf32>
    %173 = arith.divf %167, %172 : vector<8x32xf32>
    %c0_80 = arith.constant 0 : index
    %c0_81 = arith.constant 0 : index
    %c0_82 = arith.constant 0 : index
    %174 = vector.load %arg22[%c0_80, %c0_81, %c0_82] : memref<3x32x32xf32, #tpu.memory_space<vmem>>, vector<1x32x32xf32>
    %175 = vector.shape_cast %174 : vector<1x32x32xf32> to vector<32x32xf32>
    %c0_83 = arith.constant 0 : index
    %c0_84 = arith.constant 0 : index
    %c0_85 = arith.constant 0 : index
    %176 = vector.load %arg23[%c0_83, %c0_84, %c0_85] : memref<3x1x32xf32, #tpu.memory_space<vmem>>, vector<1x1x32xf32>
    %177 = vector.shape_cast %176 : vector<1x1x32xf32> to vector<1x32xf32>
    %178 = arith.truncf %173 : vector<8x32xf32> to vector<8x32xbf16>
    %179 = arith.truncf %175 : vector<32x32xf32> to vector<32x32xbf16>
    %cst_86 = arith.constant dense<0.000000e+00> : vector<8x32xf32>
    %180 = tpu.matmul %178, %179, %cst_86 {dimension_numbers = #tpu.dot_dimension_numbers<[1], [0], [0], [1], [0, 0, 1, 1], [], []>} : vector<8x32xbf16>, vector<32x32xbf16>, vector<8x32xf32> -> vector<8x32xf32>
    %181 = vector.broadcast %177 : vector<1x32xf32> to vector<8x32xf32>
    %182 = arith.addf %180, %181 : vector<8x32xf32>
    %183 = arith.addf %182, %9 : vector<8x32xf32>
    %c0_87 = arith.constant 0 : index
    %c0_88 = arith.constant 0 : index
    %c0_89 = arith.constant 0 : index
    %184 = vector.load %arg24[%c0_87, %c0_88, %c0_89] : memref<3x1x32xf32, #tpu.memory_space<vmem>>, vector<1x1x32xf32>
    %185 = vector.shape_cast %184 : vector<1x1x32xf32> to vector<1x32xf32>
    %c0_90 = arith.constant 0 : index
    %c0_91 = arith.constant 0 : index
    %c0_92 = arith.constant 0 : index
    %186 = vector.load %arg25[%c0_90, %c0_91, %c0_92] : memref<3x1x32xf32, #tpu.memory_space<vmem>>, vector<1x1x32xf32>
    %187 = vector.shape_cast %186 : vector<1x1x32xf32> to vector<1x32xf32>
    %cst_93 = arith.constant dense<0.000000e+00> : vector<8xf32>
    %188 = vector.multi_reduction <add>, %183, %cst_93 [1] : vector<8x32xf32> to vector<8xf32>
    %189 = vector.shape_cast %188 : vector<8xf32> to vector<8x1xf32>
    %cst_94 = arith.constant 3.200000e+01 : f32
    %190 = vector.broadcast %cst_94 : f32 to vector<8x1xf32>
    %191 = arith.divf %189, %190 : vector<8x1xf32>
    %192 = vector.broadcast %191 : vector<8x1xf32> to vector<8x32xf32>
    %193 = arith.subf %183, %192 : vector<8x32xf32>
    %194 = arith.mulf %193, %193 : vector<8x32xf32>
    %cst_95 = arith.constant dense<0.000000e+00> : vector<8xf32>
    %195 = vector.multi_reduction <add>, %194, %cst_95 [1] : vector<8x32xf32> to vector<8xf32>
    %196 = vector.shape_cast %195 : vector<8xf32> to vector<8x1xf32>
    %cst_96 = arith.constant 3.200000e+01 : f32
    %197 = vector.broadcast %cst_96 : f32 to vector<8x1xf32>
    %198 = arith.divf %196, %197 : vector<8x1xf32>
    %199 = vector.broadcast %191 : vector<8x1xf32> to vector<8x32xf32>
    %200 = arith.subf %183, %199 : vector<8x32xf32>
    %cst_97 = arith.constant 9.99999997E-7 : f32
    %201 = vector.broadcast %cst_97 : f32 to vector<8x1xf32>
    %202 = arith.addf %198, %201 : vector<8x1xf32>
    %203 = math.rsqrt %202 : vector<8x1xf32>
    %204 = vector.broadcast %203 : vector<8x1xf32> to vector<8x32xf32>
    %205 = arith.mulf %200, %204 : vector<8x32xf32>
    %206 = vector.broadcast %185 : vector<1x32xf32> to vector<8x32xf32>
    %207 = arith.mulf %205, %206 : vector<8x32xf32>
    %208 = vector.broadcast %187 : vector<1x32xf32> to vector<8x32xf32>
    %209 = arith.addf %207, %208 : vector<8x32xf32>
    %c0_98 = arith.constant 0 : index
    %c0_99 = arith.constant 0 : index
    %210 = vector.load %arg8[%c0_98, %c0_99] : memref<32x32xf32, #tpu.memory_space<vmem>>, vector<32x32xf32>
    %c0_100 = arith.constant 0 : index
    %c0_101 = arith.constant 0 : index
    %211 = vector.load %arg9[%c0_100, %c0_101] : memref<1x32xf32, #tpu.memory_space<vmem>>, vector<1x32xf32>
    %212 = arith.truncf %209 : vector<8x32xf32> to vector<8x32xbf16>
    %213 = arith.truncf %210 : vector<32x32xf32> to vector<32x32xbf16>
    %cst_102 = arith.constant dense<0.000000e+00> : vector<8x32xf32>
    %214 = tpu.matmul %212, %213, %cst_102 {dimension_numbers = #tpu.dot_dimension_numbers<[1], [0], [0], [1], [0, 0, 1, 1], [], []>} : vector<8x32xbf16>, vector<32x32xbf16>, vector<8x32xf32> -> vector<8x32xf32>
    %215 = vector.broadcast %211 : vector<1x32xf32> to vector<8x32xf32>
    %216 = arith.addf %214, %215 : vector<8x32xf32>
    %c0_103 = arith.constant 0 : index
    %c0_104 = arith.constant 0 : index
    %217 = vector.load %arg10[%c0_103, %c0_104] : memref<32x64xf32, #tpu.memory_space<vmem>>, vector<32x64xf32>
    %c0_105 = arith.constant 0 : index
    %c0_106 = arith.constant 0 : index
    %218 = vector.load %arg11[%c0_105, %c0_106] : memref<1x64xf32, #tpu.memory_space<vmem>>, vector<1x64xf32>
    %219 = arith.truncf %11 : vector<16x32xf32> to vector<16x32xbf16>
    %220 = arith.truncf %217 : vector<32x64xf32> to vector<32x64xbf16>
    %cst_107 = arith.constant dense<0.000000e+00> : vector<16x64xf32>
    %221 = tpu.matmul %219, %220, %cst_107 {dimension_numbers = #tpu.dot_dimension_numbers<[1], [0], [0], [1], [0, 0, 1, 1], [], []>} : vector<16x32xbf16>, vector<32x64xbf16>, vector<16x64xf32> -> vector<16x64xf32>
    %222 = vector.broadcast %218 : vector<1x64xf32> to vector<16x64xf32>
    %223 = arith.addf %221, %222 : vector<16x64xf32>
    %224 = vector.extract_strided_slice %223 {offsets = [0, 0], sizes = [16, 32], strides = [1, 1]} : vector<16x64xf32> to vector<16x32xf32>
    %225 = vector.extract_strided_slice %223 {offsets = [0, 32], sizes = [16, 32], strides = [1, 1]} : vector<16x64xf32> to vector<16x32xf32>
    %226 = vector.extract_strided_slice %216 {offsets = [0, 0], sizes = [8, 8], strides = [1, 1]} : vector<8x32xf32> to vector<8x8xf32>
    %227 = arith.truncf %226 : vector<8x8xf32> to vector<8x8xbf16>
    %228 = vector.extract_strided_slice %224 {offsets = [0, 0], sizes = [16, 8], strides = [1, 1]} : vector<16x32xf32> to vector<16x8xf32>
    %229 = arith.truncf %228 : vector<16x8xf32> to vector<16x8xbf16>
    %230 = vector.extract_strided_slice %225 {offsets = [0, 0], sizes = [16, 8], strides = [1, 1]} : vector<16x32xf32> to vector<16x8xf32>
    %231 = arith.truncf %230 : vector<16x8xf32> to vector<16x8xbf16>
    %cst_108 = arith.constant dense<0.000000e+00> : vector<8x16xf32>
    %232 = tpu.matmul %227, %229, %cst_108 {dimension_numbers = #tpu.dot_dimension_numbers<[1], [1], [0], [0], [0, 0, 1, 0], [], []>} : vector<8x8xbf16>, vector<16x8xbf16>, vector<8x16xf32> -> vector<8x16xf32>
    %cst_109 = arith.constant 0.353553385 : f32
    %233 = vector.broadcast %cst_109 : f32 to vector<8x16xf32>
    %234 = arith.mulf %232, %233 : vector<8x16xf32>
    %cst_110 = arith.constant dense<0xFF800000> : vector<8xf32>
    %235 = vector.multi_reduction <maximumf>, %234, %cst_110 [1] : vector<8x16xf32> to vector<8xf32>
    %236 = vector.shape_cast %235 : vector<8xf32> to vector<8x1xf32>
    %237 = vector.broadcast %236 : vector<8x1xf32> to vector<8x16xf32>
    %238 = arith.subf %234, %237 : vector<8x16xf32>
    %239 = math.exp %238 : vector<8x16xf32>
    %cst_111 = arith.constant dense<0.000000e+00> : vector<8xf32>
    %240 = vector.multi_reduction <add>, %239, %cst_111 [1] : vector<8x16xf32> to vector<8xf32>
    %241 = vector.shape_cast %240 : vector<8xf32> to vector<8x1xf32>
    %242 = vector.broadcast %241 : vector<8x1xf32> to vector<8x16xf32>
    %243 = arith.divf %239, %242 : vector<8x16xf32>
    %c0_112 = arith.constant 0 : index
    %c0_113 = arith.constant 0 : index
    %c0_114 = arith.constant 0 : index
    %c0_115 = arith.constant 0 : index
    %244 = vector.load %arg28[%c0_112, %c0_113, %c0_114, %c0_115] : memref<1x4x8x16xf32, #tpu.memory_space<vmem>>, vector<1x1x8x16xf32>
    %245 = vector.shape_cast %244 : vector<1x1x8x16xf32> to vector<8x16xf32>
    %246 = vector.shape_cast %243 : vector<8x16xf32> to vector<1x1x8x16xf32>
    tpu.vector_store %arg28[%c0_112, %c0_113, %c0_114, %c0_115], %246 {strides = array<i32>} : memref<1x4x8x16xf32, #tpu.memory_space<vmem>>, vector<1x1x8x16xf32>,
    %247 = arith.truncf %243 : vector<8x16xf32> to vector<8x16xbf16>
    %cst_116 = arith.constant dense<0.000000e+00> : vector<8x8xf32>
    %248 = tpu.matmul %247, %231, %cst_116 {dimension_numbers = #tpu.dot_dimension_numbers<[1], [0], [0], [1], [0, 0, 1, 1], [], []>} : vector<8x16xbf16>, vector<16x8xbf16>, vector<8x8xf32> -> vector<8x8xf32>
    %c0_117 = arith.constant 0 : index
    %c0_118 = arith.constant 0 : index
    %249 = vector.load %arg29[%c0_117, %c0_118] : memref<8x32xf32, #tpu.memory_space<vmem>>, vector<8x8xf32>
    tpu.vector_store %arg29[%c0_117, %c0_118], %248 {strides = array<i32>} : memref<8x32xf32, #tpu.memory_space<vmem>>, vector<8x8xf32>,
    %250 = vector.extract_strided_slice %216 {offsets = [0, 8], sizes = [8, 8], strides = [1, 1]} : vector<8x32xf32> to vector<8x8xf32>
    %251 = arith.truncf %250 : vector<8x8xf32> to vector<8x8xbf16>
    %252 = vector.extract_strided_slice %224 {offsets = [0, 8], sizes = [16, 8], strides = [1, 1]} : vector<16x32xf32> to vector<16x8xf32>
    %253 = arith.truncf %252 : vector<16x8xf32> to vector<16x8xbf16>
    %254 = vector.extract_strided_slice %225 {offsets = [0, 8], sizes = [16, 8], strides = [1, 1]} : vector<16x32xf32> to vector<16x8xf32>
    %255 = arith.truncf %254 : vector<16x8xf32> to vector<16x8xbf16>
    %cst_119 = arith.constant dense<0.000000e+00> : vector<8x16xf32>
    %256 = tpu.matmul %251, %253, %cst_119 {dimension_numbers = #tpu.dot_dimension_numbers<[1], [1], [0], [0], [0, 0, 1, 0], [], []>} : vector<8x8xbf16>, vector<16x8xbf16>, vector<8x16xf32> -> vector<8x16xf32>
    %cst_120 = arith.constant 0.353553385 : f32
    %257 = vector.broadcast %cst_120 : f32 to vector<8x16xf32>
    %258 = arith.mulf %256, %257 : vector<8x16xf32>
    %cst_121 = arith.constant dense<0xFF800000> : vector<8xf32>
    %259 = vector.multi_reduction <maximumf>, %258, %cst_121 [1] : vector<8x16xf32> to vector<8xf32>
    %260 = vector.shape_cast %259 : vector<8xf32> to vector<8x1xf32>
    %261 = vector.broadcast %260 : vector<8x1xf32> to vector<8x16xf32>
    %262 = arith.subf %258, %261 : vector<8x16xf32>
    %263 = math.exp %262 : vector<8x16xf32>
    %cst_122 = arith.constant dense<0.000000e+00> : vector<8xf32>
    %264 = vector.multi_reduction <add>, %263, %cst_122 [1] : vector<8x16xf32> to vector<8xf32>
    %265 = vector.shape_cast %264 : vector<8xf32> to vector<8x1xf32>
    %266 = vector.broadcast %265 : vector<8x1xf32> to vector<8x16xf32>
    %267 = arith.divf %263, %266 : vector<8x16xf32>
    %c0_123 = arith.constant 0 : index
    %c1_124 = arith.constant 1 : index
    %c0_125 = arith.constant 0 : index
    %c0_126 = arith.constant 0 : index
    %268 = vector.load %arg28[%c0_123, %c1_124, %c0_125, %c0_126] : memref<1x4x8x16xf32, #tpu.memory_space<vmem>>, vector<1x1x8x16xf32>
    %269 = vector.shape_cast %268 : vector<1x1x8x16xf32> to vector<8x16xf32>
    %270 = vector.shape_cast %267 : vector<8x16xf32> to vector<1x1x8x16xf32>
    tpu.vector_store %arg28[%c0_123, %c1_124, %c0_125, %c0_126], %270 {strides = array<i32>} : memref<1x4x8x16xf32, #tpu.memory_space<vmem>>, vector<1x1x8x16xf32>,
    %271 = arith.truncf %267 : vector<8x16xf32> to vector<8x16xbf16>
    %cst_127 = arith.constant dense<0.000000e+00> : vector<8x8xf32>
    %272 = tpu.matmul %271, %255, %cst_127 {dimension_numbers = #tpu.dot_dimension_numbers<[1], [0], [0], [1], [0, 0, 1, 1], [], []>} : vector<8x16xbf16>, vector<16x8xbf16>, vector<8x8xf32> -> vector<8x8xf32>
    %c0_128 = arith.constant 0 : index
    %c8_129 = arith.constant 8 : index
    %273 = vector.load %arg29[%c0_128, %c8_129] : memref<8x32xf32, #tpu.memory_space<vmem>>, vector<8x8xf32>
    tpu.vector_store %arg29[%c0_128, %c8_129], %272 {strides = array<i32>} : memref<8x32xf32, #tpu.memory_space<vmem>>, vector<8x8xf32>,
    %274 = vector.extract_strided_slice %216 {offsets = [0, 16], sizes = [8, 8], strides = [1, 1]} : vector<8x32xf32> to vector<8x8xf32>
    %275 = arith.truncf %274 : vector<8x8xf32> to vector<8x8xbf16>
    %276 = vector.extract_strided_slice %224 {offsets = [0, 16], sizes = [16, 8], strides = [1, 1]} : vector<16x32xf32> to vector<16x8xf32>
    %277 = arith.truncf %276 : vector<16x8xf32> to vector<16x8xbf16>
    %278 = vector.extract_strided_slice %225 {offsets = [0, 16], sizes = [16, 8], strides = [1, 1]} : vector<16x32xf32> to vector<16x8xf32>
    %279 = arith.truncf %278 : vector<16x8xf32> to vector<16x8xbf16>
    %cst_130 = arith.constant dense<0.000000e+00> : vector<8x16xf32>
    %280 = tpu.matmul %275, %277, %cst_130 {dimension_numbers = #tpu.dot_dimension_numbers<[1], [1], [0], [0], [0, 0, 1, 0], [], []>} : vector<8x8xbf16>, vector<16x8xbf16>, vector<8x16xf32> -> vector<8x16xf32>
    %cst_131 = arith.constant 0.353553385 : f32
    %281 = vector.broadcast %cst_131 : f32 to vector<8x16xf32>
    %282 = arith.mulf %280, %281 : vector<8x16xf32>
    %cst_132 = arith.constant dense<0xFF800000> : vector<8xf32>
    %283 = vector.multi_reduction <maximumf>, %282, %cst_132 [1] : vector<8x16xf32> to vector<8xf32>
    %284 = vector.shape_cast %283 : vector<8xf32> to vector<8x1xf32>
    %285 = vector.broadcast %284 : vector<8x1xf32> to vector<8x16xf32>
    %286 = arith.subf %282, %285 : vector<8x16xf32>
    %287 = math.exp %286 : vector<8x16xf32>
    %cst_133 = arith.constant dense<0.000000e+00> : vector<8xf32>
    %288 = vector.multi_reduction <add>, %287, %cst_133 [1] : vector<8x16xf32> to vector<8xf32>
    %289 = vector.shape_cast %288 : vector<8xf32> to vector<8x1xf32>
    %290 = vector.broadcast %289 : vector<8x1xf32> to vector<8x16xf32>
    %291 = arith.divf %287, %290 : vector<8x16xf32>
    %c0_134 = arith.constant 0 : index
    %c2_135 = arith.constant 2 : index
    %c0_136 = arith.constant 0 : index
    %c0_137 = arith.constant 0 : index
    %292 = vector.load %arg28[%c0_134, %c2_135, %c0_136, %c0_137] : memref<1x4x8x16xf32, #tpu.memory_space<vmem>>, vector<1x1x8x16xf32>
    %293 = vector.shape_cast %292 : vector<1x1x8x16xf32> to vector<8x16xf32>
    %294 = vector.shape_cast %291 : vector<8x16xf32> to vector<1x1x8x16xf32>
    tpu.vector_store %arg28[%c0_134, %c2_135, %c0_136, %c0_137], %294 {strides = array<i32>} : memref<1x4x8x16xf32, #tpu.memory_space<vmem>>, vector<1x1x8x16xf32>,
    %295 = arith.truncf %291 : vector<8x16xf32> to vector<8x16xbf16>
    %cst_138 = arith.constant dense<0.000000e+00> : vector<8x8xf32>
    %296 = tpu.matmul %295, %279, %cst_138 {dimension_numbers = #tpu.dot_dimension_numbers<[1], [0], [0], [1], [0, 0, 1, 1], [], []>} : vector<8x16xbf16>, vector<16x8xbf16>, vector<8x8xf32> -> vector<8x8xf32>
    %c0_139 = arith.constant 0 : index
    %c16_140 = arith.constant 16 : index
    %297 = vector.load %arg29[%c0_139, %c16_140] : memref<8x32xf32, #tpu.memory_space<vmem>>, vector<8x8xf32>
    tpu.vector_store %arg29[%c0_139, %c16_140], %296 {strides = array<i32>} : memref<8x32xf32, #tpu.memory_space<vmem>>, vector<8x8xf32>,
    %298 = vector.extract_strided_slice %216 {offsets = [0, 24], sizes = [8, 8], strides = [1, 1]} : vector<8x32xf32> to vector<8x8xf32>
    %299 = arith.truncf %298 : vector<8x8xf32> to vector<8x8xbf16>
    %300 = vector.extract_strided_slice %224 {offsets = [0, 24], sizes = [16, 8], strides = [1, 1]} : vector<16x32xf32> to vector<16x8xf32>
    %301 = arith.truncf %300 : vector<16x8xf32> to vector<16x8xbf16>
    %302 = vector.extract_strided_slice %225 {offsets = [0, 24], sizes = [16, 8], strides = [1, 1]} : vector<16x32xf32> to vector<16x8xf32>
    %303 = arith.truncf %302 : vector<16x8xf32> to vector<16x8xbf16>
    %cst_141 = arith.constant dense<0.000000e+00> : vector<8x16xf32>
    %304 = tpu.matmul %299, %301, %cst_141 {dimension_numbers = #tpu.dot_dimension_numbers<[1], [1], [0], [0], [0, 0, 1, 0], [], []>} : vector<8x8xbf16>, vector<16x8xbf16>, vector<8x16xf32> -> vector<8x16xf32>
    %cst_142 = arith.constant 0.353553385 : f32
    %305 = vector.broadcast %cst_142 : f32 to vector<8x16xf32>
    %306 = arith.mulf %304, %305 : vector<8x16xf32>
    %cst_143 = arith.constant dense<0xFF800000> : vector<8xf32>
    %307 = vector.multi_reduction <maximumf>, %306, %cst_143 [1] : vector<8x16xf32> to vector<8xf32>
    %308 = vector.shape_cast %307 : vector<8xf32> to vector<8x1xf32>
    %309 = vector.broadcast %308 : vector<8x1xf32> to vector<8x16xf32>
    %310 = arith.subf %306, %309 : vector<8x16xf32>
    %311 = math.exp %310 : vector<8x16xf32>
    %cst_144 = arith.constant dense<0.000000e+00> : vector<8xf32>
    %312 = vector.multi_reduction <add>, %311, %cst_144 [1] : vector<8x16xf32> to vector<8xf32>
    %313 = vector.shape_cast %312 : vector<8xf32> to vector<8x1xf32>
    %314 = vector.broadcast %313 : vector<8x1xf32> to vector<8x16xf32>
    %315 = arith.divf %311, %314 : vector<8x16xf32>
    %c0_145 = arith.constant 0 : index
    %c3_146 = arith.constant 3 : index
    %c0_147 = arith.constant 0 : index
    %c0_148 = arith.constant 0 : index
    %316 = vector.load %arg28[%c0_145, %c3_146, %c0_147, %c0_148] : memref<1x4x8x16xf32, #tpu.memory_space<vmem>>, vector<1x1x8x16xf32>
    %317 = vector.shape_cast %316 : vector<1x1x8x16xf32> to vector<8x16xf32>
    %318 = vector.shape_cast %315 : vector<8x16xf32> to vector<1x1x8x16xf32>
    tpu.vector_store %arg28[%c0_145, %c3_146, %c0_147, %c0_148], %318 {strides = array<i32>} : memref<1x4x8x16xf32, #tpu.memory_space<vmem>>, vector<1x1x8x16xf32>,
    %319 = arith.truncf %315 : vector<8x16xf32> to vector<8x16xbf16>
    %cst_149 = arith.constant dense<0.000000e+00> : vector<8x8xf32>
    %320 = tpu.matmul %319, %303, %cst_149 {dimension_numbers = #tpu.dot_dimension_numbers<[1], [0], [0], [1], [0, 0, 1, 1], [], []>} : vector<8x16xbf16>, vector<16x8xbf16>, vector<8x8xf32> -> vector<8x8xf32>
    %c0_150 = arith.constant 0 : index
    %c24_151 = arith.constant 24 : index
    %321 = vector.load %arg29[%c0_150, %c24_151] : memref<8x32xf32, #tpu.memory_space<vmem>>, vector<8x8xf32>
    tpu.vector_store %arg29[%c0_150, %c24_151], %320 {strides = array<i32>} : memref<8x32xf32, #tpu.memory_space<vmem>>, vector<8x8xf32>,
    %c0_152 = arith.constant 0 : index
    %c0_153 = arith.constant 0 : index
    %322 = vector.load %arg29[%c0_152, %c0_153] : memref<8x32xf32, #tpu.memory_space<vmem>>, vector<8x32xf32>
    %c0_154 = arith.constant 0 : index
    %c0_155 = arith.constant 0 : index
    %323 = vector.load %arg12[%c0_154, %c0_155] : memref<32x32xf32, #tpu.memory_space<vmem>>, vector<32x32xf32>
    %c0_156 = arith.constant 0 : index
    %c0_157 = arith.constant 0 : index
    %324 = vector.load %arg13[%c0_156, %c0_157] : memref<1x32xf32, #tpu.memory_space<vmem>>, vector<1x32xf32>
    %325 = arith.truncf %322 : vector<8x32xf32> to vector<8x32xbf16>
    %326 = arith.truncf %323 : vector<32x32xf32> to vector<32x32xbf16>
    %cst_158 = arith.constant dense<0.000000e+00> : vector<8x32xf32>
    %327 = tpu.matmul %325, %326, %cst_158 {dimension_numbers = #tpu.dot_dimension_numbers<[1], [0], [0], [1], [0, 0, 1, 1], [], []>} : vector<8x32xbf16>, vector<32x32xbf16>, vector<8x32xf32> -> vector<8x32xf32>
    %328 = vector.broadcast %324 : vector<1x32xf32> to vector<8x32xf32>
    %329 = arith.addf %327, %328 : vector<8x32xf32>
    %c1_159 = arith.constant 1 : index
    %c0_160 = arith.constant 0 : index
    %c0_161 = arith.constant 0 : index
    %330 = vector.load %arg18[%c1_159, %c0_160, %c0_161] : memref<3x32x64xf32, #tpu.memory_space<vmem>>, vector<1x32x64xf32>
    %331 = vector.shape_cast %330 : vector<1x32x64xf32> to vector<32x64xf32>
    %c1_162 = arith.constant 1 : index
    %c0_163 = arith.constant 0 : index
    %c0_164 = arith.constant 0 : index
    %332 = vector.load %arg19[%c1_162, %c0_163, %c0_164] : memref<3x1x64xf32, #tpu.memory_space<vmem>>, vector<1x1x64xf32>
    %333 = vector.shape_cast %332 : vector<1x1x64xf32> to vector<1x64xf32>
    %334 = arith.truncf %7 : vector<1x32xf32> to vector<1x32xbf16>
    %335 = arith.truncf %331 : vector<32x64xf32> to vector<32x64xbf16>
    %cst_165 = arith.constant dense<0.000000e+00> : vector<1x64xf32>
    %336 = tpu.matmul %334, %335, %cst_165 {dimension_numbers = #tpu.dot_dimension_numbers<[1], [0], [0], [1], [0, 0, 1, 1], [], []>} : vector<1x32xbf16>, vector<32x64xbf16>, vector<1x64xf32> -> vector<1x64xf32>
    %337 = arith.addf %336, %333 : vector<1x64xf32>
    %338 = vector.extract_strided_slice %337 {offsets = [0, 0], sizes = [1, 32], strides = [1, 1]} : vector<1x64xf32> to vector<1x32xf32>
    %339 = vector.extract_strided_slice %337 {offsets = [0, 32], sizes = [1, 32], strides = [1, 1]} : vector<1x64xf32> to vector<1x32xf32>
    %c1_166 = arith.constant 1 : index
    %c0_167 = arith.constant 0 : index
    %c0_168 = arith.constant 0 : index
    %340 = vector.load %arg20[%c1_166, %c0_167, %c0_168] : memref<3x1x32xf32, #tpu.memory_space<vmem>>, vector<1x1x32xf32>
    %341 = vector.shape_cast %340 : vector<1x1x32xf32> to vector<1x32xf32>
    %c1_169 = arith.constant 1 : index
    %c0_170 = arith.constant 0 : index
    %c0_171 = arith.constant 0 : index
    %342 = vector.load %arg21[%c1_169, %c0_170, %c0_171] : memref<3x1x32xf32, #tpu.memory_space<vmem>>, vector<1x1x32xf32>
    %343 = vector.shape_cast %342 : vector<1x1x32xf32> to vector<1x32xf32>
    %cst_172 = arith.constant dense<0.000000e+00> : vector<8xf32>
    %344 = vector.multi_reduction <add>, %329, %cst_172 [1] : vector<8x32xf32> to vector<8xf32>
    %345 = vector.shape_cast %344 : vector<8xf32> to vector<8x1xf32>
    %cst_173 = arith.constant 3.200000e+01 : f32
    %346 = vector.broadcast %cst_173 : f32 to vector<8x1xf32>
    %347 = arith.divf %345, %346 : vector<8x1xf32>
    %348 = vector.broadcast %347 : vector<8x1xf32> to vector<8x32xf32>
    %349 = arith.subf %329, %348 : vector<8x32xf32>
    %350 = arith.mulf %349, %349 : vector<8x32xf32>
    %cst_174 = arith.constant dense<0.000000e+00> : vector<8xf32>
    %351 = vector.multi_reduction <add>, %350, %cst_174 [1] : vector<8x32xf32> to vector<8xf32>
    %352 = vector.shape_cast %351 : vector<8xf32> to vector<8x1xf32>
    %cst_175 = arith.constant 3.200000e+01 : f32
    %353 = vector.broadcast %cst_175 : f32 to vector<8x1xf32>
    %354 = arith.divf %352, %353 : vector<8x1xf32>
    %355 = vector.broadcast %347 : vector<8x1xf32> to vector<8x32xf32>
    %356 = arith.subf %329, %355 : vector<8x32xf32>
    %cst_176 = arith.constant 9.99999974E-6 : f32
    %357 = vector.broadcast %cst_176 : f32 to vector<8x1xf32>
    %358 = arith.addf %354, %357 : vector<8x1xf32>
    %359 = math.rsqrt %358 : vector<8x1xf32>
    %360 = vector.broadcast %359 : vector<8x1xf32> to vector<8x32xf32>
    %361 = arith.mulf %356, %360 : vector<8x32xf32>
    %362 = vector.broadcast %341 : vector<1x32xf32> to vector<8x32xf32>
    %363 = arith.mulf %361, %362 : vector<8x32xf32>
    %364 = vector.broadcast %343 : vector<1x32xf32> to vector<8x32xf32>
    %365 = arith.addf %363, %364 : vector<8x32xf32>
    %cst_177 = arith.constant 1.000000e+00 : f32
    %366 = vector.broadcast %cst_177 : f32 to vector<1x32xf32>
    %367 = arith.addf %366, %338 : vector<1x32xf32>
    %368 = vector.broadcast %367 : vector<1x32xf32> to vector<8x32xf32>
    %369 = arith.mulf %365, %368 : vector<8x32xf32>
    %370 = vector.broadcast %339 : vector<1x32xf32> to vector<8x32xf32>
    %371 = arith.addf %369, %370 : vector<8x32xf32>
    %cst_178 = arith.constant 0.000000e+00 : f32
    %372 = vector.broadcast %cst_178 : f32 to vector<8x32xf32>
    %373 = arith.subf %372, %371 : vector<8x32xf32>
    %374 = math.exp %373 : vector<8x32xf32>
    %cst_179 = arith.constant 1.000000e+00 : f32
    %375 = vector.broadcast %cst_179 : f32 to vector<8x32xf32>
    %376 = arith.addf %375, %374 : vector<8x32xf32>
    %377 = arith.divf %371, %376 : vector<8x32xf32>
    %c1_180 = arith.constant 1 : index
    %c0_181 = arith.constant 0 : index
    %c0_182 = arith.constant 0 : index
    %378 = vector.load %arg22[%c1_180, %c0_181, %c0_182] : memref<3x32x32xf32, #tpu.memory_space<vmem>>, vector<1x32x32xf32>
    %379 = vector.shape_cast %378 : vector<1x32x32xf32> to vector<32x32xf32>
    %c1_183 = arith.constant 1 : index
    %c0_184 = arith.constant 0 : index
    %c0_185 = arith.constant 0 : index
    %380 = vector.load %arg23[%c1_183, %c0_184, %c0_185] : memref<3x1x32xf32, #tpu.memory_space<vmem>>, vector<1x1x32xf32>
    %381 = vector.shape_cast %380 : vector<1x1x32xf32> to vector<1x32xf32>
    %382 = arith.truncf %377 : vector<8x32xf32> to vector<8x32xbf16>
    %383 = arith.truncf %379 : vector<32x32xf32> to vector<32x32xbf16>
    %cst_186 = arith.constant dense<0.000000e+00> : vector<8x32xf32>
    %384 = tpu.matmul %382, %383, %cst_186 {dimension_numbers = #tpu.dot_dimension_numbers<[1], [0], [0], [1], [0, 0, 1, 1], [], []>} : vector<8x32xbf16>, vector<32x32xbf16>, vector<8x32xf32> -> vector<8x32xf32>
    %385 = vector.broadcast %381 : vector<1x32xf32> to vector<8x32xf32>
    %386 = arith.addf %384, %385 : vector<8x32xf32>
    %387 = arith.addf %386, %209 : vector<8x32xf32>
    %c1_187 = arith.constant 1 : index
    %c0_188 = arith.constant 0 : index
    %c0_189 = arith.constant 0 : index
    %388 = vector.load %arg24[%c1_187, %c0_188, %c0_189] : memref<3x1x32xf32, #tpu.memory_space<vmem>>, vector<1x1x32xf32>
    %389 = vector.shape_cast %388 : vector<1x1x32xf32> to vector<1x32xf32>
    %c1_190 = arith.constant 1 : index
    %c0_191 = arith.constant 0 : index
    %c0_192 = arith.constant 0 : index
    %390 = vector.load %arg25[%c1_190, %c0_191, %c0_192] : memref<3x1x32xf32, #tpu.memory_space<vmem>>, vector<1x1x32xf32>
    %391 = vector.shape_cast %390 : vector<1x1x32xf32> to vector<1x32xf32>
    %cst_193 = arith.constant dense<0.000000e+00> : vector<8xf32>
    %392 = vector.multi_reduction <add>, %387, %cst_193 [1] : vector<8x32xf32> to vector<8xf32>
    %393 = vector.shape_cast %392 : vector<8xf32> to vector<8x1xf32>
    %cst_194 = arith.constant 3.200000e+01 : f32
    %394 = vector.broadcast %cst_194 : f32 to vector<8x1xf32>
    %395 = arith.divf %393, %394 : vector<8x1xf32>
    %396 = vector.broadcast %395 : vector<8x1xf32> to vector<8x32xf32>
    %397 = arith.subf %387, %396 : vector<8x32xf32>
    %398 = arith.mulf %397, %397 : vector<8x32xf32>
    %cst_195 = arith.constant dense<0.000000e+00> : vector<8xf32>
    %399 = vector.multi_reduction <add>, %398, %cst_195 [1] : vector<8x32xf32> to vector<8xf32>
    %400 = vector.shape_cast %399 : vector<8xf32> to vector<8x1xf32>
    %cst_196 = arith.constant 3.200000e+01 : f32
    %401 = vector.broadcast %cst_196 : f32 to vector<8x1xf32>
    %402 = arith.divf %400, %401 : vector<8x1xf32>
    %403 = vector.broadcast %395 : vector<8x1xf32> to vector<8x32xf32>
    %404 = arith.subf %387, %403 : vector<8x32xf32>
    %cst_197 = arith.constant 9.99999997E-7 : f32
    %405 = vector.broadcast %cst_197 : f32 to vector<8x1xf32>
    %406 = arith.addf %402, %405 : vector<8x1xf32>
    %407 = math.rsqrt %406 : vector<8x1xf32>
    %408 = vector.broadcast %407 : vector<8x1xf32> to vector<8x32xf32>
    %409 = arith.mulf %404, %408 : vector<8x32xf32>
    %410 = vector.broadcast %389 : vector<1x32xf32> to vector<8x32xf32>
    %411 = arith.mulf %409, %410 : vector<8x32xf32>
    %412 = vector.broadcast %391 : vector<1x32xf32> to vector<8x32xf32>
    %413 = arith.addf %411, %412 : vector<8x32xf32>
    %c0_198 = arith.constant 0 : index
    %c0_199 = arith.constant 0 : index
    %414 = vector.load %arg14[%c0_198, %c0_199] : memref<32x64xf32, #tpu.memory_space<vmem>>, vector<32x64xf32>
    %c0_200 = arith.constant 0 : index
    %c0_201 = arith.constant 0 : index
    %415 = vector.load %arg15[%c0_200, %c0_201] : memref<1x64xf32, #tpu.memory_space<vmem>>, vector<1x64xf32>
    %416 = arith.truncf %413 : vector<8x32xf32> to vector<8x32xbf16>
    %417 = arith.truncf %414 : vector<32x64xf32> to vector<32x64xbf16>
    %cst_202 = arith.constant dense<0.000000e+00> : vector<8x64xf32>
    %418 = tpu.matmul %416, %417, %cst_202 {dimension_numbers = #tpu.dot_dimension_numbers<[1], [0], [0], [1], [0, 0, 1, 1], [], []>} : vector<8x32xbf16>, vector<32x64xbf16>, vector<8x64xf32> -> vector<8x64xf32>
    %419 = vector.broadcast %415 : vector<1x64xf32> to vector<8x64xf32>
    %420 = arith.addf %418, %419 : vector<8x64xf32>
    %cst_203 = arith.constant 5.000000e-01 : f32
    %421 = vector.broadcast %cst_203 : f32 to vector<8x64xf32>
    %422 = arith.mulf %421, %420 : vector<8x64xf32>
    %cst_204 = arith.constant 0.707106769 : f32
    %423 = vector.broadcast %cst_204 : f32 to vector<8x64xf32>
    %424 = arith.mulf %420, %423 : vector<8x64xf32>
    %425 = math.erf %424 : vector<8x64xf32>
    %cst_205 = arith.constant 1.000000e+00 : f32
    %426 = vector.broadcast %cst_205 : f32 to vector<8x64xf32>
    %427 = arith.addf %426, %425 : vector<8x64xf32>
    %428 = arith.mulf %422, %427 : vector<8x64xf32>
    %c0_206 = arith.constant 0 : index
    %c0_207 = arith.constant 0 : index
    %429 = vector.load %arg16[%c0_206, %c0_207] : memref<64x32xf32, #tpu.memory_space<vmem>>, vector<64x32xf32>
    %c0_208 = arith.constant 0 : index
    %c0_209 = arith.constant 0 : index
    %430 = vector.load %arg17[%c0_208, %c0_209] : memref<1x32xf32, #tpu.memory_space<vmem>>, vector<1x32xf32>
    %431 = arith.truncf %428 : vector<8x64xf32> to vector<8x64xbf16>
    %432 = arith.truncf %429 : vector<64x32xf32> to vector<64x32xbf16>
    %cst_210 = arith.constant dense<0.000000e+00> : vector<8x32xf32>
    %433 = tpu.matmul %431, %432, %cst_210 {dimension_numbers = #tpu.dot_dimension_numbers<[1], [0], [0], [1], [0, 0, 1, 1], [], []>} : vector<8x64xbf16>, vector<64x32xbf16>, vector<8x32xf32> -> vector<8x32xf32>
    %434 = vector.broadcast %430 : vector<1x32xf32> to vector<8x32xf32>
    %435 = arith.addf %433, %434 : vector<8x32xf32>
    %c2_211 = arith.constant 2 : index
    %c0_212 = arith.constant 0 : index
    %c0_213 = arith.constant 0 : index
    %436 = vector.load %arg18[%c2_211, %c0_212, %c0_213] : memref<3x32x64xf32, #tpu.memory_space<vmem>>, vector<1x32x64xf32>
    %437 = vector.shape_cast %436 : vector<1x32x64xf32> to vector<32x64xf32>
    %c2_214 = arith.constant 2 : index
    %c0_215 = arith.constant 0 : index
    %c0_216 = arith.constant 0 : index
    %438 = vector.load %arg19[%c2_214, %c0_215, %c0_216] : memref<3x1x64xf32, #tpu.memory_space<vmem>>, vector<1x1x64xf32>
    %439 = vector.shape_cast %438 : vector<1x1x64xf32> to vector<1x64xf32>
    %440 = arith.truncf %7 : vector<1x32xf32> to vector<1x32xbf16>
    %441 = arith.truncf %437 : vector<32x64xf32> to vector<32x64xbf16>
    %cst_217 = arith.constant dense<0.000000e+00> : vector<1x64xf32>
    %442 = tpu.matmul %440, %441, %cst_217 {dimension_numbers = #tpu.dot_dimension_numbers<[1], [0], [0], [1], [0, 0, 1, 1], [], []>} : vector<1x32xbf16>, vector<32x64xbf16>, vector<1x64xf32> -> vector<1x64xf32>
    %443 = arith.addf %442, %439 : vector<1x64xf32>
    %444 = vector.extract_strided_slice %443 {offsets = [0, 0], sizes = [1, 32], strides = [1, 1]} : vector<1x64xf32> to vector<1x32xf32>
    %445 = vector.extract_strided_slice %443 {offsets = [0, 32], sizes = [1, 32], strides = [1, 1]} : vector<1x64xf32> to vector<1x32xf32>
    %c2_218 = arith.constant 2 : index
    %c0_219 = arith.constant 0 : index
    %c0_220 = arith.constant 0 : index
    %446 = vector.load %arg20[%c2_218, %c0_219, %c0_220] : memref<3x1x32xf32, #tpu.memory_space<vmem>>, vector<1x1x32xf32>
    %447 = vector.shape_cast %446 : vector<1x1x32xf32> to vector<1x32xf32>
    %c2_221 = arith.constant 2 : index
    %c0_222 = arith.constant 0 : index
    %c0_223 = arith.constant 0 : index
    %448 = vector.load %arg21[%c2_221, %c0_222, %c0_223] : memref<3x1x32xf32, #tpu.memory_space<vmem>>, vector<1x1x32xf32>
    %449 = vector.shape_cast %448 : vector<1x1x32xf32> to vector<1x32xf32>
    %cst_224 = arith.constant dense<0.000000e+00> : vector<8xf32>
    %450 = vector.multi_reduction <add>, %435, %cst_224 [1] : vector<8x32xf32> to vector<8xf32>
    %451 = vector.shape_cast %450 : vector<8xf32> to vector<8x1xf32>
    %cst_225 = arith.constant 3.200000e+01 : f32
    %452 = vector.broadcast %cst_225 : f32 to vector<8x1xf32>
    %453 = arith.divf %451, %452 : vector<8x1xf32>
    %454 = vector.broadcast %453 : vector<8x1xf32> to vector<8x32xf32>
    %455 = arith.subf %435, %454 : vector<8x32xf32>
    %456 = arith.mulf %455, %455 : vector<8x32xf32>
    %cst_226 = arith.constant dense<0.000000e+00> : vector<8xf32>
    %457 = vector.multi_reduction <add>, %456, %cst_226 [1] : vector<8x32xf32> to vector<8xf32>
    %458 = vector.shape_cast %457 : vector<8xf32> to vector<8x1xf32>
    %cst_227 = arith.constant 3.200000e+01 : f32
    %459 = vector.broadcast %cst_227 : f32 to vector<8x1xf32>
    %460 = arith.divf %458, %459 : vector<8x1xf32>
    %461 = vector.broadcast %453 : vector<8x1xf32> to vector<8x32xf32>
    %462 = arith.subf %435, %461 : vector<8x32xf32>
    %cst_228 = arith.constant 9.99999974E-6 : f32
    %463 = vector.broadcast %cst_228 : f32 to vector<8x1xf32>
    %464 = arith.addf %460, %463 : vector<8x1xf32>
    %465 = math.rsqrt %464 : vector<8x1xf32>
    %466 = vector.broadcast %465 : vector<8x1xf32> to vector<8x32xf32>
    %467 = arith.mulf %462, %466 : vector<8x32xf32>
    %468 = vector.broadcast %447 : vector<1x32xf32> to vector<8x32xf32>
    %469 = arith.mulf %467, %468 : vector<8x32xf32>
    %470 = vector.broadcast %449 : vector<1x32xf32> to vector<8x32xf32>
    %471 = arith.addf %469, %470 : vector<8x32xf32>
    %cst_229 = arith.constant 1.000000e+00 : f32
    %472 = vector.broadcast %cst_229 : f32 to vector<1x32xf32>
    %473 = arith.addf %472, %444 : vector<1x32xf32>
    %474 = vector.broadcast %473 : vector<1x32xf32> to vector<8x32xf32>
    %475 = arith.mulf %471, %474 : vector<8x32xf32>
    %476 = vector.broadcast %445 : vector<1x32xf32> to vector<8x32xf32>
    %477 = arith.addf %475, %476 : vector<8x32xf32>
    %cst_230 = arith.constant 0.000000e+00 : f32
    %478 = vector.broadcast %cst_230 : f32 to vector<8x32xf32>
    %479 = arith.subf %478, %477 : vector<8x32xf32>
    %480 = math.exp %479 : vector<8x32xf32>
    %cst_231 = arith.constant 1.000000e+00 : f32
    %481 = vector.broadcast %cst_231 : f32 to vector<8x32xf32>
    %482 = arith.addf %481, %480 : vector<8x32xf32>
    %483 = arith.divf %477, %482 : vector<8x32xf32>
    %c2_232 = arith.constant 2 : index
    %c0_233 = arith.constant 0 : index
    %c0_234 = arith.constant 0 : index
    %484 = vector.load %arg22[%c2_232, %c0_233, %c0_234] : memref<3x32x32xf32, #tpu.memory_space<vmem>>, vector<1x32x32xf32>
    %485 = vector.shape_cast %484 : vector<1x32x32xf32> to vector<32x32xf32>
    %c2_235 = arith.constant 2 : index
    %c0_236 = arith.constant 0 : index
    %c0_237 = arith.constant 0 : index
    %486 = vector.load %arg23[%c2_235, %c0_236, %c0_237] : memref<3x1x32xf32, #tpu.memory_space<vmem>>, vector<1x1x32xf32>
    %487 = vector.shape_cast %486 : vector<1x1x32xf32> to vector<1x32xf32>
    %488 = arith.truncf %483 : vector<8x32xf32> to vector<8x32xbf16>
    %489 = arith.truncf %485 : vector<32x32xf32> to vector<32x32xbf16>
    %cst_238 = arith.constant dense<0.000000e+00> : vector<8x32xf32>
    %490 = tpu.matmul %488, %489, %cst_238 {dimension_numbers = #tpu.dot_dimension_numbers<[1], [0], [0], [1], [0, 0, 1, 1], [], []>} : vector<8x32xbf16>, vector<32x32xbf16>, vector<8x32xf32> -> vector<8x32xf32>
    %491 = vector.broadcast %487 : vector<1x32xf32> to vector<8x32xf32>
    %492 = arith.addf %490, %491 : vector<8x32xf32>
    %493 = arith.addf %492, %413 : vector<8x32xf32>
    %c2_239 = arith.constant 2 : index
    %c0_240 = arith.constant 0 : index
    %c0_241 = arith.constant 0 : index
    %494 = vector.load %arg24[%c2_239, %c0_240, %c0_241] : memref<3x1x32xf32, #tpu.memory_space<vmem>>, vector<1x1x32xf32>
    %495 = vector.shape_cast %494 : vector<1x1x32xf32> to vector<1x32xf32>
    %c2_242 = arith.constant 2 : index
    %c0_243 = arith.constant 0 : index
    %c0_244 = arith.constant 0 : index
    %496 = vector.load %arg25[%c2_242, %c0_243, %c0_244] : memref<3x1x32xf32, #tpu.memory_space<vmem>>, vector<1x1x32xf32>
    %497 = vector.shape_cast %496 : vector<1x1x32xf32> to vector<1x32xf32>
    %cst_245 = arith.constant dense<0.000000e+00> : vector<8xf32>
    %498 = vector.multi_reduction <add>, %493, %cst_245 [1] : vector<8x32xf32> to vector<8xf32>
    %499 = vector.shape_cast %498 : vector<8xf32> to vector<8x1xf32>
    %cst_246 = arith.constant 3.200000e+01 : f32
    %500 = vector.broadcast %cst_246 : f32 to vector<8x1xf32>
    %501 = arith.divf %499, %500 : vector<8x1xf32>
    %502 = vector.broadcast %501 : vector<8x1xf32> to vector<8x32xf32>
    %503 = arith.subf %493, %502 : vector<8x32xf32>
    %504 = arith.mulf %503, %503 : vector<8x32xf32>
    %cst_247 = arith.constant dense<0.000000e+00> : vector<8xf32>
    %505 = vector.multi_reduction <add>, %504, %cst_247 [1] : vector<8x32xf32> to vector<8xf32>
    %506 = vector.shape_cast %505 : vector<8xf32> to vector<8x1xf32>
    %cst_248 = arith.constant 3.200000e+01 : f32
    %507 = vector.broadcast %cst_248 : f32 to vector<8x1xf32>
    %508 = arith.divf %506, %507 : vector<8x1xf32>
    %509 = vector.broadcast %501 : vector<8x1xf32> to vector<8x32xf32>
    %510 = arith.subf %493, %509 : vector<8x32xf32>
    %cst_249 = arith.constant 9.99999997E-7 : f32
    %511 = vector.broadcast %cst_249 : f32 to vector<8x1xf32>
    %512 = arith.addf %508, %511 : vector<8x1xf32>
    %513 = math.rsqrt %512 : vector<8x1xf32>
    %514 = vector.broadcast %513 : vector<8x1xf32> to vector<8x32xf32>
    %515 = arith.mulf %510, %514 : vector<8x32xf32>
    %516 = vector.broadcast %495 : vector<1x32xf32> to vector<8x32xf32>
    %517 = arith.mulf %515, %516 : vector<8x32xf32>
    %518 = vector.broadcast %497 : vector<1x32xf32> to vector<8x32xf32>
    %519 = arith.addf %517, %518 : vector<8x32xf32>
    %c0_250 = arith.constant 0 : index
    %c0_251 = arith.constant 0 : index
    %c0_252 = arith.constant 0 : index
    %520 = vector.load %arg26[%c0_250, %c0_251, %c0_252] : memref<1x8x32xf32, #tpu.memory_space<vmem>>, vector<1x8x32xf32>
    %521 = vector.shape_cast %520 : vector<1x8x32xf32> to vector<8x32xf32>
    %522 = vector.shape_cast %519 : vector<8x32xf32> to vector<1x8x32xf32>
    tpu.vector_store %arg26[%c0_250, %c0_251, %c0_252], %522 {strides = array<i32>} : memref<1x8x32xf32, #tpu.memory_space<vmem>>, vector<1x8x32xf32>,
    return
  }
  func.func @transform_0(%arg0: i32) -> (i32, i32, i32) {
    %c0_i32 = arith.constant 0 : i32
    %c0_i32_0 = arith.constant 0 : i32
    %c0_i32_1 = arith.constant 0 : i32
    return %arg0, %c0_i32, %c0_i32_0 : i32, i32, i32
  }
  func.func @transform_1(%arg0: i32) -> (i32, i32, i32) {
    %c0_i32 = arith.constant 0 : i32
    %c0_i32_0 = arith.constant 0 : i32
    %c0_i32_1 = arith.constant 0 : i32
    return %arg0, %c0_i32, %c0_i32_0 : i32, i32, i32
  }
  func.func @transform_2(%arg0: i32) -> (i32, i32, i32) {
    %c0_i32 = arith.constant 0 : i32
    %c0_i32_0 = arith.constant 0 : i32
    %c0_i32_1 = arith.constant 0 : i32
    return %arg0, %c0_i32, %c0_i32_0 : i32, i32, i32
  }
  func.func @transform_3(%arg0: i32) -> (i32, i32) {
    %c0_i32 = arith.constant 0 : i32
    %c0_i32_0 = arith.constant 0 : i32
    %c0_i32_1 = arith.constant 0 : i32
    return %c0_i32, %c0_i32_0 : i32, i32
  }
  func.func @transform_4(%arg0: i32) -> (i32, i32) {
    %c0_i32 = arith.constant 0 : i32
    %c0_i32_0 = arith.constant 0 : i32
    %c0_i32_1 = arith.constant 0 : i32
    return %c0_i32, %c0_i32_0 : i32, i32
  }
  func.func @transform_5(%arg0: i32) -> (i32, i32) {
    %c0_i32 = arith.constant 0 : i32
    %c0_i32_0 = arith.constant 0 : i32
    %c0_i32_1 = arith.constant 0 : i32
    return %c0_i32, %c0_i32_0 : i32, i32
  }
  func.func @transform_6(%arg0: i32) -> (i32, i32) {
    %c0_i32 = arith.constant 0 : i32
    %c0_i32_0 = arith.constant 0 : i32
    %c0_i32_1 = arith.constant 0 : i32
    return %c0_i32, %c0_i32_0 : i32, i32
  }
  func.func @transform_7(%arg0: i32) -> (i32, i32) {
    %c0_i32 = arith.constant 0 : i32
    %c0_i32_0 = arith.constant 0 : i32
    %c0_i32_1 = arith.constant 0 : i32
    return %c0_i32, %c0_i32_0 : i32, i32
  }
  func.func @transform_8(%arg0: i32) -> (i32, i32) {
    %c0_i32 = arith.constant 0 : i32
    %c0_i32_0 = arith.constant 0 : i32
    %c0_i32_1 = arith.constant 0 : i32
    return %c0_i32, %c0_i32_0 : i32, i32
  }
  func.func @transform_9(%arg0: i32) -> (i32, i32) {
    %c0_i32 = arith.constant 0 : i32
    %c0_i32_0 = arith.constant 0 : i32
    %c0_i32_1 = arith.constant 0 : i32
    return %c0_i32, %c0_i32_0 : i32, i32
  }
  func.func @transform_10(%arg0: i32) -> (i32, i32) {
    %c0_i32 = arith.constant 0 : i32
    %c0_i32_0 = arith.constant 0 : i32
    %c0_i32_1 = arith.constant 0 : i32
    return %c0_i32, %c0_i32_0 : i32, i32
  }
  func.func @transform_11(%arg0: i32) -> (i32, i32) {
    %c0_i32 = arith.constant 0 : i32
    %c0_i32_0 = arith.constant 0 : i32
    %c0_i32_1 = arith.constant 0 : i32
    return %c0_i32, %c0_i32_0 : i32, i32
  }
  func.func @transform_12(%arg0: i32) -> (i32, i32) {
    %c0_i32 = arith.constant 0 : i32
    %c0_i32_0 = arith.constant 0 : i32
    %c0_i32_1 = arith.constant 0 : i32
    return %c0_i32, %c0_i32_0 : i32, i32
  }
  func.func @transform_13(%arg0: i32) -> (i32, i32) {
    %c0_i32 = arith.constant 0 : i32
    %c0_i32_0 = arith.constant 0 : i32
    %c0_i32_1 = arith.constant 0 : i32
    return %c0_i32, %c0_i32_0 : i32, i32
  }
  func.func @transform_14(%arg0: i32) -> (i32, i32) {
    %c0_i32 = arith.constant 0 : i32
    %c0_i32_0 = arith.constant 0 : i32
    %c0_i32_1 = arith.constant 0 : i32
    return %c0_i32, %c0_i32_0 : i32, i32
  }
  func.func @transform_15(%arg0: i32) -> (i32, i32) {
    %c0_i32 = arith.constant 0 : i32
    %c0_i32_0 = arith.constant 0 : i32
    %c0_i32_1 = arith.constant 0 : i32
    return %c0_i32, %c0_i32_0 : i32, i32
  }
  func.func @transform_16(%arg0: i32) -> (i32, i32) {
    %c0_i32 = arith.constant 0 : i32
    %c0_i32_0 = arith.constant 0 : i32
    %c0_i32_1 = arith.constant 0 : i32
    return %c0_i32, %c0_i32_0 : i32, i32
  }
  func.func @transform_17(%arg0: i32) -> (i32, i32, i32) {
    %c0_i32 = arith.constant 0 : i32
    %c0_i32_0 = arith.constant 0 : i32
    %c0_i32_1 = arith.constant 0 : i32
    %c0_i32_2 = arith.constant 0 : i32
    return %c0_i32, %c0_i32_0, %c0_i32_1 : i32, i32, i32
  }
  func.func @transform_18(%arg0: i32) -> (i32, i32, i32) {
    %c0_i32 = arith.constant 0 : i32
    %c0_i32_0 = arith.constant 0 : i32
    %c0_i32_1 = arith.constant 0 : i32
    %c0_i32_2 = arith.constant 0 : i32
    return %c0_i32, %c0_i32_0, %c0_i32_1 : i32, i32, i32
  }
  func.func @transform_19(%arg0: i32) -> (i32, i32, i32) {
    %c0_i32 = arith.constant 0 : i32
    %c0_i32_0 = arith.constant 0 : i32
    %c0_i32_1 = arith.constant 0 : i32
    %c0_i32_2 = arith.constant 0 : i32
    return %c0_i32, %c0_i32_0, %c0_i32_1 : i32, i32, i32
  }
  func.func @transform_20(%arg0: i32) -> (i32, i32, i32) {
    %c0_i32 = arith.constant 0 : i32
    %c0_i32_0 = arith.constant 0 : i32
    %c0_i32_1 = arith.constant 0 : i32
    %c0_i32_2 = arith.constant 0 : i32
    return %c0_i32, %c0_i32_0, %c0_i32_1 : i32, i32, i32
  }
  func.func @transform_21(%arg0: i32) -> (i32, i32, i32) {
    %c0_i32 = arith.constant 0 : i32
    %c0_i32_0 = arith.constant 0 : i32
    %c0_i32_1 = arith.constant 0 : i32
    %c0_i32_2 = arith.constant 0 : i32
    return %c0_i32, %c0_i32_0, %c0_i32_1 : i32, i32, i32
  }
  func.func @transform_22(%arg0: i32) -> (i32, i32, i32) {
    %c0_i32 = arith.constant 0 : i32
    %c0_i32_0 = arith.constant 0 : i32
    %c0_i32_1 = arith.constant 0 : i32
    %c0_i32_2 = arith.constant 0 : i32
    return %c0_i32, %c0_i32_0, %c0_i32_1 : i32, i32, i32
  }
  func.func @transform_23(%arg0: i32) -> (i32, i32, i32) {
    %c0_i32 = arith.constant 0 : i32
    %c0_i32_0 = arith.constant 0 : i32
    %c0_i32_1 = arith.constant 0 : i32
    %c0_i32_2 = arith.constant 0 : i32
    return %c0_i32, %c0_i32_0, %c0_i32_1 : i32, i32, i32
  }
  func.func @transform_24(%arg0: i32) -> (i32, i32, i32) {
    %c0_i32 = arith.constant 0 : i32
    %c0_i32_0 = arith.constant 0 : i32
    %c0_i32_1 = arith.constant 0 : i32
    %c0_i32_2 = arith.constant 0 : i32
    return %c0_i32, %c0_i32_0, %c0_i32_1 : i32, i32, i32
  }
  func.func @transform_25(%arg0: i32) -> (i32, i32, i32) {
    %c0_i32 = arith.constant 0 : i32
    %c0_i32_0 = arith.constant 0 : i32
    %c0_i32_1 = arith.constant 0 : i32
    return %arg0, %c0_i32, %c0_i32_0 : i32, i32, i32
  }
  func.func @transform_26(%arg0: i32) -> (i32, i32, i32, i32) {
    %c0_i32 = arith.constant 0 : i32
    %c0_i32_0 = arith.constant 0 : i32
    %c0_i32_1 = arith.constant 0 : i32
    %c0_i32_2 = arith.constant 0 : i32
    return %arg0, %c0_i32, %c0_i32_0, %c0_i32_1 : i32, i32, i32, i32
  }
  func.func @transform_27(%arg0: i32) -> (i32, i32, i32, i32) {
    %c0_i32 = arith.constant 0 : i32
    %c0_i32_0 = arith.constant 0 : i32
    %c0_i32_1 = arith.constant 0 : i32
    %c0_i32_2 = arith.constant 0 : i32
    return %arg0, %c0_i32, %c0_i32_0, %c0_i32_1 : i32, i32, i32, i32
  }
}

</mosaic_0001>

<llo_original>
// kernel: decoder_layer_pallas.1
$region0: #{decoder_layer_pallas.1}
  #allocation0 [shape = 'u32[]', space=smem, size = 0x4, offset = 0x4, fixed_abs, tag = 'smem constant byte address 0x4 - core index']
  #allocation1 [shape = 'u32[72,128]{1,0:T(1,128)}', space=vmem, size = 0x9000, scoped, tag = 'internal scratch']
  #allocation2 [shape = 'f32[8,32]{1,0:T(8,128)}', space=vmem, size = 0x1000, scoped, tag = 'scratch operand']
  %s0 = inlined_call_operand.vmem [shape: f32[2,8,32], index: 0, kind: input, shape index: {}]
  %s1 = inlined_call_operand.hbm [shape: f32[2,16,32], index: 1, kind: input, shape index: {}]
  %s2 = inlined_call_operand.vmem [shape: f32[2,1,32], index: 2, kind: input, shape index: {}]
  %s3 = inlined_call_operand.hbm [shape: f32[32,96], index: 3, kind: input, shape index: {}]
  %s4 = inlined_call_operand.hbm [shape: f32[1,96], index: 4, kind: input, shape index: {}]
  %s5 = inlined_call_operand.hbm [shape: f32[32,32], index: 5, kind: input, shape index: {}]
  %s6 = inlined_call_operand.hbm [shape: f32[1,32], index: 6, kind: input, shape index: {}]
  %s7 = inlined_call_operand.hbm [shape: f32[32,32], index: 7, kind: input, shape index: {}]
  %s8 = inlined_call_operand.hbm [shape: f32[1,32], index: 8, kind: input, shape index: {}]
  %s9 = inlined_call_operand.hbm [shape: f32[32,64], index: 9, kind: input, shape index: {}]
  %s10 = inlined_call_operand.hbm [shape: f32[1,64], index: 10, kind: input, shape index: {}]
  %s11 = inlined_call_operand.hbm [shape: f32[32,32], index: 11, kind: input, shape index: {}]
  %s12 = inlined_call_operand.hbm [shape: f32[1,32], index: 12, kind: input, shape index: {}]
  %s13 = inlined_call_operand.hbm [shape: f32[32,64], index: 13, kind: input, shape index: {}]
  %s14 = inlined_call_operand.hbm [shape: f32[1,64], index: 14, kind: input, shape index: {}]
  %s15 = inlined_call_operand.vmem [shape: f32[64,32], index: 15, kind: input, shape index: {}]
  %s16 = inlined_call_operand.hbm [shape: f32[1,32], index: 16, kind: input, shape index: {}]
  %s17 = inlined_call_operand.vmem [shape: f32[3,32,64], index: 17, kind: input, shape index: {}]
  %s18 = inlined_call_operand.hbm [shape: f32[3,1,64], index: 18, kind: input, shape index: {}]
  %s19 = inlined_call_operand.hbm [shape: f32[3,1,32], index: 19, kind: input, shape index: {}]
  %s20 = inlined_call_operand.hbm [shape: f32[3,1,32], index: 20, kind: input, shape index: {}]
  %s21 = inlined_call_operand.hbm [shape: f32[3,32,32], index: 21, kind: input, shape index: {}]
  %s22 = inlined_call_operand.vmem [shape: f32[3,1,32], index: 22, kind: input, shape index: {}]
  %s23 = inlined_call_operand.hbm [shape: f32[3,1,32], index: 23, kind: input, shape index: {}]
  %s24 = inlined_call_operand.hbm [shape: f32[3,1,32], index: 24, kind: input, shape index: {}]
  %s25 = inlined_call_operand.hbm [shape: f32[2,8,32], index: 25, kind: output, shape index: {0}]
  %s26 = inlined_call_operand.hbm [shape: f32[2,4,8,8], index: 26, kind: output, shape index: {1}]
  %s27 = inlined_call_operand.hbm [shape: f32[2,4,8,16], index: 27, kind: output, shape index: {2}]
  %28 = xla_tuple %s25, %s26, %s27
  %s29 = sld [smem:[#allocation0]]
  $region229: #{decoder_layer_pallas.1} parent=0
    _
  %s31 = ssub.s32 1, %s29
  %s32 = scalar_select 0, %s31, %s29
  $region1: #{decoder_layer_pallas.1} parent=0
    #allocation3 [shape = 'u8[16384]{0}', space=vmem, size = 0x4000, scoped, tag = 'input window, operand 1']
    #allocation4 [shape = 's32[2]{0}', space=sflag, size = 0x8, scoped, tag = 'scoped memory for decoder_layer_pallas.1']
    #allocation5 [shape = 's32[2]{0}', space=sflag, size = 0x8, scoped, tag = 'scoped memory for decoder_layer_pallas.1']
    #allocation6 [shape = 'u8[16384]{0}', space=vmem, size = 0x4000, scoped, tag = 'input window, operand 3, single buffered']
    #allocation7 [shape = 's32[1]{0}', space=sflag, size = 0x4, scoped, tag = 'scoped memory for decoder_layer_pallas.1']
    #allocation8 [shape = 'u8[512]{0}', space=vmem, size = 0x400, scoped, tag = 'input window, operand 4, single buffered']
    #allocation9 [shape = 'u8[16384]{0}', space=vmem, size = 0x4000, scoped, tag = 'input window, operand 5, single buffered']
    #allocation10 [shape = 's32[1]{0}', space=sflag, size = 0x4, scoped, tag = 'scoped memory for decoder_layer_pallas.1']
    #allocation11 [shape = 'u8[512]{0}', space=vmem, size = 0x400, scoped, tag = 'input window, operand 6, single buffered']
    #allocation12 [shape = 'u8[16384]{0}', space=vmem, size = 0x4000, scoped, tag = 'input window, operand 7, single buffered']
    #allocation13 [shape = 's32[1]{0}', space=sflag, size = 0x4, scoped, tag = 'scoped memory for decoder_layer_pallas.1']
    #allocation14 [shape = 'u8[512]{0}', space=vmem, size = 0x400, scoped, tag = 'input window, operand 8, single buffered']
    #allocation15 [shape = 'u8[16384]{0}', space=vmem, size = 0x4000, scoped, tag = 'input window, operand 9, single buffered']
    #allocation16 [shape = 's32[1]{0}', space=sflag, size = 0x4, scoped, tag = 'scoped memory for decoder_layer_pallas.1']
    #allocation17 [shape = 'u8[512]{0}', space=vmem, size = 0x400, scoped, tag = 'input window, operand 10, single buffered']
    #allocation18 [shape = 'u8[16384]{0}', space=vmem, size = 0x4000, scoped, tag = 'input window, operand 11, single buffered']
    #allocation19 [shape = 's32[1]{0}', space=sflag, size = 0x4, scoped, tag = 'scoped memory for decoder_layer_pallas.1']
    #allocation20 [shape = 'u8[512]{0}', space=vmem, size = 0x400, scoped, tag = 'input window, operand 12, single buffered']
    #allocation21 [shape = 'u8[16384]{0}', space=vmem, size = 0x4000, scoped, tag = 'input window, operand 13, single buffered']
    #allocation22 [shape = 's32[1]{0}', space=sflag, size = 0x4, scoped, tag = 'scoped memory for decoder_layer_pallas.1']
    #allocation23 [shape = 'u8[512]{0}', space=vmem, size = 0x400, scoped, tag = 'input window, operand 14, single buffered']
    #allocation24 [shape = 'u8[512]{0}', space=vmem, size = 0x400, scoped, tag = 'input window, operand 16, single buffered']
    #allocation25 [shape = 's32[1]{0}', space=sflag, size = 0x4, scoped, tag = 'scoped memory for decoder_layer_pallas.1']
    #allocation26 [shape = 'u8[1536]{0}', space=vmem, size = 0x800, scoped, tag = 'input window, operand 18, single buffered']
    #allocation27 [shape = 'u8[1536]{0}', space=vmem, size = 0x800, scoped, tag = 'input window, operand 19, single buffered']
    #allocation28 [shape = 's32[1]{0}', space=sflag, size = 0x4, scoped, tag = 'scoped memory for decoder_layer_pallas.1']
    #allocation29 [shape = 'u8[1536]{0}', space=vmem, size = 0x800, scoped, tag = 'input window, operand 20, single buffered']
    #allocation30 [shape = 'u8[49152]{0}', space=vmem, size = 0xc000, scoped, tag = 'input window, operand 21, single buffered']
    #allocation31 [shape = 's32[1]{0}', space=sflag, size = 0x4, scoped, tag = 'scoped memory for decoder_layer_pallas.1']
    #allocation32 [shape = 'u8[1536]{0}', space=vmem, size = 0x800, scoped, tag = 'input window, operand 23, single buffered']
    #allocation33 [shape = 'u8[1536]{0}', space=vmem, size = 0x800, scoped, tag = 'input window, operand 24, single buffered']
    #allocation34 [shape = 's32[1]{0}', space=sflag, size = 0x4, scoped, tag = 'scoped memory for decoder_layer_pallas.1']
    #allocation35 [shape = 'u8[8192]{0}', space=vmem, size = 0x2000, scoped, tag = 'output window, operand 0']
    #allocation36 [shape = 'u8[32768]{0}', space=vmem, size = 0x8000, scoped, tag = 'output window, operand 1']
    #allocation37 [shape = 's32[2]{0}', space=sflag, size = 0x8, scoped, tag = 'scoped memory for decoder_layer_pallas.1']
    #allocation38 [shape = 'u8[32768]{0}', space=vmem, size = 0x8000, scoped, tag = 'output window, operand 2']
    %33 = vsyncpa [#allocation4], 0
    %s34 = scalar_lea.sflag [#allocation4], 1
    %35 = vsyncpa %s34, 0
    %36 = vsyncpa [#allocation7], 0
    %37 = vsyncpa [#allocation10], 0
    %38 = vsyncpa [#allocation13], 0
    %39 = vsyncpa [#allocation16], 0
    %40 = vsyncpa [#allocation19], 0
    %41 = vsyncpa [#allocation22], 0
    %42 = vsyncpa [#allocation25], 0
    %43 = vsyncpa [#allocation28], 0
    %44 = vsyncpa [#allocation31], 0
    %45 = vsyncpa [#allocation34], 0
    %46 = vsyncpa [#allocation5], 0
    %s47 = scalar_lea.sflag [#allocation5], 1
    %48 = vsyncpa %s47, 0
    %49 = vsyncpa [#allocation37], 0
    %s50 = scalar_lea.sflag [#allocation37], 1
    %51 = vsyncpa %s50, 0
    loop: start=0, step=1, limit=4
    $region2: #{decoder_layer_pallas.1} parent=1 // loop_pre_header
      _
    $region3: #{decoder_layer_pallas.1} parent=1 // loop_header
      %s53 = sphi 0, %s57
      %p54 = scmp.ge.s32.totalorder %s53, 4
      %s63 = sphi 0, %s65
      %s66 = sphi 0, %s63
      %s67 = sphi 0, %s66
      %s83 = sphi 0, %s67
      %s89 = sphi 0, %s91
      %s92 = sphi 0, %s89
      %s93 = sphi 0, %s92
      %s109 = sphi 0, %s93
      %s115 = sphi 0, %s117
      %s118 = sphi 0, %s115
      %s119 = sphi 0, %s118
      %s135 = sphi 0, %s119
      %s139 = sphi 0, %s139
      %s141 = sphi 0, %s139
      %s142 = sphi 0, %s141
      %s156 = sphi 0, %s142
      %s160 = sphi 0, %s160
      %s162 = sphi 0, %s160
      %s163 = sphi 0, %s162
      %s177 = sphi 0, %s163
      %s181 = sphi 0, %s181
      %s183 = sphi 0, %s181
      %s184 = sphi 0, %s183
      %s198 = sphi 0, %s184
      %s202 = sphi 0, %s202
      %s204 = sphi 0, %s202
      %s205 = sphi 0, %s204
      %s219 = sphi 0, %s205
      %s223 = sphi 0, %s223
      %s225 = sphi 0, %s223
      %s226 = sphi 0, %s225
      %s240 = sphi 0, %s226
      %s244 = sphi 0, %s244
      %s246 = sphi 0, %s244
      %s247 = sphi 0, %s246
      %s261 = sphi 0, %s247
      %s265 = sphi 0, %s265
      %s267 = sphi 0, %s265
      %s268 = sphi 0, %s267
      %s282 = sphi 0, %s268
      %s286 = sphi 0, %s286
      %s288 = sphi 0, %s286
      %s289 = sphi 0, %s288
      %s303 = sphi 0, %s289
      %s307 = sphi 0, %s307
      %s309 = sphi 0, %s307
      %s310 = sphi 0, %s309
      %s324 = sphi 0, %s310
      %s328 = sphi 0, %s328
      %s330 = sphi 0, %s328
      %s331 = sphi 0, %s330
      %s345 = sphi 0, %s331
      %s349 = sphi 0, %s349
      %s351 = sphi 0, %s349
      %s352 = sphi 0, %s351
      %s366 = sphi 0, %s352
      %s370 = sphi 0, %s370
      %s372 = sphi 0, %s370
      %s373 = sphi 0, %s372
      %s387 = sphi 0, %s373
      %s391 = sphi 0, %s391
      %s393 = sphi 0, %s391
      %s394 = sphi 0, %s393
      %s408 = sphi 0, %s394
      %s412 = sphi 0, %s412
      %s414 = sphi 0, %s412
      %s415 = sphi 0, %s414
      %s429 = sphi 0, %s415
      %s433 = sphi 0, %s433
      %s435 = sphi 0, %s433
      %s436 = sphi 0, %s435
      %s450 = sphi 0, %s436
      %s454 = sphi 0, %s454
      %s456 = sphi 0, %s454
      %s457 = sphi 0, %s456
      %s471 = sphi 0, %s457
      %s475 = sphi 0, %s475
      %s477 = sphi 0, %s475
      %s478 = sphi 0, %s477
      %s492 = sphi 0, %s478
      %s496 = sphi 0, %s496
      %s498 = sphi 0, %s496
      %s499 = sphi 0, %s498
      %s513 = sphi 0, %s499
      %s517 = sphi 0, %s517
      %s519 = sphi 0, %s517
      %s520 = sphi 0, %s519
      %s534 = sphi 0, %s520
      %s538 = sphi 0, %s538
      %s540 = sphi 0, %s538
      %s541 = sphi 0, %s540
      %s555 = sphi 0, %s541
      %s559 = sphi 0, %s559
      %s561 = sphi 0, %s559
      %s562 = sphi 0, %s561
      %s576 = sphi 0, %s562
      %s580 = sphi 0, %s580
      %s582 = sphi 0, %s580
      %s583 = sphi 0, %s582
      %s597 = sphi 0, %s583
      %s603 = sphi 0, %s605
      %s606 = sphi 0, %s603
      %s607 = sphi 0, %s606
      %s623 = sphi 0, %s607
      %s629 = sphi 0, %s631
      %s632 = sphi 0, %s629
      %s633 = sphi 0, %s632
      %s649 = sphi 0, %s633
      %s655 = sphi 0, %s657
      %s658 = sphi 0, %s655
      %s659 = sphi 0, %s658
      %s675 = sphi 0, %s659
    $region4: #{decoder_layer_pallas.1} parent=1 // loop_header_branch
      %56 = sbr.rel (%p54) target = $region8
    $region5: #{decoder_layer_pallas.1} parent=1 // loop_body
      %s58 = ssub.s32 %s53, 1
      %s59 = ssub.s32 %s53, 2
      %s60 = sadd.s32 %s53, 1
      %s61 = ssub.s32 %s53, %s60
      %p62 = scmp.eq.s32.totalorder %s61, 0
      %s64 = sadd.s32 %s63, 1
      %s65 = scalar_select %p62, %s63, %s64
      %p68 = pneg %p62
      %p69 = scmp.eq.s32.totalorder %s53, 1
      %p70 = por %p68, %p69
      %p71 = scmp.ne.s32.totalorder %s63, %s66
      %p72 = scmp.eq.s32.totalorder %s53, 0
      %p73 = por %p71, %p72
      %p74 = scmp.ne.s32.totalorder %s63, %s66
      %p75 = scmp.eq.s32.totalorder %s58, 1
      %p76 = por %p74, %p75
      %p77 = scmp.ne.s32.totalorder %s66, %s67
      %p78 = scmp.eq.s32.totalorder %s58, 0
      %p79 = por %p77, %p78
      %p80 = scmp.ne.s32.totalorder %s66, %s67
      %p81 = scmp.eq.s32.totalorder %s59, 1
      %p82 = por %p80, %p81
      %p84 = scmp.ne.s32.totalorder %s67, %s83
      %p85 = scmp.eq.s32.totalorder %s59, 0
      %p86 = por %p84, %p85
      %s87 = ssub.s32 %s53, %s60
      %p88 = scmp.eq.s32.totalorder %s87, 0
      %s90 = sadd.s32 %s89, 1
      %s91 = scalar_select %p88, %s89, %s90
      %p94 = pneg %p88
      %p95 = scmp.eq.s32.totalorder %s53, 1
      %p96 = por %p94, %p95
      %p97 = scmp.ne.s32.totalorder %s89, %s92
      %p98 = scmp.eq.s32.totalorder %s53, 0
      %p99 = por %p97, %p98
      %p100 = scmp.ne.s32.totalorder %s89, %s92
      %p101 = scmp.eq.s32.totalorder %s58, 1
      %p102 = por %p100, %p101
      %p103 = scmp.ne.s32.totalorder %s92, %s93
      %p104 = scmp.eq.s32.totalorder %s58, 0
      %p105 = por %p103, %p104
      %p106 = scmp.ne.s32.totalorder %s92, %s93
      %p107 = scmp.eq.s32.totalorder %s59, 1
      %p108 = por %p106, %p107
      %p110 = scmp.ne.s32.totalorder %s93, %s109
      %p111 = scmp.eq.s32.totalorder %s59, 0
      %p112 = por %p110, %p111
      %s113 = ssub.s32 %s53, %s60
      %p114 = scmp.eq.s32.totalorder %s113, 0
      %s116 = sadd.s32 %s115, 1
      %s117 = scalar_select %p114, %s115, %s116
      %p120 = pneg %p114
      %p121 = scmp.eq.s32.totalorder %s53, 1
      %p122 = por %p120, %p121
      %p123 = scmp.ne.s32.totalorder %s115, %s118
      %p124 = scmp.eq.s32.totalorder %s53, 0
      %p125 = por %p123, %p124
      %p126 = scmp.ne.s32.totalorder %s115, %s118
      %p127 = scmp.eq.s32.totalorder %s58, 1
      %p128 = por %p126, %p127
      %p129 = scmp.ne.s32.totalorder %s118, %s119
      %p130 = scmp.eq.s32.totalorder %s58, 0
      %p131 = por %p129, %p130
      %p132 = scmp.ne.s32.totalorder %s118, %s119
      %p133 = scmp.eq.s32.totalorder %s59, 1
      %p134 = por %p132, %p133
      %p136 = scmp.ne.s32.totalorder %s119, %s135
      %p137 = scmp.eq.s32.totalorder %s59, 0
      %p138 = por %p136, %p137
      %s140 = sadd.s32 %s139, 1
      %p143 = scmp.eq.s32.totalorder %s53, 1
      %p144 = scmp.ne.s32.totalorder %s139, %s141
      %p145 = scmp.eq.s32.totalorder %s53, 0
      %p146 = por %p144, %p145
      %p147 = scmp.ne.s32.totalorder %s139, %s141
      %p148 = scmp.eq.s32.totalorder %s58, 1
      %p149 = por %p147, %p148
      %p150 = scmp.ne.s32.totalorder %s141, %s142
      %p151 = scmp.eq.s32.totalorder %s58, 0
      %p152 = por %p150, %p151
      %p153 = scmp.ne.s32.totalorder %s141, %s142
      %p154 = scmp.eq.s32.totalorder %s59, 1
      %p155 = por %p153, %p154
      %p157 = scmp.ne.s32.totalorder %s142, %s156
      %p158 = scmp.eq.s32.totalorder %s59, 0
      %p159 = por %p157, %p158
      %s161 = sadd.s32 %s160, 1
      %p164 = scmp.eq.s32.totalorder %s53, 1
      %p165 = scmp.ne.s32.totalorder %s160, %s162
      %p166 = scmp.eq.s32.totalorder %s53, 0
      %p167 = por %p165, %p166
      %p168 = scmp.ne.s32.totalorder %s160, %s162
      %p169 = scmp.eq.s32.totalorder %s58, 1
      %p170 = por %p168, %p169
      %p171 = scmp.ne.s32.totalorder %s162, %s163
      %p172 = scmp.eq.s32.totalorder %s58, 0
      %p173 = por %p171, %p172
      %p174 = scmp.ne.s32.totalorder %s162, %s163
      %p175 = scmp.eq.s32.totalorder %s59, 1
      %p176 = por %p174, %p175
      %p178 = scmp.ne.s32.totalorder %s163, %s177
      %p179 = scmp.eq.s32.totalorder %s59, 0
      %p180 = por %p178, %p179
      %s182 = sadd.s32 %s181, 1
      %p185 = scmp.eq.s32.totalorder %s53, 1
      %p186 = scmp.ne.s32.totalorder %s181, %s183
      %p187 = scmp.eq.s32.totalorder %s53, 0
      %p188 = por %p186, %p187
      %p189 = scmp.ne.s32.totalorder %s181, %s183
      %p190 = scmp.eq.s32.totalorder %s58, 1
      %p191 = por %p189, %p190
      %p192 = scmp.ne.s32.totalorder %s183, %s184
      %p193 = scmp.eq.s32.totalorder %s58, 0
      %p194 = por %p192, %p193
      %p195 = scmp.ne.s32.totalorder %s183, %s184
      %p196 = scmp.eq.s32.totalorder %s59, 1
      %p197 = por %p195, %p196
      %p199 = scmp.ne.s32.totalorder %s184, %s198
      %p200 = scmp.eq.s32.totalorder %s59, 0
      %p201 = por %p199, %p200
      %s203 = sadd.s32 %s202, 1
      %p206 = scmp.eq.s32.totalorder %s53, 1
      %p207 = scmp.ne.s32.totalorder %s202, %s204
      %p208 = scmp.eq.s32.totalorder %s53, 0
      %p209 = por %p207, %p208
      %p210 = scmp.ne.s32.totalorder %s202, %s204
      %p211 = scmp.eq.s32.totalorder %s58, 1
      %p212 = por %p210, %p211
      %p213 = scmp.ne.s32.totalorder %s204, %s205
      %p214 = scmp.eq.s32.totalorder %s58, 0
      %p215 = por %p213, %p214
      %p216 = scmp.ne.s32.totalorder %s204, %s205
      %p217 = scmp.eq.s32.totalorder %s59, 1
      %p218 = por %p216, %p217
      %p220 = scmp.ne.s32.totalorder %s205, %s219
      %p221 = scmp.eq.s32.totalorder %s59, 0
      %p222 = por %p220, %p221
      %s224 = sadd.s32 %s223, 1
      %p227 = scmp.eq.s32.totalorder %s53, 1
      %p228 = scmp.ne.s32.totalorder %s223, %s225
      %p229 = scmp.eq.s32.totalorder %s53, 0
      %p230 = por %p228, %p229
      %p231 = scmp.ne.s32.totalorder %s223, %s225
      %p232 = scmp.eq.s32.totalorder %s58, 1
      %p233 = por %p231, %p232
      %p234 = scmp.ne.s32.totalorder %s225, %s226
      %p235 = scmp.eq.s32.totalorder %s58, 0
      %p236 = por %p234, %p235
      %p237 = scmp.ne.s32.totalorder %s225, %s226
      %p238 = scmp.eq.s32.totalorder %s59, 1
      %p239 = por %p237, %p238
      %p241 = scmp.ne.s32.totalorder %s226, %s240
      %p242 = scmp.eq.s32.totalorder %s59, 0
      %p243 = por %p241, %p242
      %s245 = sadd.s32 %s244, 1
      %p248 = scmp.eq.s32.totalorder %s53, 1
      %p249 = scmp.ne.s32.totalorder %s244, %s246
      %p250 = scmp.eq.s32.totalorder %s53, 0
      %p251 = por %p249, %p250
      %p252 = scmp.ne.s32.totalorder %s244, %s246
      %p253 = scmp.eq.s32.totalorder %s58, 1
      %p254 = por %p252, %p253
      %p255 = scmp.ne.s32.totalorder %s246, %s247
      %p256 = scmp.eq.s32.totalorder %s58, 0
      %p257 = por %p255, %p256
      %p258 = scmp.ne.s32.totalorder %s246, %s247
      %p259 = scmp.eq.s32.totalorder %s59, 1
      %p260 = por %p258, %p259
      %p262 = scmp.ne.s32.totalorder %s247, %s261
      %p263 = scmp.eq.s32.totalorder %s59, 0
      %p264 = por %p262, %p263
      %s266 = sadd.s32 %s265, 1
      %p269 = scmp.eq.s32.totalorder %s53, 1
      %p270 = scmp.ne.s32.totalorder %s265, %s267
      %p271 = scmp.eq.s32.totalorder %s53, 0
      %p272 = por %p270, %p271
      %p273 = scmp.ne.s32.totalorder %s265, %s267
      %p274 = scmp.eq.s32.totalorder %s58, 1
      %p275 = por %p273, %p274
      %p276 = scmp.ne.s32.totalorder %s267, %s268
      %p277 = scmp.eq.s32.totalorder %s58, 0
      %p278 = por %p276, %p277
      %p279 = scmp.ne.s32.totalorder %s267, %s268
      %p280 = scmp.eq.s32.totalorder %s59, 1
      %p281 = por %p279, %p280
      %p283 = scmp.ne.s32.totalorder %s268, %s282
      %p284 = scmp.eq.s32.totalorder %s59, 0
      %p285 = por %p283, %p284
      %s287 = sadd.s32 %s286, 1
      %p290 = scmp.eq.s32.totalorder %s53, 1
      %p291 = scmp.ne.s32.totalorder %s286, %s288
      %p292 = scmp.eq.s32.totalorder %s53, 0
      %p293 = por %p291, %p292
      %p294 = scmp.ne.s32.totalorder %s286, %s288
      %p295 = scmp.eq.s32.totalorder %s58, 1
      %p296 = por %p294, %p295
      %p297 = scmp.ne.s32.totalorder %s288, %s289
      %p298 = scmp.eq.s32.totalorder %s58, 0
      %p299 = por %p297, %p298
      %p300 = scmp.ne.s32.totalorder %s288, %s289
      %p301 = scmp.eq.s32.totalorder %s59, 1
      %p302 = por %p300, %p301
      %p304 = scmp.ne.s32.totalorder %s289, %s303
      %p305 = scmp.eq.s32.totalorder %s59, 0
      %p306 = por %p304, %p305
      %s308 = sadd.s32 %s307, 1
      %p311 = scmp.eq.s32.totalorder %s53, 1
      %p312 = scmp.ne.s32.totalorder %s307, %s309
      %p313 = scmp.eq.s32.totalorder %s53, 0
      %p314 = por %p312, %p313
      %p315 = scmp.ne.s32.totalorder %s307, %s309
      %p316 = scmp.eq.s32.totalorder %s58, 1
      %p317 = por %p315, %p316
      %p318 = scmp.ne.s32.totalorder %s309, %s310
      %p319 = scmp.eq.s32.totalorder %s58, 0
      %p320 = por %p318, %p319
      %p321 = scmp.ne.s32.totalorder %s309, %s310
      %p322 = scmp.eq.s32.totalorder %s59, 1
      %p323 = por %p321, %p322
      %p325 = scmp.ne.s32.totalorder %s310, %s324
      %p326 = scmp.eq.s32.totalorder %s59, 0
      %p327 = por %p325, %p326
      %s329 = sadd.s32 %s328, 1
      %p332 = scmp.eq.s32.totalorder %s53, 1
      %p333 = scmp.ne.s32.totalorder %s328, %s330
      %p334 = scmp.eq.s32.totalorder %s53, 0
      %p335 = por %p333, %p334
      %p336 = scmp.ne.s32.totalorder %s328, %s330
      %p337 = scmp.eq.s32.totalorder %s58, 1
      %p338 = por %p336, %p337
      %p339 = scmp.ne.s32.totalorder %s330, %s331
      %p340 = scmp.eq.s32.totalorder %s58, 0
      %p341 = por %p339, %p340
      %p342 = scmp.ne.s32.totalorder %s330, %s331
      %p343 = scmp.eq.s32.totalorder %s59, 1
      %p344 = por %p342, %p343
      %p346 = scmp.ne.s32.totalorder %s331, %s345
      %p347 = scmp.eq.s32.totalorder %s59, 0
      %p348 = por %p346, %p347
      %s350 = sadd.s32 %s349, 1
      %p353 = scmp.eq.s32.totalorder %s53, 1
      %p354 = scmp.ne.s32.totalorder %s349, %s351
      %p355 = scmp.eq.s32.totalorder %s53, 0
      %p356 = por %p354, %p355
      %p357 = scmp.ne.s32.totalorder %s349, %s351
      %p358 = scmp.eq.s32.totalorder %s58, 1
      %p359 = por %p357, %p358
      %p360 = scmp.ne.s32.totalorder %s351, %s352
      %p361 = scmp.eq.s32.totalorder %s58, 0
      %p362 = por %p360, %p361
      %p363 = scmp.ne.s32.totalorder %s351, %s352
      %p364 = scmp.eq.s32.totalorder %s59, 1
      %p365 = por %p363, %p364
      %p367 = scmp.ne.s32.totalorder %s352, %s366
      %p368 = scmp.eq.s32.totalorder %s59, 0
      %p369 = por %p367, %p368
      %s371 = sadd.s32 %s370, 1
      %p374 = scmp.eq.s32.totalorder %s53, 1
      %p375 = scmp.ne.s32.totalorder %s370, %s372
      %p376 = scmp.eq.s32.totalorder %s53, 0
      %p377 = por %p375, %p376
      %p378 = scmp.ne.s32.totalorder %s370, %s372
      %p379 = scmp.eq.s32.totalorder %s58, 1
      %p380 = por %p378, %p379
      %p381 = scmp.ne.s32.totalorder %s372, %s373
      %p382 = scmp.eq.s32.totalorder %s58, 0
      %p383 = por %p381, %p382
      %p384 = scmp.ne.s32.totalorder %s372, %s373
      %p385 = scmp.eq.s32.totalorder %s59, 1
      %p386 = por %p384, %p385
      %p388 = scmp.ne.s32.totalorder %s373, %s387
      %p389 = scmp.eq.s32.totalorder %s59, 0
      %p390 = por %p388, %p389
      %s392 = sadd.s32 %s391, 1
      %p395 = scmp.eq.s32.totalorder %s53, 1
      %p396 = scmp.ne.s32.totalorder %s391, %s393
      %p397 = scmp.eq.s32.totalorder %s53, 0
      %p398 = por %p396, %p397
      %p399 = scmp.ne.s32.totalorder %s391, %s393
      %p400 = scmp.eq.s32.totalorder %s58, 1
      %p401 = por %p399, %p400
      %p402 = scmp.ne.s32.totalorder %s393, %s394
      %p403 = scmp.eq.s32.totalorder %s58, 0
      %p404 = por %p402, %p403
      %p405 = scmp.ne.s32.totalorder %s393, %s394
      %p406 = scmp.eq.s32.totalorder %s59, 1
      %p407 = por %p405, %p406
      %p409 = scmp.ne.s32.totalorder %s394, %s408
      %p410 = scmp.eq.s32.totalorder %s59, 0
      %p411 = por %p409, %p410
      %s413 = sadd.s32 %s412, 1
      %p416 = scmp.eq.s32.totalorder %s53, 1
      %p417 = scmp.ne.s32.totalorder %s412, %s414
      %p418 = scmp.eq.s32.totalorder %s53, 0
      %p419 = por %p417, %p418
      %p420 = scmp.ne.s32.totalorder %s412, %s414
      %p421 = scmp.eq.s32.totalorder %s58, 1
      %p422 = por %p420, %p421
      %p423 = scmp.ne.s32.totalorder %s414, %s415
      %p424 = scmp.eq.s32.totalorder %s58, 0
      %p425 = por %p423, %p424
      %p426 = scmp.ne.s32.totalorder %s414, %s415
      %p427 = scmp.eq.s32.totalorder %s59, 1
      %p428 = por %p426, %p427
      %p430 = scmp.ne.s32.totalorder %s415, %s429
      %p431 = scmp.eq.s32.totalorder %s59, 0
      %p432 = por %p430, %p431
      %s434 = sadd.s32 %s433, 1
      %p437 = scmp.eq.s32.totalorder %s53, 1
      %p438 = scmp.ne.s32.totalorder %s433, %s435
      %p439 = scmp.eq.s32.totalorder %s53, 0
      %p440 = por %p438, %p439
      %p441 = scmp.ne.s32.totalorder %s433, %s435
      %p442 = scmp.eq.s32.totalorder %s58, 1
      %p443 = por %p441, %p442
      %p444 = scmp.ne.s32.totalorder %s435, %s436
      %p445 = scmp.eq.s32.totalorder %s58, 0
      %p446 = por %p444, %p445
      %p447 = scmp.ne.s32.totalorder %s435, %s436
      %p448 = scmp.eq.s32.totalorder %s59, 1
      %p449 = por %p447, %p448
      %p451 = scmp.ne.s32.totalorder %s436, %s450
      %p452 = scmp.eq.s32.totalorder %s59, 0
      %p453 = por %p451, %p452
      %s455 = sadd.s32 %s454, 1
      %p458 = scmp.eq.s32.totalorder %s53, 1
      %p459 = scmp.ne.s32.totalorder %s454, %s456
      %p460 = scmp.eq.s32.totalorder %s53, 0
      %p461 = por %p459, %p460
      %p462 = scmp.ne.s32.totalorder %s454, %s456
      %p463 = scmp.eq.s32.totalorder %s58, 1
      %p464 = por %p462, %p463
      %p465 = scmp.ne.s32.totalorder %s456, %s457
      %p466 = scmp.eq.s32.totalorder %s58, 0
      %p467 = por %p465, %p466
      %p468 = scmp.ne.s32.totalorder %s456, %s457
      %p469 = scmp.eq.s32.totalorder %s59, 1
      %p470 = por %p468, %p469
      %p472 = scmp.ne.s32.totalorder %s457, %s471
      %p473 = scmp.eq.s32.totalorder %s59, 0
      %p474 = por %p472, %p473
      %s476 = sadd.s32 %s475, 1
      %p479 = scmp.eq.s32.totalorder %s53, 1
      %p480 = scmp.ne.s32.totalorder %s475, %s477
      %p481 = scmp.eq.s32.totalorder %s53, 0
      %p482 = por %p480, %p481
      %p483 = scmp.ne.s32.totalorder %s475, %s477
      %p484 = scmp.eq.s32.totalorder %s58, 1
      %p485 = por %p483, %p484
      %p486 = scmp.ne.s32.totalorder %s477, %s478
      %p487 = scmp.eq.s32.totalorder %s58, 0
      %p488 = por %p486, %p487
      %p489 = scmp.ne.s32.totalorder %s477, %s478
      %p490 = scmp.eq.s32.totalorder %s59, 1
      %p491 = por %p489, %p490
      %p493 = scmp.ne.s32.totalorder %s478, %s492
      %p494 = scmp.eq.s32.totalorder %s59, 0
      %p495 = por %p493, %p494
      %s497 = sadd.s32 %s496, 1
      %p500 = scmp.eq.s32.totalorder %s53, 1
      %p501 = scmp.ne.s32.totalorder %s496, %s498
      %p502 = scmp.eq.s32.totalorder %s53, 0
      %p503 = por %p501, %p502
      %p504 = scmp.ne.s32.totalorder %s496, %s498
      %p505 = scmp.eq.s32.totalorder %s58, 1
      %p506 = por %p504, %p505
      %p507 = scmp.ne.s32.totalorder %s498, %s499
      %p508 = scmp.eq.s32.totalorder %s58, 0
      %p509 = por %p507, %p508
      %p510 = scmp.ne.s32.totalorder %s498, %s499
      %p511 = scmp.eq.s32.totalorder %s59, 1
      %p512 = por %p510, %p511
      %p514 = scmp.ne.s32.totalorder %s499, %s513
      %p515 = scmp.eq.s32.totalorder %s59, 0
      %p516 = por %p514, %p515
      %s518 = sadd.s32 %s517, 1
      %p521 = scmp.eq.s32.totalorder %s53, 1
      %p522 = scmp.ne.s32.totalorder %s517, %s519
      %p523 = scmp.eq.s32.totalorder %s53, 0
      %p524 = por %p522, %p523
      %p525 = scmp.ne.s32.totalorder %s517, %s519
      %p526 = scmp.eq.s32.totalorder %s58, 1
      %p527 = por %p525, %p526
      %p528 = scmp.ne.s32.totalorder %s519, %s520
      %p529 = scmp.eq.s32.totalorder %s58, 0
      %p530 = por %p528, %p529
      %p531 = scmp.ne.s32.totalorder %s519, %s520
      %p532 = scmp.eq.s32.totalorder %s59, 1
      %p533 = por %p531, %p532
      %p535 = scmp.ne.s32.totalorder %s520, %s534
      %p536 = scmp.eq.s32.totalorder %s59, 0
      %p537 = por %p535, %p536
      %s539 = sadd.s32 %s538, 1
      %p542 = scmp.eq.s32.totalorder %s53, 1
      %p543 = scmp.ne.s32.totalorder %s538, %s540
      %p544 = scmp.eq.s32.totalorder %s53, 0
      %p545 = por %p543, %p544
      %p546 = scmp.ne.s32.totalorder %s538, %s540
      %p547 = scmp.eq.s32.totalorder %s58, 1
      %p548 = por %p546, %p547
      %p549 = scmp.ne.s32.totalorder %s540, %s541
      %p550 = scmp.eq.s32.totalorder %s58, 0
      %p551 = por %p549, %p550
      %p552 = scmp.ne.s32.totalorder %s540, %s541
      %p553 = scmp.eq.s32.totalorder %s59, 1
      %p554 = por %p552, %p553
      %p556 = scmp.ne.s32.totalorder %s541, %s555
      %p557 = scmp.eq.s32.totalorder %s59, 0
      %p558 = por %p556, %p557
      %s560 = sadd.s32 %s559, 1
      %p563 = scmp.eq.s32.totalorder %s53, 1
      %p564 = scmp.ne.s32.totalorder %s559, %s561
      %p565 = scmp.eq.s32.totalorder %s53, 0
      %p566 = por %p564, %p565
      %p567 = scmp.ne.s32.totalorder %s559, %s561
      %p568 = scmp.eq.s32.totalorder %s58, 1
      %p569 = por %p567, %p568
      %p570 = scmp.ne.s32.totalorder %s561, %s562
      %p571 = scmp.eq.s32.totalorder %s58, 0
      %p572 = por %p570, %p571
      %p573 = scmp.ne.s32.totalorder %s561, %s562
      %p574 = scmp.eq.s32.totalorder %s59, 1
      %p575 = por %p573, %p574
      %p577 = scmp.ne.s32.totalorder %s562, %s576
      %p578 = scmp.eq.s32.totalorder %s59, 0
      %p579 = por %p577, %p578
      %s581 = sadd.s32 %s580, 1
      %p584 = scmp.eq.s32.totalorder %s53, 1
      %p585 = scmp.ne.s32.totalorder %s580, %s582
      %p586 = scmp.eq.s32.totalorder %s53, 0
      %p587 = por %p585, %p586
      %p588 = scmp.ne.s32.totalorder %s580, %s582
      %p589 = scmp.eq.s32.totalorder %s58, 1
      %p590 = por %p588, %p589
      %p591 = scmp.ne.s32.totalorder %s582, %s583
      %p592 = scmp.eq.s32.totalorder %s58, 0
      %p593 = por %p591, %p592
      %p594 = scmp.ne.s32.totalorder %s582, %s583
      %p595 = scmp.eq.s32.totalorder %s59, 1
      %p596 = por %p594, %p595
      %p598 = scmp.ne.s32.totalorder %s583, %s597
      %p599 = scmp.eq.s32.totalorder %s59, 0
      %p600 = por %p598, %p599
      %s601 = ssub.s32 %s53, %s60
      %p602 = scmp.eq.s32.totalorder %s601, 0
      %s604 = sadd.s32 %s603, 1
      %s605 = scalar_select %p602, %s603, %s604
      %p608 = pneg %p602
      %p609 = scmp.eq.s32.totalorder %s53, 1
      %p610 = por %p608, %p609
      %p611 = scmp.ne.s32.totalorder %s603, %s606
      %p612 = scmp.eq.s32.totalorder %s53, 0
      %p613 = por %p611, %p612
      %p614 = scmp.ne.s32.totalorder %s603, %s606
      %p615 = scmp.eq.s32.totalorder %s58, 1
      %p616 = por %p614, %p615
      %p617 = scmp.ne.s32.totalorder %s606, %s607
      %p618 = scmp.eq.s32.totalorder %s58, 0
      %p619 = por %p617, %p618
      %p620 = scmp.ne.s32.totalorder %s606, %s607
      %p621 = scmp.eq.s32.totalorder %s59, 1
      %p622 = por %p620, %p621
      %p624 = scmp.ne.s32.totalorder %s607, %s623
      %p625 = scmp.eq.s32.totalorder %s59, 0
      %p626 = por %p624, %p625
      %s627 = ssub.s32 %s53, %s60
      %p628 = scmp.eq.s32.totalorder %s627, 0
      %s630 = sadd.s32 %s629, 1
      %s631 = scalar_select %p628, %s629, %s630
      %p634 = pneg %p628
      %p635 = scmp.eq.s32.totalorder %s53, 1
      %p636 = por %p634, %p635
      %p637 = scmp.ne.s32.totalorder %s629, %s632
      %p638 = scmp.eq.s32.totalorder %s53, 0
      %p639 = por %p637, %p638
      %p640 = scmp.ne.s32.totalorder %s629, %s632
      %p641 = scmp.eq.s32.totalorder %s58, 1
      %p642 = por %p640, %p641
      %p643 = scmp.ne.s32.totalorder %s632, %s633
      %p644 = scmp.eq.s32.totalorder %s58, 0
      %p645 = por %p643, %p644
      %p646 = scmp.ne.s32.totalorder %s632, %s633
      %p647 = scmp.eq.s32.totalorder %s59, 1
      %p648 = por %p646, %p647
      %p650 = scmp.ne.s32.totalorder %s633, %s649
      %p651 = scmp.eq.s32.totalorder %s59, 0
      %p652 = por %p650, %p651
      %s653 = ssub.s32 %s53, %s60
      %p654 = scmp.eq.s32.totalorder %s653, 0
      %s656 = sadd.s32 %s655, 1
      %s657 = scalar_select %p654, %s655, %s656
      %p660 = pneg %p654
      %p661 = scmp.eq.s32.totalorder %s53, 1
      %p662 = por %p660, %p661
      %p663 = scmp.ne.s32.totalorder %s655, %s658
      %p664 = scmp.eq.s32.totalorder %s53, 0
      %p665 = por %p663, %p664
      %p666 = scmp.ne.s32.totalorder %s655, %s658
      %p667 = scmp.eq.s32.totalorder %s58, 1
      %p668 = por %p666, %p667
      %p669 = scmp.ne.s32.totalorder %s658, %s659
      %p670 = scmp.eq.s32.totalorder %s58, 0
      %p671 = por %p669, %p670
      %p672 = scmp.ne.s32.totalorder %s658, %s659
      %p673 = scmp.eq.s32.totalorder %s59, 1
      %p674 = por %p672, %p673
      %p676 = scmp.ne.s32.totalorder %s659, %s675
      %p677 = scmp.eq.s32.totalorder %s59, 0
      %p678 = por %p676, %p677
      %p679 = scmp.le.s32.totalorder 1, %s53
      %p680 = scmp.lt.s32.totalorder %s53, 3
      %p681 = pnand %p679, %p680
      %p682 = pneg %p681
      // Predicated region
      $region9: #{decoder_layer_pallas.1} parent=5 // pred_check
        _
      $region10: #{decoder_layer_pallas.1} parent=5 // pred_check_branch
        %684 = sbr.rel (%p681) target = $region12
      $region11: #{decoder_layer_pallas.1} parent=5 // pred_region
        %s685 = ssub.s32 %s53, 1
        // Predicated region
        $region13: #{decoder_layer_pallas.1} parent=11 // pred_check
          %p686 = pneg %p152
        $region14: #{decoder_layer_pallas.1} parent=11 // pred_check_branch
          %688 = sbr.rel (%p686) target = $region16
        $region15: #{decoder_layer_pallas.1} parent=11 // pred_region
          %690 = vsyncadd [#allocation7], 0
          %s691 = sshll.u32 %s3, 4
          %s692 = int_to_ptr.hbm [resolvable:$true] %s691
          %s693 = sshll.u32 [#allocation6], 4
          %s694 = int_to_ptr.vmem [resolvable:$true] %s693
          %699 = dma.hbm_to_vmem [thread:$0]  %s692, 512, %s694, [#allocation7], 128, 128, 8
        $region16: #{decoder_layer_pallas.1} parent=11 // pred_fallthru
          _
        // Predicated region
        $region17: #{decoder_layer_pallas.1} parent=11 // pred_check
          %p700 = pneg %p173
        $region18: #{decoder_layer_pallas.1} parent=11 // pred_check_branch
          %702 = sbr.rel (%p700) target = $region20
        $region19: #{decoder_layer_pallas.1} parent=11 // pred_region
          %704 = vsyncadd [#allocation7], 0
          %s706 = sshll.u32 %s4, 4
          %s707 = int_to_ptr.hbm [resolvable:$true] %s706
          %s708 = sshll.u32 [#allocation8], 4
          %s709 = int_to_ptr.vmem [resolvable:$true] %s708
          %711 = dma.hbm_to_vmem [thread:$0]  %s707, 16, %s709, [#allocation7]
        $region20: #{decoder_layer_pallas.1} parent=11 // pred_fallthru
          _
        // Predicated region
        $region21: #{decoder_layer_pallas.1} parent=11 // pred_check
          %p712 = pneg %p194
        $region22: #{decoder_layer_pallas.1} parent=11 // pred_check_branch
          %714 = sbr.rel (%p712) target = $region24
        $region23: #{decoder_layer_pallas.1} parent=11 // pred_region
          %716 = vsyncadd [#allocation10], 0
          %s717 = sshll.u32 %s5, 4
          %s718 = int_to_ptr.hbm [resolvable:$true] %s717
          %s719 = sshll.u32 [#allocation9], 4
          %s720 = int_to_ptr.vmem [resolvable:$true] %s719
          %725 = dma.hbm_to_vmem [thread:$0]  %s718, 512, %s720, [#allocation10], 128, 128, 8
        $region24: #{decoder_layer_pallas.1} parent=11 // pred_fallthru
          _
        // Predicated region
        $region25: #{decoder_layer_pallas.1} parent=11 // pred_check
          %p726 = pneg %p215
        $region26: #{decoder_layer_pallas.1} parent=11 // pred_check_branch
          %728 = sbr.rel (%p726) target = $region28
        $region27: #{decoder_layer_pallas.1} parent=11 // pred_region
          %730 = vsyncadd [#allocation10], 0
          %s732 = sshll.u32 %s6, 4
          %s733 = int_to_ptr.hbm [resolvable:$true] %s732
          %s734 = sshll.u32 [#allocation11], 4
          %s735 = int_to_ptr.vmem [resolvable:$true] %s734
          %737 = dma.hbm_to_vmem [thread:$0]  %s733, 16, %s735, [#allocation10]
        $region28: #{decoder_layer_pallas.1} parent=11 // pred_fallthru
          _
        // Predicated region
        $region29: #{decoder_layer_pallas.1} parent=11 // pred_check
          %p738 = pneg %p236
        $region30: #{decoder_layer_pallas.1} parent=11 // pred_check_branch
          %740 = sbr.rel (%p738) target = $region32
        $region31: #{decoder_layer_pallas.1} parent=11 // pred_region
          %742 = vsyncadd [#allocation13], 0
          %s743 = sshll.u32 %s7, 4
          %s744 = int_to_ptr.hbm [resolvable:$true] %s743
          %s745 = sshll.u32 [#allocation12], 4
          %s746 = int_to_ptr.vmem [resolvable:$true] %s745
          %751 = dma.hbm_to_vmem [thread:$0]  %s744, 512, %s746, [#allocation13], 128, 128, 8
        $region32: #{decoder_layer_pallas.1} parent=11 // pred_fallthru
          _
        // Predicated region
        $region33: #{decoder_layer_pallas.1} parent=11 // pred_check
          %p752 = pneg %p257
        $region34: #{decoder_layer_pallas.1} parent=11 // pred_check_branch
          %754 = sbr.rel (%p752) target = $region36
        $region35: #{decoder_layer_pallas.1} parent=11 // pred_region
          %756 = vsyncadd [#allocation13], 0
          %s758 = sshll.u32 %s8, 4
          %s759 = int_to_ptr.hbm [resolvable:$true] %s758
          %s760 = sshll.u32 [#allocation14], 4
          %s761 = int_to_ptr.vmem [resolvable:$true] %s760
          %763 = dma.hbm_to_vmem [thread:$0]  %s759, 16, %s761, [#allocation13]
        $region36: #{decoder_layer_pallas.1} parent=11 // pred_fallthru
          _
        // Predicated region
        $region37: #{decoder_layer_pallas.1} parent=11 // pred_check
          %p764 = pneg %p278
        $region38: #{decoder_layer_pallas.1} parent=11 // pred_check_branch
          %766 = sbr.rel (%p764) target = $region40
        $region39: #{decoder_layer_pallas.1} parent=11 // pred_region
          %768 = vsyncadd [#allocation16], 0
          %s769 = sshll.u32 %s9, 4
          %s770 = int_to_ptr.hbm [resolvable:$true] %s769
          %s771 = sshll.u32 [#allocation15], 4
          %s772 = int_to_ptr.vmem [resolvable:$true] %s771
          %777 = dma.hbm_to_vmem [thread:$0]  %s770, 512, %s772, [#allocation16], 128, 128, 8
        $region40: #{decoder_layer_pallas.1} parent=11 // pred_fallthru
          _
        // Predicated region
        $region41: #{decoder_layer_pallas.1} parent=11 // pred_check
          %p778 = pneg %p299
        $region42: #{decoder_layer_pallas.1} parent=11 // pred_check_branch
          %780 = sbr.rel (%p778) target = $region44
        $region43: #{decoder_layer_pallas.1} parent=11 // pred_region
          %782 = vsyncadd [#allocation16], 0
          %s784 = sshll.u32 %s10, 4
          %s785 = int_to_ptr.hbm [resolvable:$true] %s784
          %s786 = sshll.u32 [#allocation17], 4
          %s787 = int_to_ptr.vmem [resolvable:$true] %s786
          %789 = dma.hbm_to_vmem [thread:$0]  %s785, 16, %s787, [#allocation16]
        $region44: #{decoder_layer_pallas.1} parent=11 // pred_fallthru
          _
        // Predicated region
        $region45: #{decoder_layer_pallas.1} parent=11 // pred_check
          %p790 = pneg %p320
        $region46: #{decoder_layer_pallas.1} parent=11 // pred_check_branch
          %792 = sbr.rel (%p790) target = $region48
        $region47: #{decoder_layer_pallas.1} parent=11 // pred_region
          %794 = vsyncadd [#allocation19], 0
          %s795 = sshll.u32 %s11, 4
          %s796 = int_to_ptr.hbm [resolvable:$true] %s795
          %s797 = sshll.u32 [#allocation18], 4
          %s798 = int_to_ptr.vmem [resolvable:$true] %s797
          %803 = dma.hbm_to_vmem [thread:$0]  %s796, 512, %s798, [#allocation19], 128, 128, 8
        $region48: #{decoder_layer_pallas.1} parent=11 // pred_fallthru
          _
        // Predicated region
        $region49: #{decoder_layer_pallas.1} parent=11 // pred_check
          %p804 = pneg %p341
        $region50: #{decoder_layer_pallas.1} parent=11 // pred_check_branch
          %806 = sbr.rel (%p804) target = $region52
        $region51: #{decoder_layer_pallas.1} parent=11 // pred_region
          %808 = vsyncadd [#allocation19], 0
          %s810 = sshll.u32 %s12, 4
          %s811 = int_to_ptr.hbm [resolvable:$true] %s810
          %s812 = sshll.u32 [#allocation20], 4
          %s813 = int_to_ptr.vmem [resolvable:$true] %s812
          %815 = dma.hbm_to_vmem [thread:$0]  %s811, 16, %s813, [#allocation19]
        $region52: #{decoder_layer_pallas.1} parent=11 // pred_fallthru
          _
        // Predicated region
        $region53: #{decoder_layer_pallas.1} parent=11 // pred_check
          %p816 = pneg %p362
        $region54: #{decoder_layer_pallas.1} parent=11 // pred_check_branch
          %818 = sbr.rel (%p816) target = $region56
        $region55: #{decoder_layer_pallas.1} parent=11 // pred_region
          %820 = vsyncadd [#allocation22], 0
          %s821 = sshll.u32 %s13, 4
          %s822 = int_to_ptr.hbm [resolvable:$true] %s821
          %s823 = sshll.u32 [#allocation21], 4
          %s824 = int_to_ptr.vmem [resolvable:$true] %s823
          %829 = dma.hbm_to_vmem [thread:$0]  %s822, 512, %s824, [#allocation22], 128, 128, 8
        $region56: #{decoder_layer_pallas.1} parent=11 // pred_fallthru
          _
        // Predicated region
        $region57: #{decoder_layer_pallas.1} parent=11 // pred_check
          %p830 = pneg %p383
        $region58: #{decoder_layer_pallas.1} parent=11 // pred_check_branch
          %832 = sbr.rel (%p830) target = $region60
        $region59: #{decoder_layer_pallas.1} parent=11 // pred_region
          %834 = vsyncadd [#allocation22], 0
          %s836 = sshll.u32 %s14, 4
          %s837 = int_to_ptr.hbm [resolvable:$true] %s836
          %s838 = sshll.u32 [#allocation23], 4
          %s839 = int_to_ptr.vmem [resolvable:$true] %s838
          %841 = dma.hbm_to_vmem [thread:$0]  %s837, 16, %s839, [#allocation22]
        $region60: #{decoder_layer_pallas.1} parent=11 // pred_fallthru
          _
        // Predicated region
        $region61: #{decoder_layer_pallas.1} parent=11 // pred_check
          %p842 = pneg %p404
        $region62: #{decoder_layer_pallas.1} parent=11 // pred_check_branch
          %844 = sbr.rel (%p842) target = $region64
        $region63: #{decoder_layer_pallas.1} parent=11 // pred_region
          _
        $region64: #{decoder_layer_pallas.1} parent=11 // pred_fallthru
          _
        // Predicated region
        $region65: #{decoder_layer_pallas.1} parent=11 // pred_check
          %p845 = pneg %p425
        $region66: #{decoder_layer_pallas.1} parent=11 // pred_check_branch
          %847 = sbr.rel (%p845) target = $region68
        $region67: #{decoder_layer_pallas.1} parent=11 // pred_region
          %849 = vsyncadd [#allocation25], 0
          %s851 = sshll.u32 %s16, 4
          %s852 = int_to_ptr.hbm [resolvable:$true] %s851
          %s853 = sshll.u32 [#allocation24], 4
          %s854 = int_to_ptr.vmem [resolvable:$true] %s853
          %856 = dma.hbm_to_vmem [thread:$0]  %s852, 16, %s854, [#allocation25]
        $region68: #{decoder_layer_pallas.1} parent=11 // pred_fallthru
          _
        // Predicated region
        $region69: #{decoder_layer_pallas.1} parent=11 // pred_check
          %p857 = pneg %p446
        $region70: #{decoder_layer_pallas.1} parent=11 // pred_check_branch
          %859 = sbr.rel (%p857) target = $region72
        $region71: #{decoder_layer_pallas.1} parent=11 // pred_region
          _
        $region72: #{decoder_layer_pallas.1} parent=11 // pred_fallthru
          _
        // Predicated region
        $region73: #{decoder_layer_pallas.1} parent=11 // pred_check
          %p860 = pneg %p467
        $region74: #{decoder_layer_pallas.1} parent=11 // pred_check_branch
          %862 = sbr.rel (%p860) target = $region76
        $region75: #{decoder_layer_pallas.1} parent=11 // pred_region
          %864 = vsyncadd [#allocation25], 0
          %s865 = sshll.u32 %s18, 4
          %s866 = int_to_ptr.hbm [resolvable:$true] %s865
          %s867 = sshll.u32 [#allocation26], 4
          %s868 = int_to_ptr.vmem [resolvable:$true] %s867
          %873 = dma.hbm_to_vmem [thread:$0]  %s866, 48, %s868, [#allocation25], 16, 16, 1
        $region76: #{decoder_layer_pallas.1} parent=11 // pred_fallthru
          _
        // Predicated region
        $region77: #{decoder_layer_pallas.1} parent=11 // pred_check
          %p874 = pneg %p488
        $region78: #{decoder_layer_pallas.1} parent=11 // pred_check_branch
          %876 = sbr.rel (%p874) target = $region80
        $region79: #{decoder_layer_pallas.1} parent=11 // pred_region
          %878 = vsyncadd [#allocation28], 0
          %s879 = sshll.u32 %s19, 4
          %s880 = int_to_ptr.hbm [resolvable:$true] %s879
          %s881 = sshll.u32 [#allocation27], 4
          %s882 = int_to_ptr.vmem [resolvable:$true] %s881
          %887 = dma.hbm_to_vmem [thread:$0]  %s880, 48, %s882, [#allocation28], 16, 16, 1
        $region80: #{decoder_layer_pallas.1} parent=11 // pred_fallthru
          _
        // Predicated region
        $region81: #{decoder_layer_pallas.1} parent=11 // pred_check
          %p888 = pneg %p509
        $region82: #{decoder_layer_pallas.1} parent=11 // pred_check_branch
          %890 = sbr.rel (%p888) target = $region84
        $region83: #{decoder_layer_pallas.1} parent=11 // pred_region
          %892 = vsyncadd [#allocation28], 0
          %s893 = sshll.u32 %s20, 4
          %s894 = int_to_ptr.hbm [resolvable:$true] %s893
          %s895 = sshll.u32 [#allocation29], 4
          %s896 = int_to_ptr.vmem [resolvable:$true] %s895
          %901 = dma.hbm_to_vmem [thread:$0]  %s894, 48, %s896, [#allocation28], 16, 16, 1
        $region84: #{decoder_layer_pallas.1} parent=11 // pred_fallthru
          _
        // Predicated region
        $region85: #{decoder_layer_pallas.1} parent=11 // pred_check
          %p902 = pneg %p530
        $region86: #{decoder_layer_pallas.1} parent=11 // pred_check_branch
          %904 = sbr.rel (%p902) target = $region88
        $region87: #{decoder_layer_pallas.1} parent=11 // pred_region
          %906 = vsyncadd [#allocation31], 0
          %s907 = sshll.u32 %s21, 4
          %s908 = int_to_ptr.hbm [resolvable:$true] %s907
          %s909 = sshll.u32 [#allocation30], 4
          %s910 = int_to_ptr.vmem [resolvable:$true] %s909
          %915 = dma.hbm_to_vmem [thread:$0]  %s908, 1536, %s910, [#allocation31], 128, 128, 8
        $region88: #{decoder_layer_pallas.1} parent=11 // pred_fallthru
          _
        // Predicated region
        $region89: #{decoder_layer_pallas.1} parent=11 // pred_check
          %p916 = pneg %p551
        $region90: #{decoder_layer_pallas.1} parent=11 // pred_check_branch
          %918 = sbr.rel (%p916) target = $region92
        $region91: #{decoder_layer_pallas.1} parent=11 // pred_region
          _
        $region92: #{decoder_layer_pallas.1} parent=11 // pred_fallthru
          _
        // Predicated region
        $region93: #{decoder_layer_pallas.1} parent=11 // pred_check
          %p919 = pneg %p572
        $region94: #{decoder_layer_pallas.1} parent=11 // pred_check_branch
          %921 = sbr.rel (%p919) target = $region96
        $region95: #{decoder_layer_pallas.1} parent=11 // pred_region
          %923 = vsyncadd [#allocation31], 0
          %s924 = sshll.u32 %s23, 4
          %s925 = int_to_ptr.hbm [resolvable:$true] %s924
          %s926 = sshll.u32 [#allocation32], 4
          %s927 = int_to_ptr.vmem [resolvable:$true] %s926
          %932 = dma.hbm_to_vmem [thread:$0]  %s925, 48, %s927, [#allocation31], 16, 16, 1
        $region96: #{decoder_layer_pallas.1} parent=11 // pred_fallthru
          _
        // Predicated region
        $region97: #{decoder_layer_pallas.1} parent=11 // pred_check
          %p933 = pneg %p593
        $region98: #{decoder_layer_pallas.1} parent=11 // pred_check_branch
          %935 = sbr.rel (%p933) target = $region100
        $region99: #{decoder_layer_pallas.1} parent=11 // pred_region
          %937 = vsyncadd [#allocation34], 0
          %s938 = sshll.u32 %s24, 4
          %s939 = int_to_ptr.hbm [resolvable:$true] %s938
          %s940 = sshll.u32 [#allocation33], 4
          %s941 = int_to_ptr.vmem [resolvable:$true] %s940
          %946 = dma.hbm_to_vmem [thread:$0]  %s939, 48, %s941, [#allocation34], 16, 16, 1
        $region100: #{decoder_layer_pallas.1} parent=11 // pred_fallthru
          _
      $region12: #{decoder_layer_pallas.1} parent=5 // pred_fallthru
        _
      %p947 = scmp.lt.s32.totalorder %s53, 2
      // Predicated region
      $region101: #{decoder_layer_pallas.1} parent=5 // pred_check
        %p948 = pneg %p947
      $region102: #{decoder_layer_pallas.1} parent=5 // pred_check_branch
        %950 = sbr.rel (%p948) target = $region104
      $region103: #{decoder_layer_pallas.1} parent=5 // pred_region
        // Predicated region
        $region105: #{decoder_layer_pallas.1} parent=103 // pred_check
          %p951 = pneg %p73
        $region106: #{decoder_layer_pallas.1} parent=103 // pred_check_branch
          %953 = sbr.rel (%p951) target = $region108
        $region107: #{decoder_layer_pallas.1} parent=103 // pred_region
          %p954 = scmp.lt.s32.totalorder %s53, 1
          %s955 = scalar_select %p954, %s53, 1
          %s956 = smul.addr %s955, 8
          %s957 = scalar_lea.vmem %s0, %s956
        $region108: #{decoder_layer_pallas.1} parent=103 // pred_fallthru
          _
        // Predicated region
        $region109: #{decoder_layer_pallas.1} parent=103 // pred_check
          %p958 = pneg %p99
        $region110: #{decoder_layer_pallas.1} parent=103 // pred_check_branch
          %960 = sbr.rel (%p958) target = $region112
        $region111: #{decoder_layer_pallas.1} parent=103 // pred_region
          %s961 = sand.u32 %s89, 1
          %s962 = scalar_lea.sflag [#allocation4], %s961
          %s963 = sand.u32 %s89, 1
          %s964 = smul.addr %s963, 16
          %s965 = scalar_lea.vmem [#allocation3], %s964
          %967 = vsyncadd %s962, 0
          %s968 = smul.addr %s53, 2
          %s969 = smul.addr %s968, 8
          %s970 = scalar_lea.hbm %s1, %s969
          %s971 = sshll.u32 %s970, 4
          %s972 = int_to_ptr.hbm [resolvable:$true] %s971
          %s973 = sshll.u32 %s965, 4
          %s974 = int_to_ptr.vmem [resolvable:$true] %s973
          %979 = dma.hbm_to_vmem [thread:$0]  %s972, 256, %s974, %s962, 128, 128, 8
        $region112: #{decoder_layer_pallas.1} parent=103 // pred_fallthru
          _
        // Predicated region
        $region113: #{decoder_layer_pallas.1} parent=103 // pred_check
          %p980 = pneg %p125
        $region114: #{decoder_layer_pallas.1} parent=103 // pred_check_branch
          %982 = sbr.rel (%p980) target = $region116
        $region115: #{decoder_layer_pallas.1} parent=103 // pred_region
          %p983 = scmp.lt.s32.totalorder %s53, 1
          %s984 = scalar_select %p983, %s53, 1
          %s985 = scalar_lea.vmem %s2, %s984
        $region116: #{decoder_layer_pallas.1} parent=103 // pred_fallthru
          _
      $region104: #{decoder_layer_pallas.1} parent=5 // pred_fallthru
        _
      %p986 = scmp.le.s32.totalorder 1, %s53
      %p987 = scmp.lt.s32.totalorder %s53, 3
      %p988 = pnand %p986, %p987
      %p989 = pneg %p988
      // Predicated region
      $region117: #{decoder_layer_pallas.1} parent=5 // pred_check
        _
      $region118: #{decoder_layer_pallas.1} parent=5 // pred_check_branch
        %991 = sbr.rel (%p988) target = $region120
      $region119: #{decoder_layer_pallas.1} parent=5 // pred_region
        %s992 = ssub.s32 %s53, 1
        %s993 = sand.u32 %s92, 1
        %s994 = scalar_lea.sflag [#allocation4], %s993
        %s995 = sand.u32 %s92, 1
        %s996 = smul.addr %s995, 16
        %s997 = scalar_lea.vmem [#allocation3], %s996
        // Predicated region
        $region121: #{decoder_layer_pallas.1} parent=119 // pred_check
          %p998 = pneg %p105
        $region122: #{decoder_layer_pallas.1} parent=119 // pred_check_branch
          %1000 = sbr.rel (%p998) target = $region124
        $region123: #{decoder_layer_pallas.1} parent=119 // pred_region
          %1002 = dma.done %s994, 256
        $region124: #{decoder_layer_pallas.1} parent=119 // pred_fallthru
          _
        // Predicated region
        $region125: #{decoder_layer_pallas.1} parent=119 // pred_check
          %p1003 = pneg %p152
        $region126: #{decoder_layer_pallas.1} parent=119 // pred_check_branch
          %1005 = sbr.rel (%p1003) target = $region128
        $region127: #{decoder_layer_pallas.1} parent=119 // pred_region
          %1007 = dma.done [#allocation7], 512
        $region128: #{decoder_layer_pallas.1} parent=119 // pred_fallthru
          _
        // Predicated region
        $region129: #{decoder_layer_pallas.1} parent=119 // pred_check
          %p1008 = pneg %p173
        $region130: #{decoder_layer_pallas.1} parent=119 // pred_check_branch
          %1010 = sbr.rel (%p1008) target = $region132
        $region131: #{decoder_layer_pallas.1} parent=119 // pred_region
          %1012 = dma.done [#allocation7], 16
        $region132: #{decoder_layer_pallas.1} parent=119 // pred_fallthru
          _
        // Predicated region
        $region133: #{decoder_layer_pallas.1} parent=119 // pred_check
          %p1013 = pneg %p194
        $region134: #{decoder_layer_pallas.1} parent=119 // pred_check_branch
          %1015 = sbr.rel (%p1013) target = $region136
        $region135: #{decoder_layer_pallas.1} parent=119 // pred_region
          %1017 = dma.done [#allocation10], 512
        $region136: #{decoder_layer_pallas.1} parent=119 // pred_fallthru
          _
        // Predicated region
        $region137: #{decoder_layer_pallas.1} parent=119 // pred_check
          %p1018 = pneg %p215
        $region138: #{decoder_layer_pallas.1} parent=119 // pred_check_branch
          %1020 = sbr.rel (%p1018) target = $region140
        $region139: #{decoder_layer_pallas.1} parent=119 // pred_region
          %1022 = dma.done [#allocation10], 16
        $region140: #{decoder_layer_pallas.1} parent=119 // pred_fallthru
          _
        // Predicated region
        $region141: #{decoder_layer_pallas.1} parent=119 // pred_check
          %p1023 = pneg %p236
        $region142: #{decoder_layer_pallas.1} parent=119 // pred_check_branch
          %1025 = sbr.rel (%p1023) target = $region144
        $region143: #{decoder_layer_pallas.1} parent=119 // pred_region
          %1027 = dma.done [#allocation13], 512
        $region144: #{decoder_layer_pallas.1} parent=119 // pred_fallthru
          _
        // Predicated region
        $region145: #{decoder_layer_pallas.1} parent=119 // pred_check
          %p1028 = pneg %p257
        $region146: #{decoder_layer_pallas.1} parent=119 // pred_check_branch
          %1030 = sbr.rel (%p1028) target = $region148
        $region147: #{decoder_layer_pallas.1} parent=119 // pred_region
          %1032 = dma.done [#allocation13], 16
        $region148: #{decoder_layer_pallas.1} parent=119 // pred_fallthru
          _
        // Predicated region
        $region149: #{decoder_layer_pallas.1} parent=119 // pred_check
          %p1033 = pneg %p278
        $region150: #{decoder_layer_pallas.1} parent=119 // pred_check_branch
          %1035 = sbr.rel (%p1033) target = $region152
        $region151: #{decoder_layer_pallas.1} parent=119 // pred_region
          %1037 = dma.done [#allocation16], 512
        $region152: #{decoder_layer_pallas.1} parent=119 // pred_fallthru
          _
        // Predicated region
        $region153: #{decoder_layer_pallas.1} parent=119 // pred_check
          %p1038 = pneg %p299
        $region154: #{decoder_layer_pallas.1} parent=119 // pred_check_branch
          %1040 = sbr.rel (%p1038) target = $region156
        $region155: #{decoder_layer_pallas.1} parent=119 // pred_region
          %1042 = dma.done [#allocation16], 16
        $region156: #{decoder_layer_pallas.1} parent=119 // pred_fallthru
          _
        // Predicated region
        $region157: #{decoder_layer_pallas.1} parent=119 // pred_check
          %p1043 = pneg %p320
        $region158: #{decoder_layer_pallas.1} parent=119 // pred_check_branch
          %1045 = sbr.rel (%p1043) target = $region160
        $region159: #{decoder_layer_pallas.1} parent=119 // pred_region
          %1047 = dma.done [#allocation19], 512
        $region160: #{decoder_layer_pallas.1} parent=119 // pred_fallthru
          _
        // Predicated region
        $region161: #{decoder_layer_pallas.1} parent=119 // pred_check
          %p1048 = pneg %p341
        $region162: #{decoder_layer_pallas.1} parent=119 // pred_check_branch
          %1050 = sbr.rel (%p1048) target = $region164
        $region163: #{decoder_layer_pallas.1} parent=119 // pred_region
          %1052 = dma.done [#allocation19], 16
        $region164: #{decoder_layer_pallas.1} parent=119 // pred_fallthru
          _
        // Predicated region
        $region165: #{decoder_layer_pallas.1} parent=119 // pred_check
          %p1053 = pneg %p362
        $region166: #{decoder_layer_pallas.1} parent=119 // pred_check_branch
          %1055 = sbr.rel (%p1053) target = $region168
        $region167: #{decoder_layer_pallas.1} parent=119 // pred_region
          %1057 = dma.done [#allocation22], 512
        $region168: #{decoder_layer_pallas.1} parent=119 // pred_fallthru
          _
        // Predicated region
        $region169: #{decoder_layer_pallas.1} parent=119 // pred_check
          %p1058 = pneg %p383
        $region170: #{decoder_layer_pallas.1} parent=119 // pred_check_branch
          %1060 = sbr.rel (%p1058) target = $region172
        $region171: #{decoder_layer_pallas.1} parent=119 // pred_region
          %1062 = dma.done [#allocation22], 16
        $region172: #{decoder_layer_pallas.1} parent=119 // pred_fallthru
          _
        // Predicated region
        $region173: #{decoder_layer_pallas.1} parent=119 // pred_check
          %p1063 = pneg %p425
        $region174: #{decoder_layer_pallas.1} parent=119 // pred_check_branch
          %1065 = sbr.rel (%p1063) target = $region176
        $region175: #{decoder_layer_pallas.1} parent=119 // pred_region
          %1067 = dma.done [#allocation25], 16
        $region176: #{decoder_layer_pallas.1} parent=119 // pred_fallthru
          _
        // Predicated region
        $region177: #{decoder_layer_pallas.1} parent=119 // pred_check
          %p1068 = pneg %p467
        $region178: #{decoder_layer_pallas.1} parent=119 // pred_check_branch
          %1070 = sbr.rel (%p1068) target = $region180
        $region179: #{decoder_layer_pallas.1} parent=119 // pred_region
          %1072 = dma.done [#allocation25], 48
        $region180: #{decoder_layer_pallas.1} parent=119 // pred_fallthru
          _
        // Predicated region
        $region181: #{decoder_layer_pallas.1} parent=119 // pred_check
          %p1073 = pneg %p488
        $region182: #{decoder_layer_pallas.1} parent=119 // pred_check_branch
          %1075 = sbr.rel (%p1073) target = $region184
        $region183: #{decoder_layer_pallas.1} parent=119 // pred_region
          %1077 = dma.done [#allocation28], 48
        $region184: #{decoder_layer_pallas.1} parent=119 // pred_fallthru
          _
        // Predicated region
        $region185: #{decoder_layer_pallas.1} parent=119 // pred_check
          %p1078 = pneg %p509
        $region186: #{decoder_layer_pallas.1} parent=119 // pred_check_branch
          %1080 = sbr.rel (%p1078) target = $region188
        $region187: #{decoder_layer_pallas.1} parent=119 // pred_region
          %1082 = dma.done [#allocation28], 48
        $region188: #{decoder_layer_pallas.1} parent=119 // pred_fallthru
          _
        // Predicated region
        $region189: #{decoder_layer_pallas.1} parent=119 // pred_check
          %p1083 = pneg %p530
        $region190: #{decoder_layer_pallas.1} parent=119 // pred_check_branch
          %1085 = sbr.rel (%p1083) target = $region192
        $region191: #{decoder_layer_pallas.1} parent=119 // pred_region
          %1087 = dma.done [#allocation31], 1536
        $region192: #{decoder_layer_pallas.1} parent=119 // pred_fallthru
          _
        // Predicated region
        $region193: #{decoder_layer_pallas.1} parent=119 // pred_check
          %p1088 = pneg %p572
        $region194: #{decoder_layer_pallas.1} parent=119 // pred_check_branch
          %1090 = sbr.rel (%p1088) target = $region196
        $region195: #{decoder_layer_pallas.1} parent=119 // pred_region
          %1092 = dma.done [#allocation31], 48
        $region196: #{decoder_layer_pallas.1} parent=119 // pred_fallthru
          _
        // Predicated region
        $region197: #{decoder_layer_pallas.1} parent=119 // pred_check
          %p1093 = pneg %p593
        $region198: #{decoder_layer_pallas.1} parent=119 // pred_check_branch
          %1095 = sbr.rel (%p1093) target = $region200
        $region199: #{decoder_layer_pallas.1} parent=119 // pred_region
          %1097 = dma.done [#allocation34], 48
        $region200: #{decoder_layer_pallas.1} parent=119 // pred_fallthru
          _
        %p1098 = scmp.lt.s32.totalorder %s58, 1
        %s1099 = scalar_select %p1098, %s58, 1
        %s1100 = smul.addr %s1099, 8
        %s1101 = scalar_lea.vmem %s0, %s1100
        %p1102 = pneg %p79
        %p1103 = pneg %p76
        %s1104 = sand.u32 %s92, 1
        %s1105 = scalar_lea.sflag [#allocation4], %s1104
        %s1106 = sand.u32 %s92, 1
        %s1107 = smul.addr %s1106, 16
        %s1108 = scalar_lea.vmem [#allocation3], %s1107
        %p1109 = pneg %p105
        %p1110 = pneg %p102
        %p1111 = scmp.lt.s32.totalorder %s58, 1
        %s1112 = scalar_select %p1111, %s58, 1
        %s1113 = scalar_lea.vmem %s2, %s1112
        %p1114 = pneg %p131
        %p1115 = pneg %p128
        %p1116 = pneg %p152
        %p1117 = pneg %p149
        %p1118 = pneg %p173
        %p1119 = pneg %p170
        %p1120 = pneg %p194
        %p1121 = pneg %p191
        %p1122 = pneg %p215
        %p1123 = pneg %p212
        %p1124 = pneg %p236
        %p1125 = pneg %p233
        %p1126 = pneg %p257
        %p1127 = pneg %p254
        %p1128 = pneg %p278
        %p1129 = pneg %p275
        %p1130 = pneg %p299
        %p1131 = pneg %p296
        %p1132 = pneg %p320
        %p1133 = pneg %p317
        %p1134 = pneg %p341
        %p1135 = pneg %p338
        %p1136 = pneg %p362
        %p1137 = pneg %p359
        %p1138 = pneg %p383
        %p1139 = pneg %p380
        %p1140 = pneg %p404
        %p1141 = pneg %p401
        %p1142 = pneg %p425
        %p1143 = pneg %p422
        %p1144 = pneg %p446
        %p1145 = pneg %p443
        %p1146 = pneg %p467
        %p1147 = pneg %p464
        %p1148 = pneg %p488
        %p1149 = pneg %p485
        %p1150 = pneg %p509
        %p1151 = pneg %p506
        %p1152 = pneg %p530
        %p1153 = pneg %p527
        %p1154 = pneg %p551
        %p1155 = pneg %p548
        %p1156 = pneg %p572
        %p1157 = pneg %p569
        %p1158 = pneg %p593
        %p1159 = pneg %p590
        %p1160 = pneg %p619
        %p1161 = pneg %p616
        %s1162 = sand.u32 %s606, 1
        %s1163 = scalar_lea.sflag [#allocation5], %s1162
        %s1164 = sand.u32 %s606, 1
        %s1165 = smul.addr %s1164, 8
        %s1166 = scalar_lea.vmem [#allocation35], %s1165
        %p1167 = pneg %p645
        %p1168 = pneg %p642
        %s1169 = sand.u32 %s58, 1
        %s1170 = scalar_lea.sflag [#allocation37], %s1169
        %s1171 = sand.u32 %s632, 1
        %s1172 = smul.addr %s1171, 32
        %s1173 = scalar_lea.vmem [#allocation36], %s1172
        %p1174 = pneg %p671
        %p1175 = pneg %p668
        %s1176 = sand.u32 %s58, 1
        %s1177 = scalar_lea.sflag [#allocation37], %s1176
        %s1178 = sand.u32 %s658, 1
        %s1179 = smul.addr %s1178, 32
        %s1180 = scalar_lea.vmem [#allocation38], %s1179
        %p1181 = scmp.lt.s32.totalorder %s58, 1
        %s1182 = scalar_select %p1181, %s58, 1
        %s1183 = smul.addr %s1182, 8
        %s1184 = scalar_lea.vmem %s0, %s1183
        %p1185 = scmp.lt.s32.totalorder %s58, 1
        %s1186 = scalar_select %p1185, %s58, 1
        %s1187 = scalar_lea.vmem %s2, %s1186
        %v1189 = vld [vmem:[%s1187] sm:$0x1]
        %v1190 = vsub.f32 0.0, %v1189
        %v1191 = vmul.f32 %v1190, 1.442695
        %v1192 = vpow.pop %v1191
        %v1193 = vadd.f32 %v1192, 1.0
        %v1194 = vrcp.pop %v1193
        %v1195 = vmul.f32 %v1193, %v1194
        %v1196 = vsub.f32 1.0, %v1195
        %v1197 = vmul.f32 %v1194, %v1196
        %v1198 = vadd.f32 %v1194, %v1197
        %vm1199 = vweird.f32 %v1193
        %vm1200 = vweird.f32 %v1194
        %vm1201 = vmor %vm1199, %vm1200
        %v1202 = vsel %vm1201, %v1194, %v1198
        %v1203 = vand.u32 2147483647, %v1193
        %vm1204 = vcmp.eq.f32.partialorder %v1203, 8.507059e+37
        %v1205 = vand.u32 %v1193, 2147483648
        %v1206 = vor.u32 1.1754944e-38, %v1205
        %v1207 = vsel %vm1204, %v1206, %v1202
        %v1208 = vmul.f32 %v1189, %v1207
        %v1209 = vld [vmem:[%s1184] sm:$0xff]
        %v1210 = vld [vmem:[%s997] sm:$0xff]
        %v1211 = vld [vmem:[%s997 + $0x8] sm:$0xff]
        %v1212 = vld [vmem:[#allocation6] sm:$0xff]
        %v1213 = vld [vmem:[#allocation6 + $0x8] sm:$0xff]
        %v1214 = vld [vmem:[#allocation6 + $0x10] sm:$0xff]
        %v1215 = vld [vmem:[#allocation6 + $0x18] sm:$0xff]
        %v1216 = vld [vmem:[#allocation8] sm:$0x1]
        %v1217 = vpack.c.bf16 %v1209, %v1209
        %v1218 = vpack.c.bf16 %v1213, %v1212
        %v1219 = vpack.c.bf16 %v1215, %v1214
        %v1221 = vperm.slane %v1216, 0
        %vm1223 = vcmask 261120
        %v1225 = vsel %vm1223, %v1217, 0
        %1227 = vmatpush.bf16.msra.mxu0 0
        %1228 = vmatpush.bf16.msra.mxu0 0
        %1229 = vmatpush.bf16.msra.mxu0 0
        %1230 = vmatpush.bf16.msra.mxu0 0
        %1231 = vmatpush.bf16.msra.mxu0 0
        %1232 = vmatpush.bf16.msra.mxu0 0
        %1233 = vmatpush.bf16.msra.mxu0 %v1219
        %1234 = vmatpush.bf16.msra.mxu0 %v1218
        %1235 = vmatmul.bf16.gmra.mxu0 %v1225
        %v1236 = vpop.f32.mrf.mxu0
        %v1237 = vadd.f32 %v1221, %v1236
        %v1238 = vpop.f32.mrf.mxu0
        %1239 = vdwg.mxu0
        %v1240 = vpack.c.bf16 %v1237, %v1237
        %1242 = vrot.lane.b32.xlu0 %v1240, 96
        %v1243 = vpop.permute.xlu0 %1242
        %vm1244 = vcmask 64512
        %v1246 = vsel %vm1244, %v1240, 0
        %v1249 = vsel %vm1244, %v1243, 0
        %1251 = vmatpush.bf16.xpose.msra.mxu0 0
        %1252 = vmatpush.bf16.xpose.msra.mxu0 0
        %1253 = vmatpush.bf16.xpose.msra.mxu0 0
        %1254 = vmatpush.bf16.xpose.msra.mxu0 0
        %1255 = vmatpush.bf16.xpose.msra.mxu0 0
        %1256 = vmatpush.bf16.xpose.msra.mxu0 0
        %1257 = vmatpush.bf16.xpose.msra.mxu0 0
        %1258 = vmatpush.bf16.xpose.msra.mxu0 %v1249
        %1259 = vmatmul.bf16.gmra.mxu0 %v1246
        %v1260 = vpop.f32.mrf.mxu0
        %v1261 = vadd.f32 0.0, %v1260
        %v1262 = vpop.f32.mrf.mxu0
        %1263 = vdwg.mxu0
        %v1264 = vmul.f32 %v1261, 0.35355338
        %v1265 = vsel %vm1244, %v1264, -inf
        %1266 = vmax.xlane.f32.xlu0 %v1265
        %v1267 = vpop.xlane.xlu0 %1266
        %v1268 = vsub.f32 %v1264, %v1267
        %v1269 = vmul.f32 %v1268, 1.442695
        %v1270 = vpow.pop %v1269
        %v1271 = vsel %vm1244, %v1270, 0.0
        %1272 = vadd.xlane.f32.xlu0 %v1271
        %v1273 = vpop.xlane.xlu0 %1272
        %v1274 = vrcp.pop %v1273
        %v1275 = vmul.f32 %v1273, %v1274
        %v1276 = vsub.f32 1.0, %v1275
        %v1277 = vmul.f32 %v1274, %v1276
        %v1278 = vadd.f32 %v1274, %v1277
        %vm1279 = vweird.f32 %v1273
        %vm1280 = vweird.f32 %v1274
        %vm1281 = vmor %vm1279, %vm1280
        %v1282 = vsel %vm1281, %v1274, %v1278
        %v1283 = vand.u32 2147483647, %v1273
        %vm1284 = vcmp.eq.f32.partialorder %v1283, 8.507059e+37
        %v1285 = vand.u32 %v1273, 2147483648
        %v1286 = vor.u32 1.1754944e-38, %v1285
        %v1287 = vsel %vm1284, %v1286, %v1282
        %v1288 = vmul.f32 %v1270, %v1287
        %1289 = vst.msk [vmem:[%s1173] sm:$0xff] %vm1244, %v1288
        %v1290 = vpack.c.bf16 %v1288, %v1288
        %1291 = vrot.lane.b32.xlu0 %v1240, 64
        %v1292 = vpop.permute.xlu0 %1291
        %v1294 = vsel %vm1244, %v1290, 0
        %vm1296 = vcmask 1043456
        %v1298 = vsel %vm1296, %v1292, 0
        %1300 = vmatpush.bf16.msra.mxu0 0
        %1301 = vmatpush.bf16.msra.mxu0 0
        %1302 = vmatpush.bf16.msra.mxu0 0
        %1303 = vmatpush.bf16.msra.mxu0 0
        %1304 = vmatpush.bf16.msra.mxu0 0
        %1305 = vmatpush.bf16.msra.mxu0 0
        %1306 = vmatpush.bf16.msra.mxu0 0
        %1307 = vmatpush.bf16.msra.mxu0 %v1298
        %1308 = vmatmul.bf16.gmra.mxu0 %v1294
        %v1309 = vpop.f32.mrf.mxu0
        %v1310 = vadd.f32 0.0, %v1309
        %v1311 = vpop.f32.mrf.mxu0
        %1312 = vdwg.mxu0
        %1313 = vst.msk [vmem:[#allocation2] sm:$0xff] %vm1244, %v1310
        %1314 = vrot.lane.b32.xlu0 %v1240, 120
        %v1315 = vpop.permute.xlu0 %1314
        %1316 = vrot.lane.b32.xlu0 %v1240, 88
        %v1317 = vpop.permute.xlu0 %1316
        %v1319 = vsel %vm1244, %v1315, 0
        %v1322 = vsel %vm1244, %v1317, 0
        %1324 = vmatpush.bf16.xpose.msra.mxu0 0
        %1325 = vmatpush.bf16.xpose.msra.mxu0 0
        %1326 = vmatpush.bf16.xpose.msra.mxu0 0
        %1327 = vmatpush.bf16.xpose.msra.mxu0 0
        %1328 = vmatpush.bf16.xpose.msra.mxu0 0
        %1329 = vmatpush.bf16.xpose.msra.mxu0 0
        %1330 = vmatpush.bf16.xpose.msra.mxu0 0
        %1331 = vmatpush.bf16.xpose.msra.mxu0 %v1322
        %1332 = vmatmul.bf16.gmra.mxu0 %v1319
        %v1333 = vpop.f32.mrf.mxu0
        %v1334 = vadd.f32 0.0, %v1333
        %v1335 = vpop.f32.mrf.mxu0
        %1336 = vdwg.mxu0
        %v1337 = vmul.f32 %v1334, 0.35355338
        %v1338 = vsel %vm1244, %v1337, -inf
        %1339 = vmax.xlane.f32.xlu0 %v1338
        %v1340 = vpop.xlane.xlu0 %1339
        %v1341 = vsub.f32 %v1337, %v1340
        %v1342 = vmul.f32 %v1341, 1.442695
        %v1343 = vpow.pop %v1342
        %v1344 = vsel %vm1244, %v1343, 0.0
        %1345 = vadd.xlane.f32.xlu0 %v1344
        %v1346 = vpop.xlane.xlu0 %1345
        %v1347 = vrcp.pop %v1346
        %v1348 = vmul.f32 %v1346, %v1347
        %v1349 = vsub.f32 1.0, %v1348
        %v1350 = vmul.f32 %v1347, %v1349
        %v1351 = vadd.f32 %v1347, %v1350
        %vm1352 = vweird.f32 %v1346
        %vm1353 = vweird.f32 %v1347
        %vm1354 = vmor %vm1352, %vm1353
        %v1355 = vsel %vm1354, %v1347, %v1351
        %v1356 = vand.u32 2147483647, %v1346
        %vm1357 = vcmp.eq.f32.partialorder %v1356, 8.507059e+37
        %v1358 = vand.u32 %v1346, 2147483648
        %v1359 = vor.u32 1.1754944e-38, %v1358
        %v1360 = vsel %vm1357, %v1359, %v1355
        %v1361 = vmul.f32 %v1343, %v1360
        %s1362 = scalar_lea.vmem %s1173, 8 [#allocation36]
        %1363 = vst.msk [vmem:[%s1362] sm:$0xff] %vm1244, %v1361
        %v1364 = vpack.c.bf16 %v1361, %v1361
        %1365 = vrot.lane.b32.xlu0 %v1240, 56
        %v1366 = vpop.permute.xlu0 %1365
        %v1368 = vsel %vm1244, %v1364, 0
        %v1371 = vsel %vm1296, %v1366, 0
        %1373 = vmatpush.bf16.msra.mxu0 0
        %1374 = vmatpush.bf16.msra.mxu0 0
        %1375 = vmatpush.bf16.msra.mxu0 0
        %1376 = vmatpush.bf16.msra.mxu0 0
        %1377 = vmatpush.bf16.msra.mxu0 0
        %1378 = vmatpush.bf16.msra.mxu0 0
        %1379 = vmatpush.bf16.msra.mxu0 0
        %1380 = vmatpush.bf16.msra.mxu0 %v1371
        %1381 = vmatmul.bf16.gmra.mxu0 %v1368
        %v1382 = vpop.f32.mrf.mxu0
        %v1383 = vadd.f32 0.0, %v1382
        %v1384 = vpop.f32.mrf.mxu0
        %1385 = vdwg.mxu0
        %1387 = vrot.lane.b32.xlu0 %v1383, 8
        %v1388 = vpop.permute.xlu0 %1387
        %vm1390 = vcmask 130112
        %1391 = vst.msk [vmem:[#allocation2] sm:$0xff] %vm1390, %v1388
        %1392 = vrot.lane.b32.xlu0 %v1240, 112
        %v1393 = vpop.permute.xlu0 %1392
        %1394 = vrot.lane.b32.xlu0 %v1240, 80
        %v1395 = vpop.permute.xlu0 %1394
        %v1397 = vsel %vm1244, %v1393, 0
        %v1400 = vsel %vm1244, %v1395, 0
        %1402 = vmatpush.bf16.xpose.msra.mxu0 0
        %1403 = vmatpush.bf16.xpose.msra.mxu0 0
        %1404 = vmatpush.bf16.xpose.msra.mxu0 0
        %1405 = vmatpush.bf16.xpose.msra.mxu0 0
        %1406 = vmatpush.bf16.xpose.msra.mxu0 0
        %1407 = vmatpush.bf16.xpose.msra.mxu0 0
        %1408 = vmatpush.bf16.xpose.msra.mxu0 0
        %1409 = vmatpush.bf16.xpose.msra.mxu0 %v1400
        %1410 = vmatmul.bf16.gmra.mxu0 %v1397
        %v1411 = vpop.f32.mrf.mxu0
        %v1412 = vadd.f32 0.0, %v1411
        %v1413 = vpop.f32.mrf.mxu0
        %1414 = vdwg.mxu0
        %v1415 = vmul.f32 %v1412, 0.35355338
        %v1416 = vsel %vm1244, %v1415, -inf
        %1417 = vmax.xlane.f32.xlu0 %v1416
        %v1418 = vpop.xlane.xlu0 %1417
        %v1419 = vsub.f32 %v1415, %v1418
        %v1420 = vmul.f32 %v1419, 1.442695
        %v1421 = vpow.pop %v1420
        %v1422 = vsel %vm1244, %v1421, 0.0
        %1423 = vadd.xlane.f32.xlu0 %v1422
        %v1424 = vpop.xlane.xlu0 %1423
        %v1425 = vrcp.pop %v1424
        %v1426 = vmul.f32 %v1424, %v1425
        %v1427 = vsub.f32 1.0, %v1426
        %v1428 = vmul.f32 %v1425, %v1427
        %v1429 = vadd.f32 %v1425, %v1428
        %vm1430 = vweird.f32 %v1424
        %vm1431 = vweird.f32 %v1425
        %vm1432 = vmor %vm1430, %vm1431
        %v1433 = vsel %vm1432, %v1425, %v1429
        %v1434 = vand.u32 2147483647, %v1424
        %vm1435 = vcmp.eq.f32.partialorder %v1434, 8.507059e+37
        %v1436 = vand.u32 %v1424, 2147483648
        %v1437 = vor.u32 1.1754944e-38, %v1436
        %v1438 = vsel %vm1435, %v1437, %v1433
        %v1439 = vmul.f32 %v1421, %v1438
        %s1440 = scalar_lea.vmem %s1173, 16 [#allocation36]
        %1441 = vst.msk [vmem:[%s1440] sm:$0xff] %vm1244, %v1439
        %v1442 = vpack.c.bf16 %v1439, %v1439
        %1443 = vrot.lane.b32.xlu0 %v1240, 48
        %v1444 = vpop.permute.xlu0 %1443
        %v1446 = vsel %vm1244, %v1442, 0
        %v1449 = vsel %vm1296, %v1444, 0
        %1451 = vmatpush.bf16.msra.mxu0 0
        %1452 = vmatpush.bf16.msra.mxu0 0
        %1453 = vmatpush.bf16.msra.mxu0 0
        %1454 = vmatpush.bf16.msra.mxu0 0
        %1455 = vmatpush.bf16.msra.mxu0 0
        %1456 = vmatpush.bf16.msra.mxu0 0
        %1457 = vmatpush.bf16.msra.mxu0 0
        %1458 = vmatpush.bf16.msra.mxu0 %v1449
        %1459 = vmatmul.bf16.gmra.mxu0 %v1446
        %v1460 = vpop.f32.mrf.mxu0
        %v1461 = vadd.f32 0.0, %v1460
        %v1462 = vpop.f32.mrf.mxu0
        %1463 = vdwg.mxu0
        %1465 = vrot.lane.b32.xlu0 %v1461, 16
        %v1466 = vpop.permute.xlu0 %1465
        %vm1468 = vcmask 195712
        %1469 = vst.msk [vmem:[#allocation2] sm:$0xff] %vm1468, %v1466
        %1470 = vrot.lane.b32.xlu0 %v1240, 104
        %v1471 = vpop.permute.xlu0 %1470
        %1472 = vrot.lane.b32.xlu0 %v1240, 72
        %v1473 = vpop.permute.xlu0 %1472
        %v1475 = vsel %vm1244, %v1471, 0
        %v1478 = vsel %vm1244, %v1473, 0
        %1480 = vmatpush.bf16.xpose.msra.mxu0 0
        %1481 = vmatpush.bf16.xpose.msra.mxu0 0
        %1482 = vmatpush.bf16.xpose.msra.mxu0 0
        %1483 = vmatpush.bf16.xpose.msra.mxu0 0
        %1484 = vmatpush.bf16.xpose.msra.mxu0 0
        %1485 = vmatpush.bf16.xpose.msra.mxu0 0
        %1486 = vmatpush.bf16.xpose.msra.mxu0 0
        %1487 = vmatpush.bf16.xpose.msra.mxu0 %v1478
        %1488 = vmatmul.bf16.gmra.mxu0 %v1475
        %v1489 = vpop.f32.mrf.mxu0
        %v1490 = vadd.f32 0.0, %v1489
        %v1491 = vpop.f32.mrf.mxu0
        %1492 = vdwg.mxu0
        %v1493 = vmul.f32 %v1490, 0.35355338
        %v1494 = vsel %vm1244, %v1493, -inf
        %1495 = vmax.xlane.f32.xlu0 %v1494
        %v1496 = vpop.xlane.xlu0 %1495
        %v1497 = vsub.f32 %v1493, %v1496
        %v1498 = vmul.f32 %v1497, 1.442695
        %v1499 = vpow.pop %v1498
        %v1500 = vsel %vm1244, %v1499, 0.0
        %1501 = vadd.xlane.f32.xlu0 %v1500
        %v1502 = vpop.xlane.xlu0 %1501
        %v1503 = vrcp.pop %v1502
        %v1504 = vmul.f32 %v1502, %v1503
        %v1505 = vsub.f32 1.0, %v1504
        %v1506 = vmul.f32 %v1503, %v1505
        %v1507 = vadd.f32 %v1503, %v1506
        %vm1508 = vweird.f32 %v1502
        %vm1509 = vweird.f32 %v1503
        %vm1510 = vmor %vm1508, %vm1509
        %v1511 = vsel %vm1510, %v1503, %v1507
        %v1512 = vand.u32 2147483647, %v1502
        %vm1513 = vcmp.eq.f32.partialorder %v1512, 8.507059e+37
        %v1514 = vand.u32 %v1502, 2147483648
        %v1515 = vor.u32 1.1754944e-38, %v1514
        %v1516 = vsel %vm1513, %v1515, %v1511
        %v1517 = vmul.f32 %v1499, %v1516
        %s1518 = scalar_lea.vmem %s1173, 24 [#allocation36]
        %1519 = vst.msk [vmem:[%s1518] sm:$0xff] %vm1244, %v1517
        %v1520 = vpack.c.bf16 %v1517, %v1517
        %1521 = vrot.lane.b32.xlu0 %v1240, 40
        %v1522 = vpop.permute.xlu0 %1521
        %v1524 = vsel %vm1244, %v1520, 0
        %v1527 = vsel %vm1296, %v1522, 0
        %1529 = vmatpush.bf16.msra.mxu0 0
        %1530 = vmatpush.bf16.msra.mxu0 0
        %1531 = vmatpush.bf16.msra.mxu0 0
        %1532 = vmatpush.bf16.msra.mxu0 0
        %1533 = vmatpush.bf16.msra.mxu0 0
        %1534 = vmatpush.bf16.msra.mxu0 0
        %1535 = vmatpush.bf16.msra.mxu0 0
        %1536 = vmatpush.bf16.msra.mxu0 %v1527
        %1537 = vmatmul.bf16.gmra.mxu0 %v1524
        %v1538 = vpop.f32.mrf.mxu0
        %v1539 = vadd.f32 0.0, %v1538
        %v1540 = vpop.f32.mrf.mxu0
        %1541 = vdwg.mxu0
        %1543 = vrot.lane.b32.xlu0 %v1539, 24
        %v1544 = vpop.permute.xlu0 %1543
        %vm1546 = vcmask 261312
        %1547 = vst.msk [vmem:[#allocation2] sm:$0xff] %vm1546, %v1544
        %v1548 = vld [vmem:[#allocation2] sm:$0xff]
        %v1549 = vld [vmem:[#allocation9] sm:$0xff]
        %v1550 = vld [vmem:[#allocation9 + $0x8] sm:$0xff]
        %v1551 = vld [vmem:[#allocation9 + $0x10] sm:$0xff]
        %v1552 = vld [vmem:[#allocation9 + $0x18] sm:$0xff]
        %v1553 = vld [vmem:[#allocation11] sm:$0x1]
        %v1554 = vpack.c.bf16 %v1548, %v1548
        %v1555 = vpack.c.bf16 %v1550, %v1549
        %v1556 = vpack.c.bf16 %v1552, %v1551
        %v1558 = vperm.slane %v1553, 0
        %v1561 = vsel %vm1223, %v1554, 0
        %1563 = vmatpush.bf16.msra.mxu0 0
        %1564 = vmatpush.bf16.msra.mxu0 0
        %1565 = vmatpush.bf16.msra.mxu0 0
        %1566 = vmatpush.bf16.msra.mxu0 0
        %1567 = vmatpush.bf16.msra.mxu0 0
        %1568 = vmatpush.bf16.msra.mxu0 0
        %1569 = vmatpush.bf16.msra.mxu0 %v1556
        %1570 = vmatpush.bf16.msra.mxu0 %v1555
        %1571 = vmatmul.bf16.gmra.mxu0 %v1561
        %v1572 = vpop.f32.mrf.mxu0
        %v1573 = vadd.f32 %v1558, %v1572
        %v1574 = vpop.f32.mrf.mxu0
        %1575 = vdwg.mxu0
        %v1576 = vld [vmem:[%s17] sm:$0xff]
        %v1577 = vld [vmem:[%s17 + $0x8] sm:$0xff]
        %v1578 = vld [vmem:[%s17 + $0x10] sm:$0xff]
        %v1579 = vld [vmem:[%s17 + $0x18] sm:$0xff]
        %v1580 = vld [vmem:[#allocation26] sm:$0x1]
        %v1581 = vpack.c.bf16 %v1208, %v1208
        %v1582 = vpack.c.bf16 %v1577, %v1576
        %v1583 = vpack.c.bf16 %v1579, %v1578
        %v1585 = vsel %vm1223, %v1581, 0
        %1587 = vmatpush.bf16.msra.mxu0 0
        %1588 = vmatpush.bf16.msra.mxu0 0
        %1589 = vmatpush.bf16.msra.mxu0 0
        %1590 = vmatpush.bf16.msra.mxu0 0
        %1591 = vmatpush.bf16.msra.mxu0 0
        %1592 = vmatpush.bf16.msra.mxu0 0
        %1593 = vmatpush.bf16.msra.mxu0 %v1583
        %1594 = vmatpush.bf16.msra.mxu0 %v1582
        %1595 = vmatmul.bf16.gmra.mxu0 %v1585
        %v1596 = vpop.f32.mrf.mxu0
        %v1597 = vadd.f32 %v1580, %v1596
        %v1598 = vpop.f32.mrf.mxu0
        %1599 = vdwg.mxu0
        %v1600 = vld [vmem:[#allocation27] sm:$0x1]
        %v1601 = vld [vmem:[#allocation29] sm:$0x1]
        %v1602 = vsel %vm1223, %v1573, 0.0
        %1603 = vadd.xlane.f32.xlu0 %v1602
        %v1604 = vpop.xlane.xlu0 %1603
        %v1605 = vrcp.pop 32.0
        %v1606 = vmul.f32 32.0, %v1605
        %v1607 = vsub.f32 1.0, %v1606
        %v1608 = vmul.f32 %v1605, %v1607
        %v1609 = vadd.f32 %v1605, %v1608
        %vm1610 = vweird.f32 %v1605
        %v1611 = vsel %vm1610, %v1605, %v1609
        %v1612 = vmul.f32 %v1604, %v1611
        %v1613 = vsub.f32 %v1573, %v1612
        %v1614 = vmul.f32 %v1613, %v1613
        %v1615 = vsel %vm1223, %v1614, 0.0
        %1616 = vadd.xlane.f32.xlu0 %v1615
        %v1617 = vpop.xlane.xlu0 %1616
        %v1618 = vmul.f32 %v1617, %v1611
        %v1619 = vadd.f32 %v1618, 1e-05
        %v1620 = vrsqrt.pop %v1619
        %v1621 = vmul.f32 %v1620, %v1619
        %v1622 = vmul.f32 %v1621, %v1620
        %v1623 = vmul.f32 0.5, %v1622
        %v1624 = vsub.f32 1.5, %v1623
        %v1625 = vmul.f32 %v1620, %v1624
        %vm1626 = vweird.f32 %v1619
        %vm1627 = vweird.f32 %v1620
        %vm1628 = vmor %vm1626, %vm1627
        %v1629 = vsel %vm1628, %v1620, %v1625
        %v1630 = vmul.f32 %v1613, %v1629
        %v1632 = vperm.slane %v1600, 0
        %v1634 = vmul.f32 %v1630, %v1632
        %v1636 = vperm.slane %v1601, 0
        %v1638 = vadd.f32 %v1634, %v1636
        %v1639 = vadd.f32 %v1597, 1.0
        %v1640 = vperm.slane %v1639, 0
        %v1641 = vmul.f32 %v1638, %v1640
        %v1642 = vperm.slane %v1597, 0
        %1644 = vrot.lane.b32.xlu0 %v1642, 96
        %v1645 = vpop.permute.xlu0 %1644
        %v1647 = vadd.f32 %v1641, %v1645
        %v1648 = vsub.f32 0.0, %v1647
        %v1649 = vmul.f32 %v1648, 1.442695
        %v1650 = vpow.pop %v1649
        %v1651 = vadd.f32 %v1650, 1.0
        %v1652 = vrcp.pop %v1651
        %v1653 = vmul.f32 %v1651, %v1652
        %v1654 = vsub.f32 1.0, %v1653
        %v1655 = vmul.f32 %v1652, %v1654
        %v1656 = vadd.f32 %v1652, %v1655
        %vm1657 = vweird.f32 %v1651
        %vm1658 = vweird.f32 %v1652
        %vm1659 = vmor %vm1657, %vm1658
        %v1660 = vsel %vm1659, %v1652, %v1656
        %v1661 = vand.u32 2147483647, %v1651
        %vm1662 = vcmp.eq.f32.partialorder %v1661, 8.507059e+37
        %v1663 = vand.u32 %v1651, 2147483648
        %v1664 = vor.u32 1.1754944e-38, %v1663
        %v1665 = vsel %vm1662, %v1664, %v1660
        %v1666 = vmul.f32 %v1647, %v1665
        %v1667 = vld [vmem:[#allocation30] sm:$0xff]
        %v1668 = vld [vmem:[#allocation30 + $0x8] sm:$0xff]
        %v1669 = vld [vmem:[#allocation30 + $0x10] sm:$0xff]
        %v1670 = vld [vmem:[#allocation30 + $0x18] sm:$0xff]
        %v1671 = vld [vmem:[%s22] sm:$0x1]
        %v1672 = vpack.c.bf16 %v1666, %v1666
        %v1673 = vpack.c.bf16 %v1668, %v1667
        %v1674 = vpack.c.bf16 %v1670, %v1669
        %v1676 = vperm.slane %v1671, 0
        %v1679 = vsel %vm1223, %v1672, 0
        %1681 = vmatpush.bf16.msra.mxu0 0
        %1682 = vmatpush.bf16.msra.mxu0 0
        %1683 = vmatpush.bf16.msra.mxu0 0
        %1684 = vmatpush.bf16.msra.mxu0 0
        %1685 = vmatpush.bf16.msra.mxu0 0
        %1686 = vmatpush.bf16.msra.mxu0 0
        %1687 = vmatpush.bf16.msra.mxu0 %v1674
        %1688 = vmatpush.bf16.msra.mxu0 %v1673
        %1689 = vmatmul.bf16.gmra.mxu0 %v1679
        %v1690 = vpop.f32.mrf.mxu0
        %v1691 = vadd.f32 %v1676, %v1690
        %v1692 = vpop.f32.mrf.mxu0
        %1693 = vdwg.mxu0
        %v1694 = vadd.f32 %v1691, %v1209
        %v1695 = vld [vmem:[#allocation32] sm:$0x1]
        %v1696 = vld [vmem:[#allocation33] sm:$0x1]
        %v1697 = vsel %vm1223, %v1694, 0.0
        %1698 = vadd.xlane.f32.xlu0 %v1697
        %v1699 = vpop.xlane.xlu0 %1698
        %v1700 = vmul.f32 %v1699, %v1611
        %v1701 = vsub.f32 %v1694, %v1700
        %v1702 = vmul.f32 %v1701, %v1701
        %v1703 = vsel %vm1223, %v1702, 0.0
        %1704 = vadd.xlane.f32.xlu0 %v1703
        %v1705 = vpop.xlane.xlu0 %1704
        %v1706 = vmul.f32 %v1705, %v1611
        %v1707 = vadd.f32 %v1706, 1e-06
        %v1708 = vrsqrt.pop %v1707
        %v1709 = vmul.f32 %v1708, %v1707
        %v1710 = vmul.f32 %v1709, %v1708
        %v1711 = vmul.f32 0.5, %v1710
        %v1712 = vsub.f32 1.5, %v1711
        %v1713 = vmul.f32 %v1708, %v1712
        %vm1714 = vweird.f32 %v1707
        %vm1715 = vweird.f32 %v1708
        %vm1716 = vmor %vm1714, %vm1715
        %v1717 = vsel %vm1716, %v1708, %v1713
        %v1718 = vmul.f32 %v1701, %v1717
        %v1720 = vperm.slane %v1695, 0
        %v1722 = vmul.f32 %v1718, %v1720
        %v1724 = vperm.slane %v1696, 0
        %v1726 = vadd.f32 %v1722, %v1724
        %v1727 = vld [vmem:[#allocation12] sm:$0xff]
        %v1728 = vld [vmem:[#allocation12 + $0x8] sm:$0xff]
        %v1729 = vld [vmem:[#allocation12 + $0x10] sm:$0xff]
        %v1730 = vld [vmem:[#allocation12 + $0x18] sm:$0xff]
        %v1731 = vld [vmem:[#allocation14] sm:$0x1]
        %v1732 = vpack.c.bf16 %v1726, %v1726
        %v1733 = vpack.c.bf16 %v1728, %v1727
        %v1734 = vpack.c.bf16 %v1730, %v1729
        %v1736 = vperm.slane %v1731, 0
        %v1739 = vsel %vm1223, %v1732, 0
        %1741 = vmatpush.bf16.msra.mxu0 0
        %1742 = vmatpush.bf16.msra.mxu0 0
        %1743 = vmatpush.bf16.msra.mxu0 0
        %1744 = vmatpush.bf16.msra.mxu0 0
        %1745 = vmatpush.bf16.msra.mxu0 0
        %1746 = vmatpush.bf16.msra.mxu0 0
        %1747 = vmatpush.bf16.msra.mxu0 %v1734
        %1748 = vmatpush.bf16.msra.mxu0 %v1733
        %1749 = vmatmul.bf16.gmra.mxu0 %v1739
        %v1750 = vpop.f32.mrf.mxu0
        %v1751 = vadd.f32 %v1736, %v1750
        %v1752 = vpop.f32.mrf.mxu0
        %1753 = vdwg.mxu0
        %v1754 = vld [vmem:[#allocation15] sm:$0xff]
        %v1755 = vld [vmem:[#allocation15 + $0x8] sm:$0xff]
        %v1756 = vld [vmem:[#allocation15 + $0x10] sm:$0xff]
        %v1757 = vld [vmem:[#allocation15 + $0x18] sm:$0xff]
        %v1758 = vld [vmem:[#allocation17] sm:$0x1]
        %v1759 = vpack.c.bf16 %v1211, %v1210
        %v1760 = vpack.c.bf16 %v1755, %v1754
        %v1761 = vpack.c.bf16 %v1757, %v1756
        %v1763 = vperm.slane %v1758, 0
        %v1766 = vsel %vm1223, %v1759, 0
        %1768 = vmatpush.bf16.msra.mxu0 0
        %1769 = vmatpush.bf16.msra.mxu0 0
        %1770 = vmatpush.bf16.msra.mxu0 0
        %1771 = vmatpush.bf16.msra.mxu0 0
        %1772 = vmatpush.bf16.msra.mxu0 0
        %1773 = vmatpush.bf16.msra.mxu0 0
        %1774 = vmatpush.bf16.msra.mxu0 %v1761
        %1775 = vmatpush.bf16.msra.mxu0 %v1760
        %1776 = vmatmul.bf16.gmra.mxu0 %v1766
        %v1777 = vpop.f32.mrf.mxu0
        %v1778 = vadd.f32 %v1763, %v1777
        %v1779 = vpop.f32.mrf.mxu0
        %v1780 = vadd.f32 %v1763, %v1779
        %1781 = vdwg.mxu0
        %v1782 = vpack.c.bf16 %v1751, %v1751
        %v1783 = vpack.c.bf16 %v1780, %v1778
        %v1785 = vsel %vm1244, %v1782, 0
        %v1788 = vsel %vm1244, %v1783, 0
        %1790 = vmatpush.bf16.xpose.msra.mxu0 0
        %1791 = vmatpush.bf16.xpose.msra.mxu0 0
        %1792 = vmatpush.bf16.xpose.msra.mxu0 0
        %1793 = vmatpush.bf16.xpose.msra.mxu0 0
        %1794 = vmatpush.bf16.xpose.msra.mxu0 0
        %1795 = vmatpush.bf16.xpose.msra.mxu0 0
        %1796 = vmatpush.bf16.xpose.msra.mxu0 0
        %1797 = vmatpush.bf16.xpose.msra.mxu0 %v1788
        %1798 = vmatmul.bf16.gmra.mxu0 %v1785
        %v1799 = vpop.f32.mrf.mxu0
        %v1800 = vadd.f32 0.0, %v1799
        %v1801 = vpop.f32.mrf.mxu0
        %1802 = vdwg.mxu0
        %v1803 = vmul.f32 %v1800, 0.35355338
        %vm1804 = vcmask 130048
        %v1805 = vsel %vm1804, %v1803, -inf
        %1806 = vmax.xlane.f32.xlu0 %v1805
        %v1807 = vpop.xlane.xlu0 %1806
        %v1808 = vsub.f32 %v1803, %v1807
        %v1809 = vmul.f32 %v1808, 1.442695
        %v1810 = vpow.pop %v1809
        %v1811 = vsel %vm1804, %v1810, 0.0
        %1812 = vadd.xlane.f32.xlu0 %v1811
        %v1813 = vpop.xlane.xlu0 %1812
        %v1814 = vrcp.pop %v1813
        %v1815 = vmul.f32 %v1813, %v1814
        %v1816 = vsub.f32 1.0, %v1815
        %v1817 = vmul.f32 %v1814, %v1816
        %v1818 = vadd.f32 %v1814, %v1817
        %vm1819 = vweird.f32 %v1813
        %vm1820 = vweird.f32 %v1814
        %vm1821 = vmor %vm1819, %vm1820
        %v1822 = vsel %vm1821, %v1814, %v1818
        %v1823 = vand.u32 2147483647, %v1813
        %vm1824 = vcmp.eq.f32.partialorder %v1823, 8.507059e+37
        %v1825 = vand.u32 %v1813, 2147483648
        %v1826 = vor.u32 1.1754944e-38, %v1825
        %v1827 = vsel %vm1824, %v1826, %v1822
        %v1828 = vmul.f32 %v1810, %v1827
        %1829 = vst.msk [vmem:[%s1180] sm:$0xff] %vm1804, %v1828
        %v1830 = vpack.c.bf16 %v1828, %v1828
        %1832 = vrot.lane.b32.xlu0 %v1783, 96
        %v1833 = vpop.permute.xlu0 %1832
        %v1836 = vsel %vm1804, %v1830, 0
        %1838 = vmatpush.bf16.msra.mxu0 0
        %1839 = vmatpush.bf16.msra.mxu0 0
        %1840 = vmatpush.bf16.msra.mxu0 0
        %1841 = vmatpush.bf16.msra.mxu0 0
        %1842 = vmatpush.bf16.msra.mxu0 0
        %1843 = vmatpush.bf16.msra.mxu0 0
        %1844 = vmatpush.bf16.msra.mxu0 0
        %1845 = vmatpush.bf16.msra.mxu0 %v1833
        %1846 = vmatmul.bf16.gmra.mxu0 %v1836
        %v1847 = vpop.f32.mrf.mxu0
        %v1848 = vadd.f32 0.0, %v1847
        %v1849 = vpop.f32.mrf.mxu0
        %1850 = vdwg.mxu0
        %1851 = vst.msk [vmem:[#allocation2] sm:$0xff] %vm1244, %v1848
        %1853 = vrot.lane.b32.xlu0 %v1782, 120
        %v1854 = vpop.permute.xlu0 %1853
        %1855 = vrot.lane.b32.xlu0 %v1783, 120
        %v1856 = vpop.permute.xlu0 %1855
        %v1858 = vsel %vm1244, %v1854, 0
        %v1861 = vsel %vm1244, %v1856, 0
        %1863 = vmatpush.bf16.xpose.msra.mxu0 0
        %1864 = vmatpush.bf16.xpose.msra.mxu0 0
        %1865 = vmatpush.bf16.xpose.msra.mxu0 0
        %1866 = vmatpush.bf16.xpose.msra.mxu0 0
        %1867 = vmatpush.bf16.xpose.msra.mxu0 0
        %1868 = vmatpush.bf16.xpose.msra.mxu0 0
        %1869 = vmatpush.bf16.xpose.msra.mxu0 0
        %1870 = vmatpush.bf16.xpose.msra.mxu0 %v1861
        %1871 = vmatmul.bf16.gmra.mxu0 %v1858
        %v1872 = vpop.f32.mrf.mxu0
        %v1873 = vadd.f32 0.0, %v1872
        %v1874 = vpop.f32.mrf.mxu0
        %1875 = vdwg.mxu0
        %v1876 = vmul.f32 %v1873, 0.35355338
        %v1877 = vsel %vm1804, %v1876, -inf
        %1878 = vmax.xlane.f32.xlu0 %v1877
        %v1879 = vpop.xlane.xlu0 %1878
        %v1880 = vsub.f32 %v1876, %v1879
        %v1881 = vmul.f32 %v1880, 1.442695
        %v1882 = vpow.pop %v1881
        %v1883 = vsel %vm1804, %v1882, 0.0
        %1884 = vadd.xlane.f32.xlu0 %v1883
        %v1885 = vpop.xlane.xlu0 %1884
        %v1886 = vrcp.pop %v1885
        %v1887 = vmul.f32 %v1885, %v1886
        %v1888 = vsub.f32 1.0, %v1887
        %v1889 = vmul.f32 %v1886, %v1888
        %v1890 = vadd.f32 %v1886, %v1889
        %vm1891 = vweird.f32 %v1885
        %vm1892 = vweird.f32 %v1886
        %vm1893 = vmor %vm1891, %vm1892
        %v1894 = vsel %vm1893, %v1886, %v1890
        %v1895 = vand.u32 2147483647, %v1885
        %vm1896 = vcmp.eq.f32.partialorder %v1895, 8.507059e+37
        %v1897 = vand.u32 %v1885, 2147483648
        %v1898 = vor.u32 1.1754944e-38, %v1897
        %v1899 = vsel %vm1896, %v1898, %v1894
        %v1900 = vmul.f32 %v1882, %v1899
        %s1901 = scalar_lea.vmem %s1180, 8 [#allocation38]
        %1902 = vst.msk [vmem:[%s1901] sm:$0xff] %vm1804, %v1900
        %v1903 = vpack.c.bf16 %v1900, %v1900
        %1904 = vrot.lane.b32.xlu0 %v1783, 88
        %v1905 = vpop.permute.xlu0 %1904
        %v1908 = vsel %vm1804, %v1903, 0
        %1910 = vmatpush.bf16.msra.mxu0 0
        %1911 = vmatpush.bf16.msra.mxu0 0
        %1912 = vmatpush.bf16.msra.mxu0 0
        %1913 = vmatpush.bf16.msra.mxu0 0
        %1914 = vmatpush.bf16.msra.mxu0 0
        %1915 = vmatpush.bf16.msra.mxu0 0
        %1916 = vmatpush.bf16.msra.mxu0 0
        %1917 = vmatpush.bf16.msra.mxu0 %v1905
        %1918 = vmatmul.bf16.gmra.mxu0 %v1908
        %v1919 = vpop.f32.mrf.mxu0
        %v1920 = vadd.f32 0.0, %v1919
        %v1921 = vpop.f32.mrf.mxu0
        %1922 = vdwg.mxu0
        %1924 = vrot.lane.b32.xlu0 %v1920, 8
        %v1925 = vpop.permute.xlu0 %1924
        %1927 = vst.msk [vmem:[#allocation2] sm:$0xff] %vm1390, %v1925
        %1928 = vrot.lane.b32.xlu0 %v1782, 112
        %v1929 = vpop.permute.xlu0 %1928
        %1930 = vrot.lane.b32.xlu0 %v1783, 112
        %v1931 = vpop.permute.xlu0 %1930
        %v1933 = vsel %vm1244, %v1929, 0
        %v1936 = vsel %vm1244, %v1931, 0
        %1938 = vmatpush.bf16.xpose.msra.mxu0 0
        %1939 = vmatpush.bf16.xpose.msra.mxu0 0
        %1940 = vmatpush.bf16.xpose.msra.mxu0 0
        %1941 = vmatpush.bf16.xpose.msra.mxu0 0
        %1942 = vmatpush.bf16.xpose.msra.mxu0 0
        %1943 = vmatpush.bf16.xpose.msra.mxu0 0
        %1944 = vmatpush.bf16.xpose.msra.mxu0 0
        %1945 = vmatpush.bf16.xpose.msra.mxu0 %v1936
        %1946 = vmatmul.bf16.gmra.mxu0 %v1933
        %v1947 = vpop.f32.mrf.mxu0
        %v1948 = vadd.f32 0.0, %v1947
        %v1949 = vpop.f32.mrf.mxu0
        %1950 = vdwg.mxu0
        %v1951 = vmul.f32 %v1948, 0.35355338
        %v1952 = vsel %vm1804, %v1951, -inf
        %1953 = vmax.xlane.f32.xlu0 %v1952
        %v1954 = vpop.xlane.xlu0 %1953
        %v1955 = vsub.f32 %v1951, %v1954
        %v1956 = vmul.f32 %v1955, 1.442695
        %v1957 = vpow.pop %v1956
        %v1958 = vsel %vm1804, %v1957, 0.0
        %1959 = vadd.xlane.f32.xlu0 %v1958
        %v1960 = vpop.xlane.xlu0 %1959
        %v1961 = vrcp.pop %v1960
        %v1962 = vmul.f32 %v1960, %v1961
        %v1963 = vsub.f32 1.0, %v1962
        %v1964 = vmul.f32 %v1961, %v1963
        %v1965 = vadd.f32 %v1961, %v1964
        %vm1966 = vweird.f32 %v1960
        %vm1967 = vweird.f32 %v1961
        %vm1968 = vmor %vm1966, %vm1967
        %v1969 = vsel %vm1968, %v1961, %v1965
        %v1970 = vand.u32 2147483647, %v1960
        %vm1971 = vcmp.eq.f32.partialorder %v1970, 8.507059e+37
        %v1972 = vand.u32 %v1960, 2147483648
        %v1973 = vor.u32 1.1754944e-38, %v1972
        %v1974 = vsel %vm1971, %v1973, %v1969
        %v1975 = vmul.f32 %v1957, %v1974
        %s1976 = scalar_lea.vmem %s1180, 16 [#allocation38]
        %1977 = vst.msk [vmem:[%s1976] sm:$0xff] %vm1804, %v1975
        %v1978 = vpack.c.bf16 %v1975, %v1975
        %1979 = vrot.lane.b32.xlu0 %v1783, 80
        %v1980 = vpop.permute.xlu0 %1979
        %v1983 = vsel %vm1804, %v1978, 0
        %1985 = vmatpush.bf16.msra.mxu0 0
        %1986 = vmatpush.bf16.msra.mxu0 0
        %1987 = vmatpush.bf16.msra.mxu0 0
        %1988 = vmatpush.bf16.msra.mxu0 0
        %1989 = vmatpush.bf16.msra.mxu0 0
        %1990 = vmatpush.bf16.msra.mxu0 0
        %1991 = vmatpush.bf16.msra.mxu0 0
        %1992 = vmatpush.bf16.msra.mxu0 %v1980
        %1993 = vmatmul.bf16.gmra.mxu0 %v1983
        %v1994 = vpop.f32.mrf.mxu0
        %v1995 = vadd.f32 0.0, %v1994
        %v1996 = vpop.f32.mrf.mxu0
        %1997 = vdwg.mxu0
        %1999 = vrot.lane.b32.xlu0 %v1995, 16
        %v2000 = vpop.permute.xlu0 %1999
        %2002 = vst.msk [vmem:[#allocation2] sm:$0xff] %vm1468, %v2000
        %2003 = vrot.lane.b32.xlu0 %v1782, 104
        %v2004 = vpop.permute.xlu0 %2003
        %2005 = vrot.lane.b32.xlu0 %v1783, 104
        %v2006 = vpop.permute.xlu0 %2005
        %v2008 = vsel %vm1244, %v2004, 0
        %v2011 = vsel %vm1244, %v2006, 0
        %2013 = vmatpush.bf16.xpose.msra.mxu0 0
        %2014 = vmatpush.bf16.xpose.msra.mxu0 0
        %2015 = vmatpush.bf16.xpose.msra.mxu0 0
        %2016 = vmatpush.bf16.xpose.msra.mxu0 0
        %2017 = vmatpush.bf16.xpose.msra.mxu0 0
        %2018 = vmatpush.bf16.xpose.msra.mxu0 0
        %2019 = vmatpush.bf16.xpose.msra.mxu0 0
        %2020 = vmatpush.bf16.xpose.msra.mxu0 %v2011
        %2021 = vmatmul.bf16.gmra.mxu0 %v2008
        %v2022 = vpop.f32.mrf.mxu0
        %v2023 = vadd.f32 0.0, %v2022
        %v2024 = vpop.f32.mrf.mxu0
        %2025 = vdwg.mxu0
        %v2026 = vmul.f32 %v2023, 0.35355338
        %v2027 = vsel %vm1804, %v2026, -inf
        %2028 = vmax.xlane.f32.xlu0 %v2027
        %v2029 = vpop.xlane.xlu0 %2028
        %v2030 = vsub.f32 %v2026, %v2029
        %v2031 = vmul.f32 %v2030, 1.442695
        %v2032 = vpow.pop %v2031
        %v2033 = vsel %vm1804, %v2032, 0.0
        %2034 = vadd.xlane.f32.xlu0 %v2033
        %v2035 = vpop.xlane.xlu0 %2034
        %v2036 = vrcp.pop %v2035
        %v2037 = vmul.f32 %v2035, %v2036
        %v2038 = vsub.f32 1.0, %v2037
        %v2039 = vmul.f32 %v2036, %v2038
        %v2040 = vadd.f32 %v2036, %v2039
        %vm2041 = vweird.f32 %v2035
        %vm2042 = vweird.f32 %v2036
        %vm2043 = vmor %vm2041, %vm2042
        %v2044 = vsel %vm2043, %v2036, %v2040
        %v2045 = vand.u32 2147483647, %v2035
        %vm2046 = vcmp.eq.f32.partialorder %v2045, 8.507059e+37
        %v2047 = vand.u32 %v2035, 2147483648
        %v2048 = vor.u32 1.1754944e-38, %v2047
        %v2049 = vsel %vm2046, %v2048, %v2044
        %v2050 = vmul.f32 %v2032, %v2049
        %s2051 = scalar_lea.vmem %s1180, 24 [#allocation38]
        %2052 = vst.msk [vmem:[%s2051] sm:$0xff] %vm1804, %v2050
        %v2053 = vpack.c.bf16 %v2050, %v2050
        %2054 = vrot.lane.b32.xlu0 %v1783, 72
        %v2055 = vpop.permute.xlu0 %2054
        %v2058 = vsel %vm1804, %v2053, 0
        %2060 = vmatpush.bf16.msra.mxu0 0
        %2061 = vmatpush.bf16.msra.mxu0 0
        %2062 = vmatpush.bf16.msra.mxu0 0
        %2063 = vmatpush.bf16.msra.mxu0 0
        %2064 = vmatpush.bf16.msra.mxu0 0
        %2065 = vmatpush.bf16.msra.mxu0 0
        %2066 = vmatpush.bf16.msra.mxu0 0
        %2067 = vmatpush.bf16.msra.mxu0 %v2055
        %2068 = vmatmul.bf16.gmra.mxu0 %v2058
        %v2069 = vpop.f32.mrf.mxu0
        %v2070 = vadd.f32 0.0, %v2069
        %v2071 = vpop.f32.mrf.mxu0
        %2072 = vdwg.mxu0
        %2074 = vrot.lane.b32.xlu0 %v2070, 24
        %v2075 = vpop.permute.xlu0 %2074
        %2077 = vst.msk [vmem:[#allocation2] sm:$0xff] %vm1546, %v2075
        %v2078 = vld [vmem:[#allocation2] sm:$0xff]
        %v2079 = vld [vmem:[#allocation18] sm:$0xff]
        %v2080 = vld [vmem:[#allocation18 + $0x8] sm:$0xff]
        %v2081 = vld [vmem:[#allocation18 + $0x10] sm:$0xff]
        %v2082 = vld [vmem:[#allocation18 + $0x18] sm:$0xff]
        %v2083 = vld [vmem:[#allocation20] sm:$0x1]
        %v2084 = vpack.c.bf16 %v2078, %v2078
        %v2085 = vpack.c.bf16 %v2080, %v2079
        %v2086 = vpack.c.bf16 %v2082, %v2081
        %v2088 = vperm.slane %v2083, 0
        %v2091 = vsel %vm1223, %v2084, 0
        %2093 = vmatpush.bf16.msra.mxu0 0
        %2094 = vmatpush.bf16.msra.mxu0 0
        %2095 = vmatpush.bf16.msra.mxu0 0
        %2096 = vmatpush.bf16.msra.mxu0 0
        %2097 = vmatpush.bf16.msra.mxu0 0
        %2098 = vmatpush.bf16.msra.mxu0 0
        %2099 = vmatpush.bf16.msra.mxu0 %v2086
        %2100 = vmatpush.bf16.msra.mxu0 %v2085
        %2101 = vmatmul.bf16.gmra.mxu0 %v2091
        %v2102 = vpop.f32.mrf.mxu0
        %v2103 = vadd.f32 %v2088, %v2102
        %v2104 = vpop.f32.mrf.mxu0
        %2105 = vdwg.mxu0
        %s2106 = scalar_lea.vmem %s17, 32
        %v2107 = vld [vmem:[%s2106] sm:$0xff]
        %v2108 = vld [vmem:[%s2106 + $0x8] sm:$0xff]
        %v2109 = vld [vmem:[%s2106 + $0x10] sm:$0xff]
        %v2110 = vld [vmem:[%s2106 + $0x18] sm:$0xff]
        %s2111 = scalar_lea.vmem [#allocation26], 1
        %v2112 = vld [vmem:[%s2111] sm:$0x1]
        %v2113 = vpack.c.bf16 %v2108, %v2107
        %v2114 = vpack.c.bf16 %v2110, %v2109
        %2115 = vmatpush.bf16.msra.mxu0 0
        %2116 = vmatpush.bf16.msra.mxu0 0
        %2117 = vmatpush.bf16.msra.mxu0 0
        %2118 = vmatpush.bf16.msra.mxu0 0
        %2119 = vmatpush.bf16.msra.mxu0 0
        %2120 = vmatpush.bf16.msra.mxu0 0
        %2121 = vmatpush.bf16.msra.mxu0 %v2114
        %2122 = vmatpush.bf16.msra.mxu0 %v2113
        %2123 = vmatmul.bf16.gmra.mxu0 %v1585
        %v2124 = vpop.f32.mrf.mxu0
        %v2125 = vadd.f32 %v2112, %v2124
        %v2126 = vpop.f32.mrf.mxu0
        %2127 = vdwg.mxu0
        %s2128 = scalar_lea.vmem [#allocation27], 1
        %v2129 = vld [vmem:[%s2128] sm:$0x1]
        %s2130 = scalar_lea.vmem [#allocation29], 1
        %v2131 = vld [vmem:[%s2130] sm:$0x1]
        %v2132 = vsel %vm1223, %v2103, 0.0
        %2133 = vadd.xlane.f32.xlu0 %v2132
        %v2134 = vpop.xlane.xlu0 %2133
        %v2135 = vmul.f32 %v2134, %v1611
        %v2136 = vsub.f32 %v2103, %v2135
        %v2137 = vmul.f32 %v2136, %v2136
        %v2138 = vsel %vm1223, %v2137, 0.0
        %2139 = vadd.xlane.f32.xlu0 %v2138
        %v2140 = vpop.xlane.xlu0 %2139
        %v2141 = vmul.f32 %v2140, %v1611
        %v2142 = vadd.f32 %v2141, 1e-05
        %v2143 = vrsqrt.pop %v2142
        %v2144 = vmul.f32 %v2143, %v2142
        %v2145 = vmul.f32 %v2144, %v2143
        %v2146 = vmul.f32 0.5, %v2145
        %v2147 = vsub.f32 1.5, %v2146
        %v2148 = vmul.f32 %v2143, %v2147
        %vm2149 = vweird.f32 %v2142
        %vm2150 = vweird.f32 %v2143
        %vm2151 = vmor %vm2149, %vm2150
        %v2152 = vsel %vm2151, %v2143, %v2148
        %v2153 = vmul.f32 %v2136, %v2152
        %v2155 = vperm.slane %v2129, 0
        %v2157 = vmul.f32 %v2153, %v2155
        %v2159 = vperm.slane %v2131, 0
        %v2161 = vadd.f32 %v2157, %v2159
        %v2162 = vadd.f32 %v2125, 1.0
        %v2163 = vperm.slane %v2162, 0
        %v2164 = vmul.f32 %v2161, %v2163
        %v2165 = vperm.slane %v2125, 0
        %2167 = vrot.lane.b32.xlu0 %v2165, 96
        %v2168 = vpop.permute.xlu0 %2167
        %v2170 = vadd.f32 %v2164, %v2168
        %v2171 = vsub.f32 0.0, %v2170
        %v2172 = vmul.f32 %v2171, 1.442695
        %v2173 = vpow.pop %v2172
        %v2174 = vadd.f32 %v2173, 1.0
        %v2175 = vrcp.pop %v2174
        %v2176 = vmul.f32 %v2174, %v2175
        %v2177 = vsub.f32 1.0, %v2176
        %v2178 = vmul.f32 %v2175, %v2177
        %v2179 = vadd.f32 %v2175, %v2178
        %vm2180 = vweird.f32 %v2174
        %vm2181 = vweird.f32 %v2175
        %vm2182 = vmor %vm2180, %vm2181
        %v2183 = vsel %vm2182, %v2175, %v2179
        %v2184 = vand.u32 2147483647, %v2174
        %vm2185 = vcmp.eq.f32.partialorder %v2184, 8.507059e+37
        %v2186 = vand.u32 %v2174, 2147483648
        %v2187 = vor.u32 1.1754944e-38, %v2186
        %v2188 = vsel %vm2185, %v2187, %v2183
        %v2189 = vmul.f32 %v2170, %v2188
        %s2190 = scalar_lea.vmem [#allocation30], 32
        %v2191 = vld [vmem:[%s2190] sm:$0xff]
        %v2192 = vld [vmem:[%s2190 + $0x8] sm:$0xff]
        %v2193 = vld [vmem:[%s2190 + $0x10] sm:$0xff]
        %v2194 = vld [vmem:[%s2190 + $0x18] sm:$0xff]
        %s2195 = scalar_lea.vmem %s22, 1
        %v2196 = vld [vmem:[%s2195] sm:$0x1]
        %v2197 = vpack.c.bf16 %v2189, %v2189
        %v2198 = vpack.c.bf16 %v2192, %v2191
        %v2199 = vpack.c.bf16 %v2194, %v2193
        %v2201 = vperm.slane %v2196, 0
        %v2204 = vsel %vm1223, %v2197, 0
        %2206 = vmatpush.bf16.msra.mxu0 0
        %2207 = vmatpush.bf16.msra.mxu0 0
        %2208 = vmatpush.bf16.msra.mxu0 0
        %2209 = vmatpush.bf16.msra.mxu0 0
        %2210 = vmatpush.bf16.msra.mxu0 0
        %2211 = vmatpush.bf16.msra.mxu0 0
        %2212 = vmatpush.bf16.msra.mxu0 %v2199
        %2213 = vmatpush.bf16.msra.mxu0 %v2198
        %2214 = vmatmul.bf16.gmra.mxu0 %v2204
        %v2215 = vpop.f32.mrf.mxu0
        %v2216 = vadd.f32 %v2201, %v2215
        %v2217 = vpop.f32.mrf.mxu0
        %2218 = vdwg.mxu0
        %v2219 = vadd.f32 %v2216, %v1726
        %s2220 = scalar_lea.vmem [#allocation32], 1
        %v2221 = vld [vmem:[%s2220] sm:$0x1]
        %s2222 = scalar_lea.vmem [#allocation33], 1
        %v2223 = vld [vmem:[%s2222] sm:$0x1]
        %v2224 = vsel %vm1223, %v2219, 0.0
        %2225 = vadd.xlane.f32.xlu0 %v2224
        %v2226 = vpop.xlane.xlu0 %2225
        %v2227 = vmul.f32 %v2226, %v1611
        %v2228 = vsub.f32 %v2219, %v2227
        %v2229 = vmul.f32 %v2228, %v2228
        %v2230 = vsel %vm1223, %v2229, 0.0
        %2231 = vadd.xlane.f32.xlu0 %v2230
        %v2232 = vpop.xlane.xlu0 %2231
        %v2233 = vmul.f32 %v2232, %v1611
        %v2234 = vadd.f32 %v2233, 1e-06
        %v2235 = vrsqrt.pop %v2234
        %v2236 = vmul.f32 %v2235, %v2234
        %v2237 = vmul.f32 %v2236, %v2235
        %v2238 = vmul.f32 0.5, %v2237
        %v2239 = vsub.f32 1.5, %v2238
        %v2240 = vmul.f32 %v2235, %v2239
        %vm2241 = vweird.f32 %v2234
        %vm2242 = vweird.f32 %v2235
        %vm2243 = vmor %vm2241, %vm2242
        %v2244 = vsel %vm2243, %v2235, %v2240
        %v2245 = vmul.f32 %v2228, %v2244
        %v2247 = vperm.slane %v2221, 0
        %v2249 = vmul.f32 %v2245, %v2247
        %v2251 = vperm.slane %v2223, 0
        %v2253 = vadd.f32 %v2249, %v2251
        %v2254 = vld [vmem:[#allocation21] sm:$0xff]
        %v2255 = vld [vmem:[#allocation21 + $0x8] sm:$0xff]
        %v2256 = vld [vmem:[#allocation21 + $0x10] sm:$0xff]
        %v2257 = vld [vmem:[#allocation21 + $0x18] sm:$0xff]
        %v2258 = vld [vmem:[#allocation23] sm:$0x1]
        %v2259 = vpack.c.bf16 %v2253, %v2253
        %v2260 = vpack.c.bf16 %v2255, %v2254
        %v2261 = vpack.c.bf16 %v2257, %v2256
        %v2263 = vperm.slane %v2258, 0
        %v2266 = vsel %vm1223, %v2259, 0
        %2268 = vmatpush.bf16.msra.mxu0 0
        %2269 = vmatpush.bf16.msra.mxu0 0
        %2270 = vmatpush.bf16.msra.mxu0 0
        %2271 = vmatpush.bf16.msra.mxu0 0
        %2272 = vmatpush.bf16.msra.mxu0 0
        %2273 = vmatpush.bf16.msra.mxu0 0
        %2274 = vmatpush.bf16.msra.mxu0 %v2261
        %2275 = vmatpush.bf16.msra.mxu0 %v2260
        %2276 = vmatmul.bf16.gmra.mxu0 %v2266
        %v2277 = vpop.f32.mrf.mxu0
        %v2278 = vadd.f32 %v2263, %v2277
        %v2279 = vpop.f32.mrf.mxu0
        %2280 = vdwg.mxu0
        %v2281 = vmul.f32 %v2278, 0.5
        %v2282 = vmul.f32 %v2278, 0.70710677
        %v2283 = vmul.f32 %v2282, %v2282
        %v2284 = vmin.f32 16.0, %v2283
        %v2285 = vmul.f32 %v2284, 2.1237322e-06
        %v2286 = vadd.f32 %v2285, 0.00028619796
        %v2287 = vmul.f32 %v2284, %v2286
        %v2288 = vadd.f32 %v2287, 0.0036580483
        %v2289 = vmul.f32 %v2284, %v2288
        %v2290 = vadd.f32 %v2289, 0.05243302
        %v2291 = vmul.f32 %v2284, %v2290
        %v2292 = vadd.f32 %v2291, 0.18741608
        %v2293 = vmul.f32 %v2284, %v2292
        %v2294 = vadd.f32 %v2293, 1.1283791
        %v2295 = vmul.f32 %v2282, %v2294
        %v2296 = vmul.f32 %v2284, 3.8918573e-05
        %v2297 = vadd.f32 %v2296, 0.001143296
        %v2298 = vmul.f32 %v2284, %v2297
        %v2299 = vadd.f32 %v2298, 0.014752088
        %v2300 = vmul.f32 %v2284, %v2299
        %v2301 = vadd.f32 %v2300, 0.112945676
        %v2302 = vmul.f32 %v2284, %v2301
        %v2303 = vadd.f32 %v2302, 0.4994258
        %v2304 = vmul.f32 %v2284, %v2303
        %v2305 = vadd.f32 %v2304, 1.0
        %v2306 = vrcp.pop %v2305
        %v2307 = vmul.f32 %v2305, %v2306
        %v2308 = vsub.f32 1.0, %v2307
        %v2309 = vmul.f32 %v2306, %v2308
        %v2310 = vadd.f32 %v2306, %v2309
        %vm2311 = vweird.f32 %v2305
        %vm2312 = vweird.f32 %v2306
        %vm2313 = vmor %vm2311, %vm2312
        %v2314 = vsel %vm2313, %v2306, %v2310
        %v2315 = vand.u32 2147483647, %v2305
        %vm2316 = vcmp.eq.f32.partialorder %v2315, 8.507059e+37
        %v2317 = vand.u32 %v2305, 2147483648
        %v2318 = vor.u32 1.1754944e-38, %v2317
        %v2319 = vsel %vm2316, %v2318, %v2314
        %v2320 = vmul.f32 %v2295, %v2319
        %v2321 = vmin.f32 %v2320, 1.0
        %v2322 = vmax.f32 %v2321, -1.0
        %v2323 = vadd.f32 %v2322, 1.0
        %v2324 = vmul.f32 %v2281, %v2323
        %v2325 = vld [vmem:[%s15] sm:$0xff]
        %v2326 = vld [vmem:[%s15 + $0x8] sm:$0xff]
        %v2327 = vld [vmem:[%s15 + $0x10] sm:$0xff]
        %v2328 = vld [vmem:[%s15 + $0x18] sm:$0xff]
        %v2329 = vld [vmem:[%s15 + $0x20] sm:$0xff]
        %v2330 = vld [vmem:[%s15 + $0x28] sm:$0xff]
        %v2331 = vld [vmem:[%s15 + $0x30] sm:$0xff]
        %v2332 = vld [vmem:[%s15 + $0x38] sm:$0xff]
        %v2333 = vld [vmem:[#allocation24] sm:$0x1]
        %v2334 = vpack.c.bf16 %v2324, %v2324
        %v2335 = vpack.c.bf16 %v2326, %v2325
        %v2336 = vpack.c.bf16 %v2328, %v2327
        %v2337 = vpack.c.bf16 %v2330, %v2329
        %v2338 = vpack.c.bf16 %v2332, %v2331
        %v2340 = vperm.slane %v2333, 0
        %vm2342 = vcmask 523264
        %v2344 = vsel %vm2342, %v2334, 0
        %2346 = vmatpush.bf16.msra.mxu0 0
        %2347 = vmatpush.bf16.msra.mxu0 0
        %2348 = vmatpush.bf16.msra.mxu0 0
        %2349 = vmatpush.bf16.msra.mxu0 0
        %2350 = vmatpush.bf16.msra.mxu0 %v2338
        %2351 = vmatpush.bf16.msra.mxu0 %v2337
        %2352 = vmatpush.bf16.msra.mxu0 %v2336
        %2353 = vmatpush.bf16.msra.mxu0 %v2335
        %2354 = vmatmul.bf16.gmra.mxu0 %v2344
        %v2355 = vpop.f32.mrf.mxu0
        %v2356 = vadd.f32 %v2340, %v2355
        %v2357 = vpop.f32.mrf.mxu0
        %2358 = vdwg.mxu0
        %s2359 = scalar_lea.vmem %s17, 64
        %v2360 = vld [vmem:[%s2359] sm:$0xff]
        %v2361 = vld [vmem:[%s2359 + $0x8] sm:$0xff]
        %v2362 = vld [vmem:[%s2359 + $0x10] sm:$0xff]
        %v2363 = vld [vmem:[%s2359 + $0x18] sm:$0xff]
        %s2364 = scalar_lea.vmem [#allocation26], 2
        %v2365 = vld [vmem:[%s2364] sm:$0x1]
        %v2366 = vpack.c.bf16 %v2361, %v2360
        %v2367 = vpack.c.bf16 %v2363, %v2362
        %2368 = vmatpush.bf16.msra.mxu0 0
        %2369 = vmatpush.bf16.msra.mxu0 0
        %2370 = vmatpush.bf16.msra.mxu0 0
        %2371 = vmatpush.bf16.msra.mxu0 0
        %2372 = vmatpush.bf16.msra.mxu0 0
        %2373 = vmatpush.bf16.msra.mxu0 0
        %2374 = vmatpush.bf16.msra.mxu0 %v2367
        %2375 = vmatpush.bf16.msra.mxu0 %v2366
        %2376 = vmatmul.bf16.gmra.mxu0 %v1585
        %v2377 = vpop.f32.mrf.mxu0
        %v2378 = vadd.f32 %v2365, %v2377
        %v2379 = vpop.f32.mrf.mxu0
        %2380 = vdwg.mxu0
        %s2381 = scalar_lea.vmem [#allocation27], 2
        %v2382 = vld [vmem:[%s2381] sm:$0x1]
        %s2383 = scalar_lea.vmem [#allocation29], 2
        %v2384 = vld [vmem:[%s2383] sm:$0x1]
        %v2385 = vsel %vm1223, %v2356, 0.0
        %2386 = vadd.xlane.f32.xlu0 %v2385
        %v2387 = vpop.xlane.xlu0 %2386
        %v2388 = vmul.f32 %v2387, %v1611
        %v2389 = vsub.f32 %v2356, %v2388
        %v2390 = vmul.f32 %v2389, %v2389
        %v2391 = vsel %vm1223, %v2390, 0.0
        %2392 = vadd.xlane.f32.xlu0 %v2391
        %v2393 = vpop.xlane.xlu0 %2392
        %v2394 = vmul.f32 %v2393, %v1611
        %v2395 = vadd.f32 %v2394, 1e-05
        %v2396 = vrsqrt.pop %v2395
        %v2397 = vmul.f32 %v2396, %v2395
        %v2398 = vmul.f32 %v2397, %v2396
        %v2399 = vmul.f32 0.5, %v2398
        %v2400 = vsub.f32 1.5, %v2399
        %v2401 = vmul.f32 %v2396, %v2400
        %vm2402 = vweird.f32 %v2395
        %vm2403 = vweird.f32 %v2396
        %vm2404 = vmor %vm2402, %vm2403
        %v2405 = vsel %vm2404, %v2396, %v2401
        %v2406 = vmul.f32 %v2389, %v2405
        %v2408 = vperm.slane %v2382, 0
        %v2410 = vmul.f32 %v2406, %v2408
        %v2412 = vperm.slane %v2384, 0
        %v2414 = vadd.f32 %v2410, %v2412
        %v2415 = vadd.f32 %v2378, 1.0
        %v2416 = vperm.slane %v2415, 0
        %v2417 = vmul.f32 %v2414, %v2416
        %v2418 = vperm.slane %v2378, 0
        %2420 = vrot.lane.b32.xlu0 %v2418, 96
        %v2421 = vpop.permute.xlu0 %2420
        %v2423 = vadd.f32 %v2417, %v2421
        %v2424 = vsub.f32 0.0, %v2423
        %v2425 = vmul.f32 %v2424, 1.442695
        %v2426 = vpow.pop %v2425
        %v2427 = vadd.f32 %v2426, 1.0
        %v2428 = vrcp.pop %v2427
        %v2429 = vmul.f32 %v2427, %v2428
        %v2430 = vsub.f32 1.0, %v2429
        %v2431 = vmul.f32 %v2428, %v2430
        %v2432 = vadd.f32 %v2428, %v2431
        %vm2433 = vweird.f32 %v2427
        %vm2434 = vweird.f32 %v2428
        %vm2435 = vmor %vm2433, %vm2434
        %v2436 = vsel %vm2435, %v2428, %v2432
        %v2437 = vand.u32 2147483647, %v2427
        %vm2438 = vcmp.eq.f32.partialorder %v2437, 8.507059e+37
        %v2439 = vand.u32 %v2427, 2147483648
        %v2440 = vor.u32 1.1754944e-38, %v2439
        %v2441 = vsel %vm2438, %v2440, %v2436
        %v2442 = vmul.f32 %v2423, %v2441
        %s2443 = scalar_lea.vmem [#allocation30], 64
        %v2444 = vld [vmem:[%s2443] sm:$0xff]
        %v2445 = vld [vmem:[%s2443 + $0x8] sm:$0xff]
        %v2446 = vld [vmem:[%s2443 + $0x10] sm:$0xff]
        %v2447 = vld [vmem:[%s2443 + $0x18] sm:$0xff]
        %s2448 = scalar_lea.vmem %s22, 2
        %v2449 = vld [vmem:[%s2448] sm:$0x1]
        %v2450 = vpack.c.bf16 %v2442, %v2442
        %v2451 = vpack.c.bf16 %v2445, %v2444
        %v2452 = vpack.c.bf16 %v2447, %v2446
        %v2454 = vperm.slane %v2449, 0
        %v2457 = vsel %vm1223, %v2450, 0
        %2459 = vmatpush.bf16.msra.mxu0 0
        %2460 = vmatpush.bf16.msra.mxu0 0
        %2461 = vmatpush.bf16.msra.mxu0 0
        %2462 = vmatpush.bf16.msra.mxu0 0
        %2463 = vmatpush.bf16.msra.mxu0 0
        %2464 = vmatpush.bf16.msra.mxu0 0
        %2465 = vmatpush.bf16.msra.mxu0 %v2452
        %2466 = vmatpush.bf16.msra.mxu0 %v2451
        %2467 = vmatmul.bf16.gmra.mxu0 %v2457
        %v2468 = vpop.f32.mrf.mxu0
        %v2469 = vadd.f32 %v2454, %v2468
        %v2470 = vpop.f32.mrf.mxu0
        %2471 = vdwg.mxu0
        %v2472 = vadd.f32 %v2469, %v2253
        %s2473 = scalar_lea.vmem [#allocation32], 2
        %v2474 = vld [vmem:[%s2473] sm:$0x1]
        %s2475 = scalar_lea.vmem [#allocation33], 2
        %v2476 = vld [vmem:[%s2475] sm:$0x1]
        %v2477 = vsel %vm1223, %v2472, 0.0
        %2478 = vadd.xlane.f32.xlu0 %v2477
        %v2479 = vpop.xlane.xlu0 %2478
        %v2480 = vmul.f32 %v2479, %v1611
        %v2481 = vsub.f32 %v2472, %v2480
        %v2482 = vmul.f32 %v2481, %v2481
        %v2483 = vsel %vm1223, %v2482, 0.0
        %2484 = vadd.xlane.f32.xlu0 %v2483
        %v2485 = vpop.xlane.xlu0 %2484
        %v2486 = vmul.f32 %v2485, %v1611
        %v2487 = vadd.f32 %v2486, 1e-06
        %v2488 = vrsqrt.pop %v2487
        %v2489 = vmul.f32 %v2488, %v2487
        %v2490 = vmul.f32 %v2489, %v2488
        %v2491 = vmul.f32 0.5, %v2490
        %v2492 = vsub.f32 1.5, %v2491
        %v2493 = vmul.f32 %v2488, %v2492
        %vm2494 = vweird.f32 %v2487
        %vm2495 = vweird.f32 %v2488
        %vm2496 = vmor %vm2494, %vm2495
        %v2497 = vsel %vm2496, %v2488, %v2493
        %v2498 = vmul.f32 %v2481, %v2497
        %v2500 = vperm.slane %v2474, 0
        %v2502 = vmul.f32 %v2498, %v2500
        %v2504 = vperm.slane %v2476, 0
        %v2506 = vadd.f32 %v2502, %v2504
        %2507 = vst.msk [vmem:[%s1166] sm:$0xff] %vm1223, %v2506
        %s2508 = sand.u32 %s606, 1
        %s2509 = scalar_lea.sflag [#allocation5], %s2508
        %s2510 = sand.u32 %s606, 1
        %s2511 = smul.addr %s2510, 8
        %s2512 = scalar_lea.vmem [#allocation35], %s2511
        %s2513 = sand.u32 %s58, 1
        %s2514 = scalar_lea.sflag [#allocation37], %s2513
        %s2515 = sand.u32 %s632, 1
        %s2516 = smul.addr %s2515, 32
        %s2517 = scalar_lea.vmem [#allocation36], %s2516
        %s2518 = sand.u32 %s58, 1
        %s2519 = scalar_lea.sflag [#allocation37], %s2518
        %s2520 = sand.u32 %s658, 1
        %s2521 = smul.addr %s2520, 32
        %s2522 = scalar_lea.vmem [#allocation38], %s2521
        // Predicated region
        $region201: #{decoder_layer_pallas.1} parent=119 // pred_check
          %p2523 = pneg %p616
        $region202: #{decoder_layer_pallas.1} parent=119 // pred_check_branch
          %2525 = sbr.rel (%p2523) target = $region204
        $region203: #{decoder_layer_pallas.1} parent=119 // pred_region
          %2527 = vsyncadd %s2509, 0
          %s2528 = smul.addr %s58, 8
          %s2529 = scalar_lea.hbm %s25, %s2528
          %s2531 = sshll.u32 %s2512, 4
          %s2532 = int_to_ptr.vmem [resolvable:$true] %s2531
          %s2533 = sshll.u32 %s2529, 4
          %s2534 = int_to_ptr.hbm [resolvable:$true] %s2533
          %2536 = dma.vmem_to_hbm [thread:$0]  %s2532, 128, %s2534, %s2509
        $region204: #{decoder_layer_pallas.1} parent=119 // pred_fallthru
          _
        // Predicated region
        $region205: #{decoder_layer_pallas.1} parent=119 // pred_check
          %p2537 = pneg %p642
        $region206: #{decoder_layer_pallas.1} parent=119 // pred_check_branch
          %2539 = sbr.rel (%p2537) target = $region208
        $region207: #{decoder_layer_pallas.1} parent=119 // pred_region
          %2541 = vsyncadd %s2514, 0
          %s2542 = smul.addr %s58, 4
          %s2543 = smul.addr %s2542, 8
          %s2544 = scalar_lea.hbm %s26, %s2543
          %s2545 = sshll.u32 %s2517, 4
          %s2546 = int_to_ptr.vmem [resolvable:$true] %s2545
          %s2547 = sshll.u32 %s2544, 4
          %s2548 = int_to_ptr.hbm [resolvable:$true] %s2547
          %2553 = dma.vmem_to_hbm [thread:$0]  %s2546, 512, %s2548, %s2514, 128, 128, 8
        $region208: #{decoder_layer_pallas.1} parent=119 // pred_fallthru
          _
        // Predicated region
        $region209: #{decoder_layer_pallas.1} parent=119 // pred_check
          %p2554 = pneg %p668
        $region210: #{decoder_layer_pallas.1} parent=119 // pred_check_branch
          %2556 = sbr.rel (%p2554) target = $region212
        $region211: #{decoder_layer_pallas.1} parent=119 // pred_region
          %2558 = vsyncadd %s2519, 0
          %s2559 = smul.addr %s58, 4
          %s2560 = smul.addr %s2559, 8
          %s2561 = scalar_lea.hbm %s27, %s2560
          %s2562 = sshll.u32 %s2522, 4
          %s2563 = int_to_ptr.vmem [resolvable:$true] %s2562
          %s2564 = sshll.u32 %s2561, 4
          %s2565 = int_to_ptr.hbm [resolvable:$true] %s2564
          %2570 = dma.vmem_to_hbm [thread:$0]  %s2563, 512, %s2565, %s2519, 128, 128, 8
        $region212: #{decoder_layer_pallas.1} parent=119 // pred_fallthru
          _
      $region120: #{decoder_layer_pallas.1} parent=5 // pred_fallthru
        _
      %p2571 = scmp.le.s32.totalorder 2, %s53
      // Predicated region
      $region213: #{decoder_layer_pallas.1} parent=5 // pred_check
        %p2572 = pneg %p2571
      $region214: #{decoder_layer_pallas.1} parent=5 // pred_check_branch
        %2574 = sbr.rel (%p2572) target = $region216
      $region215: #{decoder_layer_pallas.1} parent=5 // pred_region
        %s2575 = ssub.s32 %s53, 2
        // Predicated region
        $region217: #{decoder_layer_pallas.1} parent=215 // pred_check
          %p2576 = pneg %p622
        $region218: #{decoder_layer_pallas.1} parent=215 // pred_check_branch
          %2578 = sbr.rel (%p2576) target = $region220
        $region219: #{decoder_layer_pallas.1} parent=215 // pred_region
          %s2579 = sand.u32 %s607, 1
          %s2580 = scalar_lea.sflag [#allocation5], %s2579
          %s2581 = sand.u32 %s607, 1
          %s2582 = smul.addr %s2581, 8
          %s2583 = scalar_lea.vmem [#allocation35], %s2582
          %2585 = dma.done %s2580, 128
        $region220: #{decoder_layer_pallas.1} parent=215 // pred_fallthru
          _
        // Predicated region
        $region221: #{decoder_layer_pallas.1} parent=215 // pred_check
          %p2586 = pneg %p648
        $region222: #{decoder_layer_pallas.1} parent=215 // pred_check_branch
          %2588 = sbr.rel (%p2586) target = $region224
        $region223: #{decoder_layer_pallas.1} parent=215 // pred_region
          %s2589 = sand.u32 %s59, 1
          %s2590 = scalar_lea.sflag [#allocation37], %s2589
          %s2591 = sand.u32 %s633, 1
          %s2592 = smul.addr %s2591, 32
          %s2593 = scalar_lea.vmem [#allocation36], %s2592
          %2595 = dma.done %s2590, 512
        $region224: #{decoder_layer_pallas.1} parent=215 // pred_fallthru
          _
        // Predicated region
        $region225: #{decoder_layer_pallas.1} parent=215 // pred_check
          %p2596 = pneg %p674
        $region226: #{decoder_layer_pallas.1} parent=215 // pred_check_branch
          %2598 = sbr.rel (%p2596) target = $region228
        $region227: #{decoder_layer_pallas.1} parent=215 // pred_region
          %s2599 = sand.u32 %s59, 1
          %s2600 = scalar_lea.sflag [#allocation37], %s2599
          %s2601 = sand.u32 %s659, 1
          %s2602 = smul.addr %s2601, 32
          %s2603 = scalar_lea.vmem [#allocation38], %s2602
          %2605 = dma.done %s2600, 512
        $region228: #{decoder_layer_pallas.1} parent=215 // pred_fallthru
          _
      $region216: #{decoder_layer_pallas.1} parent=5 // pred_fallthru
        _
    $region6: #{decoder_layer_pallas.1} parent=1 // loop_footer
      %s57 = sadd.s32 1, %s53
    $region7: #{decoder_layer_pallas.1} parent=1 // loop_footer_branch
      %52 = sbr.rel target = $region3
    $region8: #{decoder_layer_pallas.1} parent=1 // loop_exit
      _
    %2606 = vsyncpa [#allocation4], 1
    %s2607 = scalar_lea.sflag [#allocation4], 1
    %2608 = vsyncpa %s2607, 1
    %2609 = vsyncpa [#allocation7], 1
    %2610 = vsyncpa [#allocation10], 1
    %2611 = vsyncpa [#allocation13], 1
    %2612 = vsyncpa [#allocation16], 1
    %2613 = vsyncpa [#allocation19], 1
    %2614 = vsyncpa [#allocation22], 1
    %2615 = vsyncpa [#allocation25], 1
    %2616 = vsyncpa [#allocation28], 1
    %2617 = vsyncpa [#allocation31], 1
    %2618 = vsyncpa [#allocation34], 1
    %2619 = vsyncpa [#allocation5], 1
    %s2620 = scalar_lea.sflag [#allocation5], 1
    %2621 = vsyncpa %s2620, 1
    %2622 = vsyncpa [#allocation37], 1
    %s2623 = scalar_lea.sflag [#allocation37], 1
    %2624 = vsyncpa %s2623, 1

</llo_original>
